<compile_context>
chip_gen: v7x
topology: tpu7x:2x2x1
jax: 0.10.0
libtpu: 0.0.40
codegen_flags: <defaults>
</compile_context>

<pallas_src>
import functools

import jax
import jax.numpy as jnp
from jax import lax
from jax.experimental import pallas as pl
from jax.experimental.pallas import tpu as pltpu


def _cdiv(a, b):
    return -(-a // b)


def _rup(x, m):
    return _cdiv(x, m) * m


# --------------------------------------------------------------------------
# Fused matmul kernel:  act(A) @ B  [+ bias]  [sigmoid]
# --------------------------------------------------------------------------

def _matmul_fused_kernel(*refs, act, epi, has_bias):
    if has_bias:
        a_ref, b_ref, bias_ref, o_ref = refs
    else:
        a_ref, b_ref, o_ref = refs
        bias_ref = None

    k = pl.program_id(2)

    a = a_ref[...]
    if act == "relu":
        a = jnp.maximum(a, jnp.zeros((), a.dtype))
    elif act == "leaky":
        a = jnp.where(a > 0, a, a * jnp.asarray(0.2, a.dtype))

    @pl.when(k == 0)
    def _():
        o_ref[...] = jnp.zeros_like(o_ref)

    # output block is resident across the k (reduction) axis -> accumulate in place (f32).
    o_ref[...] += jnp.dot(a, b_ref[...], preferred_element_type=jnp.float32)

    if has_bias or epi is not None:
        @pl.when(k == pl.num_programs(2) - 1)
        def _():
            y = o_ref[...]
            if has_bias:
                y = y + bias_ref[...]
            if epi == "sigmoid":
                y = 1.0 / (1.0 + jnp.exp(-y))
            o_ref[...] = y


def matmul_fused(a, b, bias=None, act=None, epi=None):
    """act(a) @ b (+ bias) (sigmoid).  a:(M,K)  b:(K,N)  bias:(N,)|None -> (M,N) f32.

    Operands are cast to bf16 (f32 MXU accumulation). Tiles adapt to the problem: K and N
    use full-extent blocks (legal: block dims equal to the array dims bypass the (8,128)
    rule), M is padded only to a multiple of 8 and split into <=256-row tiles."""
    M, K = a.shape
    _, N = b.shape

    a = a.astype(jnp.bfloat16)
    b = b.astype(jnp.bfloat16)

    # M (sublane) tiles: minimal padding, <=256 rows per tile (keeps a parallel axis >=2
    # blocks for megacore on larger layers, bounded VMEM on all generations).
    nm = _cdiv(M, 256)
    tm = _rup(_cdiv(M, nm), 8)
    Mp = _rup(M, tm)
    # N (lane) tiles: full extent when small, else 256-wide (multiple of 128).
    if N <= 512:
        tn, Np = N, N
    else:
        tn = 256
        Np = _rup(N, tn)
    # K (contraction) tiles: full extent when it fits comfortably, else 512-wide.
    if K <= 2048:
        tk, Kp = K, K
    else:
        tk = 512
        Kp = _rup(K, tk)

    if (Mp, Kp) != (M, K):
        a = jnp.pad(a, ((0, Mp - M), (0, Kp - K)))   # act(0)=0, so K zero-padding is safe
    if (Kp, Np) != (K, N):
        b = jnp.pad(b, ((0, Kp - K), (0, Np - N)))

    has_bias = bias is not None
    inputs = [a, b]
    in_specs = [
        pl.BlockSpec((tm, tk), lambda i, j, kk: (i, kk)),
        pl.BlockSpec((tk, tn), lambda i, j, kk: (kk, j)),
    ]
    if has_bias:
        bias2 = bias.astype(jnp.float32).reshape(1, N)
        if Np != N:
            bias2 = jnp.pad(bias2, ((0, 0), (0, Np - N)))
        inputs.append(bias2)
        in_specs.append(pl.BlockSpec((1, tn), lambda i, j, kk: (0, j)))

    out = pl.pallas_call(
        functools.partial(_matmul_fused_kernel, act=act, epi=epi, has_bias=has_bias),
        out_shape=jax.ShapeDtypeStruct((Mp, Np), jnp.float32),
        grid=(Mp // tm, Np // tn, Kp // tk),
        in_specs=in_specs,
        out_specs=pl.BlockSpec((tm, tn), lambda i, j, kk: (i, j)),
        compiler_params=pltpu.CompilerParams(
            dimension_semantics=("parallel", "parallel", "arbitrary")),
    )(*inputs)

    if (Mp, Np) != (M, N):
        out = out[:M, :N]
    return out


# --------------------------------------------------------------------------
# BatchNorm2d (training-mode batch statistics), tiled & lane-dense
# --------------------------------------------------------------------------

def _bn_reduce_kernel(x_ref, o_ref):
    @pl.when(pl.program_id(0) == 0)
    def _():
        o_ref[...] = jnp.zeros_like(o_ref)
    x = x_ref[...]
    s = jnp.sum(x, axis=0, keepdims=True)          # (1, L)
    sq = jnp.sum(x * x, axis=0, keepdims=True)     # (1, L)
    rid = lax.broadcasted_iota(jnp.int32, o_ref.shape, 0)
    o_ref[...] += jnp.where(rid == 0, s, 0.0) + jnp.where(rid == 1, sq, 0.0)


def _scale_shift_kernel(x_ref, sc_ref, sh_ref, o_ref):
    o_ref[...] = x_ref[...] * sc_ref[...] + sh_ref[...]


def batchnorm2d_pallas(x, gamma, beta, eps=1e-5):
    """Training-mode BatchNorm2d (biased batch variance over N,H,W), NHWC input.

    Pass 1: tiled reduction over row tiles of the lane-dense (N*H, W*C) view accumulating
            per-(w,c) sum / sum-of-squares (tiny per-channel finalize stays in JAX).
    Pass 2: tiled, megacore-parallel scale/shift with the affine (gamma,beta) folded in."""
    N, H, W, C = x.shape
    R, L = N * H, W * C
    x2 = x.reshape(R, L).astype(jnp.float32)

    # row-tile: multiple of 8, capped so one tile stays ~<=2 MiB of VMEM (safe on v7x too).
    cap = max(8, ((2 * 1024 * 1024) // (4 * L)) // 8 * 8)
    tr = min(_rup(R, 8), cap)
    Rp = _rup(R, tr)
    if Rp != R:
        x2 = jnp.pad(x2, ((0, Rp - R), (0, 0)))     # zero rows do not perturb the sums

    sums = pl.pallas_call(
        _bn_reduce_kernel,
        out_shape=jax.ShapeDtypeStruct((8, L), jnp.float32),
        grid=(Rp // tr,),
        in_specs=[pl.BlockSpec((tr, L), lambda r: (r, 0))],
        out_specs=pl.BlockSpec((8, L), lambda r: (0, 0)),
        compiler_params=pltpu.CompilerParams(dimension_semantics=("arbitrary",)),
    )(x2)

    cnt = float(N * H * W)
    s = sums[0].reshape(W, C).sum(axis=0)
    sq = sums[1].reshape(W, C).sum(axis=0)
    mean = s / cnt
    var = jnp.maximum(sq / cnt - mean * mean, 0.0)              # biased var (PyTorch training BN)
    scale = gamma.astype(jnp.float32) * lax.rsqrt(var + eps)
    shift = beta.astype(jnp.float32) - mean * scale
    sc = jnp.tile(scale, W).reshape(1, L)
    sh = jnp.tile(shift, W).reshape(1, L)

    out = pl.pallas_call(
        _scale_shift_kernel,
        out_shape=jax.ShapeDtypeStruct((Rp, L), jnp.float32),
        grid=(Rp // tr,),
        in_specs=[pl.BlockSpec((tr, L), lambda r: (r, 0)),
                  pl.BlockSpec((1, L), lambda r: (0, 0)),
                  pl.BlockSpec((1, L), lambda r: (0, 0))],
        out_specs=pl.BlockSpec((tr, L), lambda r: (r, 0)),
        compiler_params=pltpu.CompilerParams(dimension_semantics=("parallel",)),
    )(x2, sc, sh)
    return out[:R].reshape(N, H, W, C)


# --------------------------------------------------------------------------
# Convolutions (im2col / sub-pixel glue + fused Pallas matmul)
# --------------------------------------------------------------------------

def _im2col(x, k, stride, pad):
    """x: NHWC -> patches (N*OH*OW, k*k*C) with (kh, kw, Cin) column ordering."""
    N, H, W, C = x.shape
    xp = jnp.pad(x, ((0, 0), (pad, pad), (pad, pad), (0, 0))) if pad else x
    OH = (H + 2 * pad - k) // stride + 1
    OW = (W + 2 * pad - k) // stride + 1
    cols = []
    for i in range(k):
        for j in range(k):
            cols.append(xp[:, i:i + stride * OH:stride, j:j + stride * OW:stride, :])
    patches = jnp.concatenate(cols, axis=-1)
    return patches.reshape(N * OH * OW, k * k * C), (N, OH, OW)
# TODO(synk): im2col patches are still materialized by XLA; an in-kernel im2col
#             (memory_space=pl.ANY + manual DMA of input row bands) would cut conv HBM
#             traffic further at production image sizes.


def conv2d_pallas(x, w_torch, bias, stride, pad, act=None, epi=None):
    """Conv2d with PyTorch weight layout (Cout, Cin, kh, kw), NHWC activations.
    `act` is the preceding nn module's activation, fused as a matmul prologue."""
    Cout, Cin, kh, kw = w_torch.shape
    w2 = jnp.transpose(w_torch, (2, 3, 1, 0)).reshape(kh * kw * Cin, Cout)
    patches, (N, OH, OW) = _im2col(x, kh, stride, pad)
    out = matmul_fused(patches, w2, bias=bias, act=act, epi=epi)
    return out.reshape(N, OH, OW, Cout)


def conv_transpose2d_pallas(x, w_torch, bias, act=None):
    """ConvTranspose2d(k=4, stride=2, pad=1), PyTorch weight layout (Cin, Cout, 4, 4).

    Exact 4-phase sub-pixel decomposition (no zero-dilated input):
        out[2u  ] = x[u-1]*w[3] + x[u]*w[1]     (even output parity: taps u-1,u ; kidx 3,1)
        out[2u+1] = x[u]*w[2]   + x[u+1]*w[0]   (odd  output parity: taps u,u+1 ; kidx 2,0)
    applied along both spatial dims -> 4 small GEMMs whose outputs are interleaved."""
    Cin, Cout, kh, kw = w_torch.shape
    N, H, W, _ = x.shape
    xp = jnp.pad(x, ((0, 0), (1, 1), (1, 1), (0, 0)))
    M = N * H * W

    offs = ((0, 1), (1, 2))      # padded-coordinate tap starts for output parity 0 / 1
    kidx = ((3, 1), (2, 0))      # matching kernel spatial indices (unflipped torch weight)

    phase_rows = []
    for ph in (0, 1):
        phase_cols = []
        for pw in (0, 1):
            cols = []
            for dh in range(2):
                for dw in range(2):
                    r0, c0 = offs[ph][dh], offs[pw][dw]
                    cols.append(xp[:, r0:r0 + H, c0:c0 + W, :])
            patches = jnp.concatenate(cols, axis=-1).reshape(M, 4 * Cin)
            wk = w_torch[:, :, jnp.array(kidx[ph]), :][:, :, :, jnp.array(kidx[pw])]
            w2 = jnp.transpose(wk, (2, 3, 0, 1)).reshape(4 * Cin, Cout)
            o = matmul_fused(patches, w2, bias=bias, act=act)
            phase_cols.append(o.reshape(N, H, W, Cout))
        phase_rows.append(jnp.stack(phase_cols, axis=3))     # (N, H, W, 2, Cout)
    out = jnp.stack(phase_rows, axis=2)                      # (N, H, 2, W, 2, Cout)
    return out.reshape(N, 2 * H, 2 * W, Cout)


# --------------------------------------------------------------------------
# Parameters (deterministic, mirrors the PyTorch __init__ layer shapes)
# --------------------------------------------------------------------------

def _init_conv(key, cout, cin, k):
    kw_, kb_ = jax.random.split(key)
    return (0.02 * jax.random.normal(kw_, (cout, cin, k, k), jnp.float32),
            0.02 * jax.random.normal(kb_, (cout,), jnp.float32))


def _init_convT(key, cin, cout, k):
    kw_, kb_ = jax.random.split(key)
    return (0.02 * jax.random.normal(kw_, (cin, cout, k, k), jnp.float32),
            0.02 * jax.random.normal(kb_, (cout,), jnp.float32))


def make_block(keys, outer_nc, inner_nc, submodule=None, outermost=False, innermost=False):
    p = {"outermost": outermost, "innermost": innermost, "submodule": submodule}
    if outermost:
        # down = [Conv2d(3, inner_nc, 4, 2, 1)]
        p["down_w"], p["down_b"] = _init_conv(next(keys), inner_nc, 3, 4)
        # up = [ReLU, ConvT(inner_nc*2, inner_nc, 4, 2, 1), ReLU, Conv2d(inner_nc, 1, 1), Sigmoid]
        p["up_w"], p["up_b"] = _init_convT(next(keys), inner_nc * 2, inner_nc, 4)
        p["up2_w"], p["up2_b"] = _init_conv(next(keys), 1, inner_nc, 1)
    else:
        # down = [LeakyReLU(0.2), Conv2d(outer_nc, inner_nc, 4, 2, 1), BatchNorm2d(inner_nc)]
        p["down_w"], p["down_b"] = _init_conv(next(keys), inner_nc, outer_nc, 4)
        p["down_gamma"] = jnp.ones((inner_nc,), jnp.float32)   # PyTorch BN affine defaults
        p["down_beta"] = jnp.zeros((inner_nc,), jnp.float32)
        # up = [ReLU, ConvT(inner_nc{*2}, outer_nc, 4, 2, 1), BatchNorm2d(outer_nc)]
        in_ch = inner_nc if innermost else inner_nc * 2
        p["up_w"], p["up_b"] = _init_convT(next(keys), in_ch, outer_nc, 4)
        p["up_gamma"] = jnp.ones((outer_nc,), jnp.float32)
        p["up_beta"] = jnp.zeros((outer_nc,), jnp.float32)
    return p


def build_unet_params(ngf, key):
    keys = iter(jax.random.split(key, 16))
    blk = make_block(keys, outer_nc=ngf * 2, inner_nc=ngf * 4, innermost=True)
    blk = make_block(keys, outer_nc=ngf, inner_nc=ngf * 2, submodule=blk)
    blk = make_block(keys, outer_nc=ngf, inner_nc=ngf, submodule=blk, outermost=True)
    return blk


# --------------------------------------------------------------------------
# Forward (mirrors SingleUnetSkipConnectionBlock_L.forward; grid=False, use_dropout=False;
#          the in-place ReLUs are treated as functional, i.e. the skip concat uses the
#          original block input x — the conventional U-Net reading of this code)
# --------------------------------------------------------------------------

def block_forward(p, x):
    if p["outermost"]:
        d = conv2d_pallas(x, p["down_w"], p["down_b"], stride=2, pad=1)
        y = block_forward(p["submodule"], d)
        # [ReLU, ConvTranspose2d, ReLU, Conv2d(k=1), Sigmoid]: both ReLUs fused as matmul
        # prologues, the Sigmoid fused as the final matmul epilogue.
        y = conv_transpose2d_pallas(y, p["up_w"], p["up_b"], act="relu")
        y = conv2d_pallas(y, p["up2_w"], p["up2_b"], stride=1, pad=0,
                          act="relu", epi="sigmoid")
        return y
    # down: LeakyReLU(0.2) fused into the conv prologue; the conv bias is dropped because
    # the training-mode BatchNorm that follows cancels any per-channel constant exactly.
    d = conv2d_pallas(x, p["down_w"], None, stride=2, pad=1, act="leaky")
    d = batchnorm2d_pallas(d, p["down_gamma"], p["down_beta"])
    h = d if p["innermost"] else block_forward(p["submodule"], d)
    # up: ReLU fused into the transposed-conv prologue; bias dropped (BN follows).
    y = conv_transpose2d_pallas(h, p["up_w"], None, act="relu")
    y = batchnorm2d_pallas(y, p["up_gamma"], p["up_beta"])
    return jnp.concatenate([y, x], axis=-1)       # skip connection (channel concat)


def single_unet_forward(params, x_nchw):
    x = jnp.transpose(x_nchw, (0, 2, 3, 1)).astype(jnp.float32)   # NCHW -> NHWC
    y = block_forward(params, x)
    return jnp.transpose(y, (0, 3, 1, 2))                         # NHWC -> NCHW

# TODO(synk): the reference outermost forward returns (y, self.grid_y), but grid_y is never
#             defined unless a grid=True middle block runs (and `self.grid` vs `self.gird`
#             is a typo in the reference) -- so only y is returned here.
# TODO(synk): the grid=True branch (grid_layer + nn.Upsample(scale_factor=8, bilinear)) and
#             nn.Dropout (use_dropout=True) are not exercised by the default config; omitted.


# --------------------------------------------------------------------------
# Main
# --------------------------------------------------------------------------

if __name__ == "__main__":
    key = jax.random.PRNGKey(0)
    k_param, k_input = jax.random.split(key)

    ngf = 8
    params = build_unet_params(ngf, k_param)

    # 3 nested levels -> spatial must be divisible by 8; outermost downconv takes 3 channels.
    x = jax.random.normal(k_input, (2, 3, 16, 16), jnp.float32)

    fwd = jax.jit(lambda inp: single_unet_forward(params, inp))
    y = jax.block_until_ready(fwd(x))

    assert y.shape == (2, 1, 16, 16), y.shape
    assert bool(jnp.all(jnp.isfinite(y)))
    assert bool(jnp.all((y >= 0.0) & (y <= 1.0)))   # final Sigmoid range
    print("KERNEL_OK")
</pallas_src>

<mosaic_0001>
module attributes {stable_mosaic.version = 11 : i64} {
  func.func @_matmul_fused_kernel(%arg0: i32, %arg1: i32, %arg2: i32, %arg3: memref<128x48xbf16, #tpu.memory_space<vmem>>, %arg4: memref<48x8xbf16, #tpu.memory_space<vmem>>, %arg5: memref<1x8xf32, #tpu.memory_space<vmem>>, %arg6: memref<128x8xf32, #tpu.memory_space<vmem>>) attributes {dimension_semantics = [#tpu.dimension_semantics<parallel>, #tpu.dimension_semantics<parallel>, #tpu.dimension_semantics<arbitrary>], iteration_bounds = array<i64: 1, 1, 1>, scalar_prefetch = 0 : i64, scratch_operands = 0 : i64, tpu.core_type = #tpu.core_type<tc>, window_params = [{transform_indices = @transform_0, window_bounds = array<i64: 128, 48>}, {transform_indices = @transform_1, window_bounds = array<i64: 48, 8>}, {transform_indices = @transform_2, window_bounds = array<i64: 1, 8>}, {transform_indices = @transform_3, window_bounds = array<i64: 128, 8>}]} {
    %c0 = arith.constant 0 : index
    %c0_0 = arith.constant 0 : index
    %0 = vector.load %arg3[%c0, %c0_0] : memref<128x48xbf16, #tpu.memory_space<vmem>>, vector<128x48xbf16>
    %c0_i32 = arith.constant 0 : i32
    %1 = arith.cmpi eq, %arg2, %c0_i32 : i32
    %2 = arith.extui %1 : i1 to i32
    %c0_i32_1 = arith.constant 0 : i32
    %3 = arith.cmpi ne, %2, %c0_i32_1 : i32
    scf.if %3 {
      %cst_10 = arith.constant 0.000000e+00 : f32
      %12 = vector.broadcast %cst_10 : f32 to vector<128x8xf32>
      %c0_11 = arith.constant 0 : index
      %c0_12 = arith.constant 0 : index
      %13 = vector.load %arg6[%c0_11, %c0_12] : memref<128x8xf32, #tpu.memory_space<vmem>>, vector<128x8xf32>
      tpu.vector_store %arg6[%c0_11, %c0_12], %12 {strides = array<i32>} : memref<128x8xf32, #tpu.memory_space<vmem>>, vector<128x8xf32>,
    } else {
    }
    %c0_2 = arith.constant 0 : index
    %c0_3 = arith.constant 0 : index
    %4 = vector.load %arg6[%c0_2, %c0_3] : memref<128x8xf32, #tpu.memory_space<vmem>>, vector<128x8xf32>
    %c0_4 = arith.constant 0 : index
    %c0_5 = arith.constant 0 : index
    %5 = vector.load %arg4[%c0_4, %c0_5] : memref<48x8xbf16, #tpu.memory_space<vmem>>, vector<48x8xbf16>
    %cst = arith.constant dense<0.000000e+00> : vector<128x8xf32>
    %6 = tpu.matmul %0, %5, %cst {dimension_numbers = #tpu.dot_dimension_numbers<[1], [0], [0], [1], [0, 0, 1, 1], [], []>} : vector<128x48xbf16>, vector<48x8xbf16>, vector<128x8xf32> -> vector<128x8xf32>
    %7 = arith.addf %4, %6 : vector<128x8xf32>
    %c0_6 = arith.constant 0 : index
    %c0_7 = arith.constant 0 : index
    %8 = vector.load %arg6[%c0_6, %c0_7] : memref<128x8xf32, #tpu.memory_space<vmem>>, vector<128x8xf32>
    tpu.vector_store %arg6[%c0_6, %c0_7], %7 {strides = array<i32>} : memref<128x8xf32, #tpu.memory_space<vmem>>, vector<128x8xf32>,
    %c0_i32_8 = arith.constant 0 : i32
    %9 = arith.cmpi eq, %arg2, %c0_i32_8 : i32
    %10 = arith.extui %9 : i1 to i32
    %c0_i32_9 = arith.constant 0 : i32
    %11 = arith.cmpi ne, %10, %c0_i32_9 : i32
    scf.if %11 {
      %c0_10 = arith.constant 0 : index
      %c0_11 = arith.constant 0 : index
      %12 = vector.load %arg6[%c0_10, %c0_11] : memref<128x8xf32, #tpu.memory_space<vmem>>, vector<128x8xf32>
      %c0_12 = arith.constant 0 : index
      %c0_13 = arith.constant 0 : index
      %13 = vector.load %arg5[%c0_12, %c0_13] : memref<1x8xf32, #tpu.memory_space<vmem>>, vector<1x8xf32>
      %14 = vector.broadcast %13 : vector<1x8xf32> to vector<128x8xf32>
      %15 = arith.addf %12, %14 : vector<128x8xf32>
      %c0_14 = arith.constant 0 : index
      %c0_15 = arith.constant 0 : index
      %16 = vector.load %arg6[%c0_14, %c0_15] : memref<128x8xf32, #tpu.memory_space<vmem>>, vector<128x8xf32>
      tpu.vector_store %arg6[%c0_14, %c0_15], %15 {strides = array<i32>} : memref<128x8xf32, #tpu.memory_space<vmem>>, vector<128x8xf32>,
    } else {
    }
    return
  }
  func.func @transform_0(%arg0: i32, %arg1: i32, %arg2: i32) -> (i32, i32) {
    %c0_i32 = arith.constant 0 : i32
    return %arg0, %arg2 : i32, i32
  }
  func.func @transform_1(%arg0: i32, %arg1: i32, %arg2: i32) -> (i32, i32) {
    %c0_i32 = arith.constant 0 : i32
    return %arg2, %arg1 : i32, i32
  }
  func.func @transform_2(%arg0: i32, %arg1: i32, %arg2: i32) -> (i32, i32) {
    %c0_i32 = arith.constant 0 : i32
    %c0_i32_0 = arith.constant 0 : i32
    return %c0_i32, %arg1 : i32, i32
  }
  func.func @transform_3(%arg0: i32, %arg1: i32, %arg2: i32) -> (i32, i32) {
    %c0_i32 = arith.constant 0 : i32
    return %arg0, %arg1 : i32, i32
  }
}

module attributes {stable_mosaic.version = 11 : i64} {
  func.func @_matmul_fused_kernel(%arg0: i32, %arg1: i32, %arg2: i32, %arg3: memref<32x128xbf16, #tpu.memory_space<vmem>>, %arg4: memref<128x16xbf16, #tpu.memory_space<vmem>>, %arg5: memref<32x16xf32, #tpu.memory_space<vmem>>) attributes {dimension_semantics = [#tpu.dimension_semantics<parallel>, #tpu.dimension_semantics<parallel>, #tpu.dimension_semantics<arbitrary>], iteration_bounds = array<i64: 1, 1, 1>, scalar_prefetch = 0 : i64, scratch_operands = 0 : i64, tpu.core_type = #tpu.core_type<tc>, window_params = [{transform_indices = @transform_0, window_bounds = array<i64: 32, 128>}, {transform_indices = @transform_1, window_bounds = array<i64: 128, 16>}, {transform_indices = @transform_2, window_bounds = array<i64: 32, 16>}]} {
    %c0 = arith.constant 0 : index
    %c0_0 = arith.constant 0 : index
    %0 = vector.load %arg3[%c0, %c0_0] : memref<32x128xbf16, #tpu.memory_space<vmem>>, vector<32x128xbf16>
    %cst = arith.constant 0.000000e+00 : bf16
    %1 = vector.broadcast %cst : bf16 to vector<32x128xbf16>
    %2 = arith.cmpf ogt, %0, %1 : vector<32x128xbf16>
    %cst_1 = arith.constant 2.001950e-01 : bf16
    %3 = vector.broadcast %cst_1 : bf16 to vector<32x128xbf16>
    %4 = arith.mulf %0, %3 : vector<32x128xbf16>
    %5 = arith.select %2, %0, %4 : vector<32x128xi1>, vector<32x128xbf16>
    %c0_i32 = arith.constant 0 : i32
    %6 = arith.cmpi eq, %arg2, %c0_i32 : i32
    %7 = arith.extui %6 : i1 to i32
    %c0_i32_2 = arith.constant 0 : i32
    %8 = arith.cmpi ne, %7, %c0_i32_2 : i32
    scf.if %8 {
      %cst_10 = arith.constant 0.000000e+00 : f32
      %14 = vector.broadcast %cst_10 : f32 to vector<32x16xf32>
      %c0_11 = arith.constant 0 : index
      %c0_12 = arith.constant 0 : index
      %15 = vector.load %arg5[%c0_11, %c0_12] : memref<32x16xf32, #tpu.memory_space<vmem>>, vector<32x16xf32>
      tpu.vector_store %arg5[%c0_11, %c0_12], %14 {strides = array<i32>} : memref<32x16xf32, #tpu.memory_space<vmem>>, vector<32x16xf32>,
    } else {
    }
    %c0_3 = arith.constant 0 : index
    %c0_4 = arith.constant 0 : index
    %9 = vector.load %arg5[%c0_3, %c0_4] : memref<32x16xf32, #tpu.memory_space<vmem>>, vector<32x16xf32>
    %c0_5 = arith.constant 0 : index
    %c0_6 = arith.constant 0 : index
    %10 = vector.load %arg4[%c0_5, %c0_6] : memref<128x16xbf16, #tpu.memory_space<vmem>>, vector<128x16xbf16>
    %cst_7 = arith.constant dense<0.000000e+00> : vector<32x16xf32>
    %11 = tpu.matmul %5, %10, %cst_7 {dimension_numbers = #tpu.dot_dimension_numbers<[1], [0], [0], [1], [0, 0, 1, 1], [], []>} : vector<32x128xbf16>, vector<128x16xbf16>, vector<32x16xf32> -> vector<32x16xf32>
    %12 = arith.addf %9, %11 : vector<32x16xf32>
    %c0_8 = arith.constant 0 : index
    %c0_9 = arith.constant 0 : index
    %13 = vector.load %arg5[%c0_8, %c0_9] : memref<32x16xf32, #tpu.memory_space<vmem>>, vector<32x16xf32>
    tpu.vector_store %arg5[%c0_8, %c0_9], %12 {strides = array<i32>} : memref<32x16xf32, #tpu.memory_space<vmem>>, vector<32x16xf32>,
    return
  }
  func.func @transform_0(%arg0: i32, %arg1: i32, %arg2: i32) -> (i32, i32) {
    %c0_i32 = arith.constant 0 : i32
    return %arg0, %arg2 : i32, i32
  }
  func.func @transform_1(%arg0: i32, %arg1: i32, %arg2: i32) -> (i32, i32) {
    %c0_i32 = arith.constant 0 : i32
    return %arg2, %arg1 : i32, i32
  }
  func.func @transform_2(%arg0: i32, %arg1: i32, %arg2: i32) -> (i32, i32) {
    %c0_i32 = arith.constant 0 : i32
    return %arg0, %arg1 : i32, i32
  }
}

module attributes {stable_mosaic.version = 11 : i64} {
  func.func @_bn_reduce_kernel(%arg0: i32, %arg1: memref<8x64xf32, #tpu.memory_space<vmem>>, %arg2: memref<8x64xf32, #tpu.memory_space<vmem>>) attributes {dimension_semantics = [#tpu.dimension_semantics<arbitrary>], iteration_bounds = array<i64: 1>, scalar_prefetch = 0 : i64, scratch_operands = 0 : i64, tpu.core_type = #tpu.core_type<tc>, window_params = [{transform_indices = @transform_0, window_bounds = array<i64: 8, 64>}, {pipeline_mode = #tpu.pipeline_mode<synchronous>, transform_indices = @transform_1, window_bounds = array<i64: 8, 64>}]} {
    %c0_i32 = arith.constant 0 : i32
    %0 = arith.cmpi eq, %arg0, %c0_i32 : i32
    %1 = arith.extui %0 : i1 to i32
    %c0_i32_0 = arith.constant 0 : i32
    %2 = arith.cmpi ne, %1, %c0_i32_0 : i32
    scf.if %2 {
      %cst_10 = arith.constant 0.000000e+00 : f32
      %26 = vector.broadcast %cst_10 : f32 to vector<8x64xf32>
      %c0_11 = arith.constant 0 : index
      %c0_12 = arith.constant 0 : index
      %27 = vector.load %arg2[%c0_11, %c0_12] : memref<8x64xf32, #tpu.memory_space<vmem>>, vector<8x64xf32>
      tpu.vector_store %arg2[%c0_11, %c0_12], %26 {strides = array<i32>} : memref<8x64xf32, #tpu.memory_space<vmem>>, vector<8x64xf32>,
    } else {
    }
    %c0 = arith.constant 0 : index
    %c0_1 = arith.constant 0 : index
    %3 = vector.load %arg1[%c0, %c0_1] : memref<8x64xf32, #tpu.memory_space<vmem>>, vector<8x64xf32>
    %cst = arith.constant dense<0.000000e+00> : vector<64xf32>
    %4 = vector.multi_reduction <add>, %3, %cst [0] : vector<8x64xf32> to vector<64xf32>
    %5 = vector.shape_cast %4 : vector<64xf32> to vector<1x64xf32>
    %6 = arith.mulf %3, %3 : vector<8x64xf32>
    %cst_2 = arith.constant dense<0.000000e+00> : vector<64xf32>
    %7 = vector.multi_reduction <add>, %6, %cst_2 [0] : vector<8x64xf32> to vector<64xf32>
    %8 = vector.shape_cast %7 : vector<64xf32> to vector<1x64xf32>
    %9 = tpu.iota {dimensions = array<i32: 0>} : vector<8x64xi32>
    %c0_3 = arith.constant 0 : index
    %c0_4 = arith.constant 0 : index
    %10 = vector.load %arg2[%c0_3, %c0_4] : memref<8x64xf32, #tpu.memory_space<vmem>>, vector<8x64xf32>
    %c0_i32_5 = arith.constant 0 : i32
    %11 = vector.broadcast %c0_i32_5 : i32 to vector<8x64xi32>
    %12 = arith.cmpi eq, %9, %11 : vector<8x64xi32>
    %cst_6 = arith.constant 0.000000e+00 : f32
    %13 = vector.shape_cast %5 : vector<1x64xf32> to vector<1x64xf32>
    %14 = vector.broadcast %13 : vector<1x64xf32> to vector<8x64xf32>
    %15 = vector.broadcast %cst_6 : f32 to vector<8x64xf32>
    %16 = arith.select %12, %14, %15 : vector<8x64xi1>, vector<8x64xf32>
    %c1_i32 = arith.constant 1 : i32
    %17 = vector.broadcast %c1_i32 : i32 to vector<8x64xi32>
    %18 = arith.cmpi eq, %9, %17 : vector<8x64xi32>
    %cst_7 = arith.constant 0.000000e+00 : f32
    %19 = vector.shape_cast %8 : vector<1x64xf32> to vector<1x64xf32>
    %20 = vector.broadcast %19 : vector<1x64xf32> to vector<8x64xf32>
    %21 = vector.broadcast %cst_7 : f32 to vector<8x64xf32>
    %22 = arith.select %18, %20, %21 : vector<8x64xi1>, vector<8x64xf32>
    %23 = arith.addf %16, %22 : vector<8x64xf32>
    %24 = arith.addf %10, %23 : vector<8x64xf32>
    %c0_8 = arith.constant 0 : index
    %c0_9 = arith.constant 0 : index
    %25 = vector.load %arg2[%c0_8, %c0_9] : memref<8x64xf32, #tpu.memory_space<vmem>>, vector<8x64xf32>
    tpu.vector_store %arg2[%c0_8, %c0_9], %24 {strides = array<i32>} : memref<8x64xf32, #tpu.memory_space<vmem>>, vector<8x64xf32>,
    return
  }
  func.func @transform_0(%arg0: i32) -> (i32, i32) {
    %c0_i32 = arith.constant 0 : i32
    %c0_i32_0 = arith.constant 0 : i32
    return %arg0, %c0_i32 : i32, i32
  }
  func.func @transform_1(%arg0: i32) -> (i32, i32) {
    %c0_i32 = arith.constant 0 : i32
    %c0_i32_0 = arith.constant 0 : i32
    %c0_i32_1 = arith.constant 0 : i32
    return %c0_i32, %c0_i32_0 : i32, i32
  }
}

module attributes {stable_mosaic.version = 11 : i64} {
  func.func @_scale_shift_kernel(%arg0: i32, %arg1: memref<8x64xf32, #tpu.memory_space<vmem>>, %arg2: memref<1x64xf32, #tpu.memory_space<vmem>>, %arg3: memref<1x64xf32, #tpu.memory_space<vmem>>, %arg4: memref<8x64xf32, #tpu.memory_space<vmem>>) attributes {dimension_semantics = [#tpu.dimension_semantics<parallel>], iteration_bounds = array<i64: 1>, scalar_prefetch = 0 : i64, scratch_operands = 0 : i64, tpu.core_type = #tpu.core_type<tc>, window_params = [{transform_indices = @transform_0, window_bounds = array<i64: 8, 64>}, {pipeline_mode = #tpu.pipeline_mode<synchronous>, transform_indices = @transform_1, window_bounds = array<i64: 1, 64>}, {pipeline_mode = #tpu.pipeline_mode<synchronous>, transform_indices = @transform_2, window_bounds = array<i64: 1, 64>}, {transform_indices = @transform_3, window_bounds = array<i64: 8, 64>}]} {
    %c0 = arith.constant 0 : index
    %c0_0 = arith.constant 0 : index
    %0 = vector.load %arg1[%c0, %c0_0] : memref<8x64xf32, #tpu.memory_space<vmem>>, vector<8x64xf32>
    %c0_1 = arith.constant 0 : index
    %c0_2 = arith.constant 0 : index
    %1 = vector.load %arg2[%c0_1, %c0_2] : memref<1x64xf32, #tpu.memory_space<vmem>>, vector<1x64xf32>
    %2 = vector.broadcast %1 : vector<1x64xf32> to vector<8x64xf32>
    %3 = arith.mulf %0, %2 : vector<8x64xf32>
    %c0_3 = arith.constant 0 : index
    %c0_4 = arith.constant 0 : index
    %4 = vector.load %arg3[%c0_3, %c0_4] : memref<1x64xf32, #tpu.memory_space<vmem>>, vector<1x64xf32>
    %5 = vector.broadcast %4 : vector<1x64xf32> to vector<8x64xf32>
    %6 = arith.addf %3, %5 : vector<8x64xf32>
    %c0_5 = arith.constant 0 : index
    %c0_6 = arith.constant 0 : index
    %7 = vector.load %arg4[%c0_5, %c0_6] : memref<8x64xf32, #tpu.memory_space<vmem>>, vector<8x64xf32>
    tpu.vector_store %arg4[%c0_5, %c0_6], %6 {strides = array<i32>} : memref<8x64xf32, #tpu.memory_space<vmem>>, vector<8x64xf32>,
    return
  }
  func.func @transform_0(%arg0: i32) -> (i32, i32) {
    %c0_i32 = arith.constant 0 : i32
    %c0_i32_0 = arith.constant 0 : i32
    return %arg0, %c0_i32 : i32, i32
  }
  func.func @transform_1(%arg0: i32) -> (i32, i32) {
    %c0_i32 = arith.constant 0 : i32
    %c0_i32_0 = arith.constant 0 : i32
    %c0_i32_1 = arith.constant 0 : i32
    return %c0_i32, %c0_i32_0 : i32, i32
  }
  func.func @transform_2(%arg0: i32) -> (i32, i32) {
    %c0_i32 = arith.constant 0 : i32
    %c0_i32_0 = arith.constant 0 : i32
    %c0_i32_1 = arith.constant 0 : i32
    return %c0_i32, %c0_i32_0 : i32, i32
  }
  func.func @transform_3(%arg0: i32) -> (i32, i32) {
    %c0_i32 = arith.constant 0 : i32
    %c0_i32_0 = arith.constant 0 : i32
    return %arg0, %c0_i32 : i32, i32
  }
}

module attributes {stable_mosaic.version = 11 : i64} {
  func.func @_matmul_fused_kernel(%arg0: i32, %arg1: i32, %arg2: i32, %arg3: memref<8x256xbf16, #tpu.memory_space<vmem>>, %arg4: memref<256x32xbf16, #tpu.memory_space<vmem>>, %arg5: memref<8x32xf32, #tpu.memory_space<vmem>>) attributes {dimension_semantics = [#tpu.dimension_semantics<parallel>, #tpu.dimension_semantics<parallel>, #tpu.dimension_semantics<arbitrary>], iteration_bounds = array<i64: 1, 1, 1>, scalar_prefetch = 0 : i64, scratch_operands = 0 : i64, tpu.core_type = #tpu.core_type<tc>, window_params = [{transform_indices = @transform_0, window_bounds = array<i64: 8, 256>}, {transform_indices = @transform_1, window_bounds = array<i64: 256, 32>}, {transform_indices = @transform_2, window_bounds = array<i64: 8, 32>}]} {
    %c0 = arith.constant 0 : index
    %c0_0 = arith.constant 0 : index
    %0 = vector.load %arg3[%c0, %c0_0] : memref<8x256xbf16, #tpu.memory_space<vmem>>, vector<8x256xbf16>
    %cst = arith.constant 0.000000e+00 : bf16
    %1 = vector.broadcast %cst : bf16 to vector<8x256xbf16>
    %2 = arith.cmpf ogt, %0, %1 : vector<8x256xbf16>
    %cst_1 = arith.constant 2.001950e-01 : bf16
    %3 = vector.broadcast %cst_1 : bf16 to vector<8x256xbf16>
    %4 = arith.mulf %0, %3 : vector<8x256xbf16>
    %5 = arith.select %2, %0, %4 : vector<8x256xi1>, vector<8x256xbf16>
    %c0_i32 = arith.constant 0 : i32
    %6 = arith.cmpi eq, %arg2, %c0_i32 : i32
    %7 = arith.extui %6 : i1 to i32
    %c0_i32_2 = arith.constant 0 : i32
    %8 = arith.cmpi ne, %7, %c0_i32_2 : i32
    scf.if %8 {
      %cst_10 = arith.constant 0.000000e+00 : f32
      %14 = vector.broadcast %cst_10 : f32 to vector<8x32xf32>
      %c0_11 = arith.constant 0 : index
      %c0_12 = arith.constant 0 : index
      %15 = vector.load %arg5[%c0_11, %c0_12] : memref<8x32xf32, #tpu.memory_space<vmem>>, vector<8x32xf32>
      tpu.vector_store %arg5[%c0_11, %c0_12], %14 {strides = array<i32>} : memref<8x32xf32, #tpu.memory_space<vmem>>, vector<8x32xf32>,
    } else {
    }
    %c0_3 = arith.constant 0 : index
    %c0_4 = arith.constant 0 : index
    %9 = vector.load %arg5[%c0_3, %c0_4] : memref<8x32xf32, #tpu.memory_space<vmem>>, vector<8x32xf32>
    %c0_5 = arith.constant 0 : index
    %c0_6 = arith.constant 0 : index
    %10 = vector.load %arg4[%c0_5, %c0_6] : memref<256x32xbf16, #tpu.memory_space<vmem>>, vector<256x32xbf16>
    %cst_7 = arith.constant dense<0.000000e+00> : vector<8x32xf32>
    %11 = tpu.matmul %5, %10, %cst_7 {dimension_numbers = #tpu.dot_dimension_numbers<[1], [0], [0], [1], [0, 0, 1, 1], [], []>} : vector<8x256xbf16>, vector<256x32xbf16>, vector<8x32xf32> -> vector<8x32xf32>
    %12 = arith.addf %9, %11 : vector<8x32xf32>
    %c0_8 = arith.constant 0 : index
    %c0_9 = arith.constant 0 : index
    %13 = vector.load %arg5[%c0_8, %c0_9] : memref<8x32xf32, #tpu.memory_space<vmem>>, vector<8x32xf32>
    tpu.vector_store %arg5[%c0_8, %c0_9], %12 {strides = array<i32>} : memref<8x32xf32, #tpu.memory_space<vmem>>, vector<8x32xf32>,
    return
  }
  func.func @transform_0(%arg0: i32, %arg1: i32, %arg2: i32) -> (i32, i32) {
    %c0_i32 = arith.constant 0 : i32
    return %arg0, %arg2 : i32, i32
  }
  func.func @transform_1(%arg0: i32, %arg1: i32, %arg2: i32) -> (i32, i32) {
    %c0_i32 = arith.constant 0 : i32
    return %arg2, %arg1 : i32, i32
  }
  func.func @transform_2(%arg0: i32, %arg1: i32, %arg2: i32) -> (i32, i32) {
    %c0_i32 = arith.constant 0 : i32
    return %arg0, %arg1 : i32, i32
  }
}

module attributes {stable_mosaic.version = 11 : i64} {
  func.func @_matmul_fused_kernel(%arg0: i32, %arg1: i32, %arg2: i32, %arg3: memref<8x128xbf16, #tpu.memory_space<vmem>>, %arg4: memref<128x16xbf16, #tpu.memory_space<vmem>>, %arg5: memref<8x16xf32, #tpu.memory_space<vmem>>) attributes {dimension_semantics = [#tpu.dimension_semantics<parallel>, #tpu.dimension_semantics<parallel>, #tpu.dimension_semantics<arbitrary>], iteration_bounds = array<i64: 1, 1, 1>, scalar_prefetch = 0 : i64, scratch_operands = 0 : i64, tpu.core_type = #tpu.core_type<tc>, window_params = [{transform_indices = @transform_0, window_bounds = array<i64: 8, 128>}, {transform_indices = @transform_1, window_bounds = array<i64: 128, 16>}, {transform_indices = @transform_2, window_bounds = array<i64: 8, 16>}]} {
    %c0 = arith.constant 0 : index
    %c0_0 = arith.constant 0 : index
    %0 = vector.load %arg3[%c0, %c0_0] : memref<8x128xbf16, #tpu.memory_space<vmem>>, vector<8x128xbf16>
    %cst = arith.constant 0.000000e+00 : bf16
    %1 = vector.broadcast %cst : bf16 to vector<8x128xbf16>
    %2 = arith.maximumf %0, %1 : vector<8x128xbf16>
    %c0_i32 = arith.constant 0 : i32
    %3 = arith.cmpi eq, %arg2, %c0_i32 : i32
    %4 = arith.extui %3 : i1 to i32
    %c0_i32_1 = arith.constant 0 : i32
    %5 = arith.cmpi ne, %4, %c0_i32_1 : i32
    scf.if %5 {
      %cst_9 = arith.constant 0.000000e+00 : f32
      %11 = vector.broadcast %cst_9 : f32 to vector<8x16xf32>
      %c0_10 = arith.constant 0 : index
      %c0_11 = arith.constant 0 : index
      %12 = vector.load %arg5[%c0_10, %c0_11] : memref<8x16xf32, #tpu.memory_space<vmem>>, vector<8x16xf32>
      tpu.vector_store %arg5[%c0_10, %c0_11], %11 {strides = array<i32>} : memref<8x16xf32, #tpu.memory_space<vmem>>, vector<8x16xf32>,
    } else {
    }
    %c0_2 = arith.constant 0 : index
    %c0_3 = arith.constant 0 : index
    %6 = vector.load %arg5[%c0_2, %c0_3] : memref<8x16xf32, #tpu.memory_space<vmem>>, vector<8x16xf32>
    %c0_4 = arith.constant 0 : index
    %c0_5 = arith.constant 0 : index
    %7 = vector.load %arg4[%c0_4, %c0_5] : memref<128x16xbf16, #tpu.memory_space<vmem>>, vector<128x16xbf16>
    %cst_6 = arith.constant dense<0.000000e+00> : vector<8x16xf32>
    %8 = tpu.matmul %2, %7, %cst_6 {dimension_numbers = #tpu.dot_dimension_numbers<[1], [0], [0], [1], [0, 0, 1, 1], [], []>} : vector<8x128xbf16>, vector<128x16xbf16>, vector<8x16xf32> -> vector<8x16xf32>
    %9 = arith.addf %6, %8 : vector<8x16xf32>
    %c0_7 = arith.constant 0 : index
    %c0_8 = arith.constant 0 : index
    %10 = vector.load %arg5[%c0_7, %c0_8] : memref<8x16xf32, #tpu.memory_space<vmem>>, vector<8x16xf32>
    tpu.vector_store %arg5[%c0_7, %c0_8], %9 {strides = array<i32>} : memref<8x16xf32, #tpu.memory_space<vmem>>, vector<8x16xf32>,
    return
  }
  func.func @transform_0(%arg0: i32, %arg1: i32, %arg2: i32) -> (i32, i32) {
    %c0_i32 = arith.constant 0 : i32
    return %arg0, %arg2 : i32, i32
  }
  func.func @transform_1(%arg0: i32, %arg1: i32, %arg2: i32) -> (i32, i32) {
    %c0_i32 = arith.constant 0 : i32
    return %arg2, %arg1 : i32, i32
  }
  func.func @transform_2(%arg0: i32, %arg1: i32, %arg2: i32) -> (i32, i32) {
    %c0_i32 = arith.constant 0 : i32
    return %arg0, %arg1 : i32, i32
  }
}

module attributes {stable_mosaic.version = 11 : i64} {
  func.func @_matmul_fused_kernel(%arg0: i32, %arg1: i32, %arg2: i32, %arg3: memref<32x128xbf16, #tpu.memory_space<vmem>>, %arg4: memref<128x8xbf16, #tpu.memory_space<vmem>>, %arg5: memref<32x8xf32, #tpu.memory_space<vmem>>) attributes {dimension_semantics = [#tpu.dimension_semantics<parallel>, #tpu.dimension_semantics<parallel>, #tpu.dimension_semantics<arbitrary>], iteration_bounds = array<i64: 1, 1, 1>, scalar_prefetch = 0 : i64, scratch_operands = 0 : i64, tpu.core_type = #tpu.core_type<tc>, window_params = [{transform_indices = @transform_0, window_bounds = array<i64: 32, 128>}, {transform_indices = @transform_1, window_bounds = array<i64: 128, 8>}, {transform_indices = @transform_2, window_bounds = array<i64: 32, 8>}]} {
    %c0 = arith.constant 0 : index
    %c0_0 = arith.constant 0 : index
    %0 = vector.load %arg3[%c0, %c0_0] : memref<32x128xbf16, #tpu.memory_space<vmem>>, vector<32x128xbf16>
    %cst = arith.constant 0.000000e+00 : bf16
    %1 = vector.broadcast %cst : bf16 to vector<32x128xbf16>
    %2 = arith.maximumf %0, %1 : vector<32x128xbf16>
    %c0_i32 = arith.constant 0 : i32
    %3 = arith.cmpi eq, %arg2, %c0_i32 : i32
    %4 = arith.extui %3 : i1 to i32
    %c0_i32_1 = arith.constant 0 : i32
    %5 = arith.cmpi ne, %4, %c0_i32_1 : i32
    scf.if %5 {
      %cst_9 = arith.constant 0.000000e+00 : f32
      %11 = vector.broadcast %cst_9 : f32 to vector<32x8xf32>
      %c0_10 = arith.constant 0 : index
      %c0_11 = arith.constant 0 : index
      %12 = vector.load %arg5[%c0_10, %c0_11] : memref<32x8xf32, #tpu.memory_space<vmem>>, vector<32x8xf32>
      tpu.vector_store %arg5[%c0_10, %c0_11], %11 {strides = array<i32>} : memref<32x8xf32, #tpu.memory_space<vmem>>, vector<32x8xf32>,
    } else {
    }
    %c0_2 = arith.constant 0 : index
    %c0_3 = arith.constant 0 : index
    %6 = vector.load %arg5[%c0_2, %c0_3] : memref<32x8xf32, #tpu.memory_space<vmem>>, vector<32x8xf32>
    %c0_4 = arith.constant 0 : index
    %c0_5 = arith.constant 0 : index
    %7 = vector.load %arg4[%c0_4, %c0_5] : memref<128x8xbf16, #tpu.memory_space<vmem>>, vector<128x8xbf16>
    %cst_6 = arith.constant dense<0.000000e+00> : vector<32x8xf32>
    %8 = tpu.matmul %2, %7, %cst_6 {dimension_numbers = #tpu.dot_dimension_numbers<[1], [0], [0], [1], [0, 0, 1, 1], [], []>} : vector<32x128xbf16>, vector<128x8xbf16>, vector<32x8xf32> -> vector<32x8xf32>
    %9 = arith.addf %6, %8 : vector<32x8xf32>
    %c0_7 = arith.constant 0 : index
    %c0_8 = arith.constant 0 : index
    %10 = vector.load %arg5[%c0_7, %c0_8] : memref<32x8xf32, #tpu.memory_space<vmem>>, vector<32x8xf32>
    tpu.vector_store %arg5[%c0_7, %c0_8], %9 {strides = array<i32>} : memref<32x8xf32, #tpu.memory_space<vmem>>, vector<32x8xf32>,
    return
  }
  func.func @transform_0(%arg0: i32, %arg1: i32, %arg2: i32) -> (i32, i32) {
    %c0_i32 = arith.constant 0 : i32
    return %arg0, %arg2 : i32, i32
  }
  func.func @transform_1(%arg0: i32, %arg1: i32, %arg2: i32) -> (i32, i32) {
    %c0_i32 = arith.constant 0 : i32
    return %arg2, %arg1 : i32, i32
  }
  func.func @transform_2(%arg0: i32, %arg1: i32, %arg2: i32) -> (i32, i32) {
    %c0_i32 = arith.constant 0 : i32
    return %arg0, %arg1 : i32, i32
  }
}

module attributes {stable_mosaic.version = 11 : i64} {
  func.func @_bn_reduce_kernel(%arg0: i32, %arg1: memref<16x64xf32, #tpu.memory_space<vmem>>, %arg2: memref<8x64xf32, #tpu.memory_space<vmem>>) attributes {dimension_semantics = [#tpu.dimension_semantics<arbitrary>], iteration_bounds = array<i64: 1>, scalar_prefetch = 0 : i64, scratch_operands = 0 : i64, tpu.core_type = #tpu.core_type<tc>, window_params = [{transform_indices = @transform_0, window_bounds = array<i64: 16, 64>}, {pipeline_mode = #tpu.pipeline_mode<synchronous>, transform_indices = @transform_1, window_bounds = array<i64: 8, 64>}]} {
    %c0_i32 = arith.constant 0 : i32
    %0 = arith.cmpi eq, %arg0, %c0_i32 : i32
    %1 = arith.extui %0 : i1 to i32
    %c0_i32_0 = arith.constant 0 : i32
    %2 = arith.cmpi ne, %1, %c0_i32_0 : i32
    scf.if %2 {
      %cst_10 = arith.constant 0.000000e+00 : f32
      %26 = vector.broadcast %cst_10 : f32 to vector<8x64xf32>
      %c0_11 = arith.constant 0 : index
      %c0_12 = arith.constant 0 : index
      %27 = vector.load %arg2[%c0_11, %c0_12] : memref<8x64xf32, #tpu.memory_space<vmem>>, vector<8x64xf32>
      tpu.vector_store %arg2[%c0_11, %c0_12], %26 {strides = array<i32>} : memref<8x64xf32, #tpu.memory_space<vmem>>, vector<8x64xf32>,
    } else {
    }
    %c0 = arith.constant 0 : index
    %c0_1 = arith.constant 0 : index
    %3 = vector.load %arg1[%c0, %c0_1] : memref<16x64xf32, #tpu.memory_space<vmem>>, vector<16x64xf32>
    %cst = arith.constant dense<0.000000e+00> : vector<64xf32>
    %4 = vector.multi_reduction <add>, %3, %cst [0] : vector<16x64xf32> to vector<64xf32>
    %5 = vector.shape_cast %4 : vector<64xf32> to vector<1x64xf32>
    %6 = arith.mulf %3, %3 : vector<16x64xf32>
    %cst_2 = arith.constant dense<0.000000e+00> : vector<64xf32>
    %7 = vector.multi_reduction <add>, %6, %cst_2 [0] : vector<16x64xf32> to vector<64xf32>
    %8 = vector.shape_cast %7 : vector<64xf32> to vector<1x64xf32>
    %9 = tpu.iota {dimensions = array<i32: 0>} : vector<8x64xi32>
    %c0_3 = arith.constant 0 : index
    %c0_4 = arith.constant 0 : index
    %10 = vector.load %arg2[%c0_3, %c0_4] : memref<8x64xf32, #tpu.memory_space<vmem>>, vector<8x64xf32>
    %c0_i32_5 = arith.constant 0 : i32
    %11 = vector.broadcast %c0_i32_5 : i32 to vector<8x64xi32>
    %12 = arith.cmpi eq, %9, %11 : vector<8x64xi32>
    %cst_6 = arith.constant 0.000000e+00 : f32
    %13 = vector.shape_cast %5 : vector<1x64xf32> to vector<1x64xf32>
    %14 = vector.broadcast %13 : vector<1x64xf32> to vector<8x64xf32>
    %15 = vector.broadcast %cst_6 : f32 to vector<8x64xf32>
    %16 = arith.select %12, %14, %15 : vector<8x64xi1>, vector<8x64xf32>
    %c1_i32 = arith.constant 1 : i32
    %17 = vector.broadcast %c1_i32 : i32 to vector<8x64xi32>
    %18 = arith.cmpi eq, %9, %17 : vector<8x64xi32>
    %cst_7 = arith.constant 0.000000e+00 : f32
    %19 = vector.shape_cast %8 : vector<1x64xf32> to vector<1x64xf32>
    %20 = vector.broadcast %19 : vector<1x64xf32> to vector<8x64xf32>
    %21 = vector.broadcast %cst_7 : f32 to vector<8x64xf32>
    %22 = arith.select %18, %20, %21 : vector<8x64xi1>, vector<8x64xf32>
    %23 = arith.addf %16, %22 : vector<8x64xf32>
    %24 = arith.addf %10, %23 : vector<8x64xf32>
    %c0_8 = arith.constant 0 : index
    %c0_9 = arith.constant 0 : index
    %25 = vector.load %arg2[%c0_8, %c0_9] : memref<8x64xf32, #tpu.memory_space<vmem>>, vector<8x64xf32>
    tpu.vector_store %arg2[%c0_8, %c0_9], %24 {strides = array<i32>} : memref<8x64xf32, #tpu.memory_space<vmem>>, vector<8x64xf32>,
    return
  }
  func.func @transform_0(%arg0: i32) -> (i32, i32) {
    %c0_i32 = arith.constant 0 : i32
    %c0_i32_0 = arith.constant 0 : i32
    return %arg0, %c0_i32 : i32, i32
  }
  func.func @transform_1(%arg0: i32) -> (i32, i32) {
    %c0_i32 = arith.constant 0 : i32
    %c0_i32_0 = arith.constant 0 : i32
    %c0_i32_1 = arith.constant 0 : i32
    return %c0_i32, %c0_i32_0 : i32, i32
  }
}

module attributes {stable_mosaic.version = 11 : i64} {
  func.func @_scale_shift_kernel(%arg0: i32, %arg1: memref<16x64xf32, #tpu.memory_space<vmem>>, %arg2: memref<1x64xf32, #tpu.memory_space<vmem>>, %arg3: memref<1x64xf32, #tpu.memory_space<vmem>>, %arg4: memref<16x64xf32, #tpu.memory_space<vmem>>) attributes {dimension_semantics = [#tpu.dimension_semantics<parallel>], iteration_bounds = array<i64: 1>, scalar_prefetch = 0 : i64, scratch_operands = 0 : i64, tpu.core_type = #tpu.core_type<tc>, window_params = [{transform_indices = @transform_0, window_bounds = array<i64: 16, 64>}, {pipeline_mode = #tpu.pipeline_mode<synchronous>, transform_indices = @transform_1, window_bounds = array<i64: 1, 64>}, {pipeline_mode = #tpu.pipeline_mode<synchronous>, transform_indices = @transform_2, window_bounds = array<i64: 1, 64>}, {transform_indices = @transform_3, window_bounds = array<i64: 16, 64>}]} {
    %c0 = arith.constant 0 : index
    %c0_0 = arith.constant 0 : index
    %0 = vector.load %arg1[%c0, %c0_0] : memref<16x64xf32, #tpu.memory_space<vmem>>, vector<16x64xf32>
    %c0_1 = arith.constant 0 : index
    %c0_2 = arith.constant 0 : index
    %1 = vector.load %arg2[%c0_1, %c0_2] : memref<1x64xf32, #tpu.memory_space<vmem>>, vector<1x64xf32>
    %2 = vector.broadcast %1 : vector<1x64xf32> to vector<16x64xf32>
    %3 = arith.mulf %0, %2 : vector<16x64xf32>
    %c0_3 = arith.constant 0 : index
    %c0_4 = arith.constant 0 : index
    %4 = vector.load %arg3[%c0_3, %c0_4] : memref<1x64xf32, #tpu.memory_space<vmem>>, vector<1x64xf32>
    %5 = vector.broadcast %4 : vector<1x64xf32> to vector<16x64xf32>
    %6 = arith.addf %3, %5 : vector<16x64xf32>
    %c0_5 = arith.constant 0 : index
    %c0_6 = arith.constant 0 : index
    %7 = vector.load %arg4[%c0_5, %c0_6] : memref<16x64xf32, #tpu.memory_space<vmem>>, vector<16x64xf32>
    tpu.vector_store %arg4[%c0_5, %c0_6], %6 {strides = array<i32>} : memref<16x64xf32, #tpu.memory_space<vmem>>, vector<16x64xf32>,
    return
  }
  func.func @transform_0(%arg0: i32) -> (i32, i32) {
    %c0_i32 = arith.constant 0 : i32
    %c0_i32_0 = arith.constant 0 : i32
    return %arg0, %c0_i32 : i32, i32
  }
  func.func @transform_1(%arg0: i32) -> (i32, i32) {
    %c0_i32 = arith.constant 0 : i32
    %c0_i32_0 = arith.constant 0 : i32
    %c0_i32_1 = arith.constant 0 : i32
    return %c0_i32, %c0_i32_0 : i32, i32
  }
  func.func @transform_2(%arg0: i32) -> (i32, i32) {
    %c0_i32 = arith.constant 0 : i32
    %c0_i32_0 = arith.constant 0 : i32
    %c0_i32_1 = arith.constant 0 : i32
    return %c0_i32, %c0_i32_0 : i32, i32
  }
  func.func @transform_3(%arg0: i32) -> (i32, i32) {
    %c0_i32 = arith.constant 0 : i32
    %c0_i32_0 = arith.constant 0 : i32
    return %arg0, %c0_i32 : i32, i32
  }
}

module attributes {stable_mosaic.version = 11 : i64} {
  func.func @_matmul_fused_kernel(%arg0: i32, %arg1: i32, %arg2: i32, %arg3: memref<128x64xbf16, #tpu.memory_space<vmem>>, %arg4: memref<64x8xbf16, #tpu.memory_space<vmem>>, %arg5: memref<1x8xf32, #tpu.memory_space<vmem>>, %arg6: memref<128x8xf32, #tpu.memory_space<vmem>>) attributes {dimension_semantics = [#tpu.dimension_semantics<parallel>, #tpu.dimension_semantics<parallel>, #tpu.dimension_semantics<arbitrary>], iteration_bounds = array<i64: 1, 1, 1>, scalar_prefetch = 0 : i64, scratch_operands = 0 : i64, tpu.core_type = #tpu.core_type<tc>, window_params = [{transform_indices = @transform_0, window_bounds = array<i64: 128, 64>}, {transform_indices = @transform_1, window_bounds = array<i64: 64, 8>}, {transform_indices = @transform_2, window_bounds = array<i64: 1, 8>}, {transform_indices = @transform_3, window_bounds = array<i64: 128, 8>}]} {
    %c0 = arith.constant 0 : index
    %c0_0 = arith.constant 0 : index
    %0 = vector.load %arg3[%c0, %c0_0] : memref<128x64xbf16, #tpu.memory_space<vmem>>, vector<128x64xbf16>
    %cst = arith.constant 0.000000e+00 : bf16
    %1 = vector.broadcast %cst : bf16 to vector<128x64xbf16>
    %2 = arith.maximumf %0, %1 : vector<128x64xbf16>
    %c0_i32 = arith.constant 0 : i32
    %3 = arith.cmpi eq, %arg2, %c0_i32 : i32
    %4 = arith.extui %3 : i1 to i32
    %c0_i32_1 = arith.constant 0 : i32
    %5 = arith.cmpi ne, %4, %c0_i32_1 : i32
    scf.if %5 {
      %cst_11 = arith.constant 0.000000e+00 : f32
      %14 = vector.broadcast %cst_11 : f32 to vector<128x8xf32>
      %c0_12 = arith.constant 0 : index
      %c0_13 = arith.constant 0 : index
      %15 = vector.load %arg6[%c0_12, %c0_13] : memref<128x8xf32, #tpu.memory_space<vmem>>, vector<128x8xf32>
      tpu.vector_store %arg6[%c0_12, %c0_13], %14 {strides = array<i32>} : memref<128x8xf32, #tpu.memory_space<vmem>>, vector<128x8xf32>,
    } else {
    }
    %c0_2 = arith.constant 0 : index
    %c0_3 = arith.constant 0 : index
    %6 = vector.load %arg6[%c0_2, %c0_3] : memref<128x8xf32, #tpu.memory_space<vmem>>, vector<128x8xf32>
    %c0_4 = arith.constant 0 : index
    %c0_5 = arith.constant 0 : index
    %7 = vector.load %arg4[%c0_4, %c0_5] : memref<64x8xbf16, #tpu.memory_space<vmem>>, vector<64x8xbf16>
    %cst_6 = arith.constant dense<0.000000e+00> : vector<128x8xf32>
    %8 = tpu.matmul %2, %7, %cst_6 {dimension_numbers = #tpu.dot_dimension_numbers<[1], [0], [0], [1], [0, 0, 1, 1], [], []>} : vector<128x64xbf16>, vector<64x8xbf16>, vector<128x8xf32> -> vector<128x8xf32>
    %9 = arith.addf %6, %8 : vector<128x8xf32>
    %c0_7 = arith.constant 0 : index
    %c0_8 = arith.constant 0 : index
    %10 = vector.load %arg6[%c0_7, %c0_8] : memref<128x8xf32, #tpu.memory_space<vmem>>, vector<128x8xf32>
    tpu.vector_store %arg6[%c0_7, %c0_8], %9 {strides = array<i32>} : memref<128x8xf32, #tpu.memory_space<vmem>>, vector<128x8xf32>,
    %c0_i32_9 = arith.constant 0 : i32
    %11 = arith.cmpi eq, %arg2, %c0_i32_9 : i32
    %12 = arith.extui %11 : i1 to i32
    %c0_i32_10 = arith.constant 0 : i32
    %13 = arith.cmpi ne, %12, %c0_i32_10 : i32
    scf.if %13 {
      %c0_11 = arith.constant 0 : index
      %c0_12 = arith.constant 0 : index
      %14 = vector.load %arg6[%c0_11, %c0_12] : memref<128x8xf32, #tpu.memory_space<vmem>>, vector<128x8xf32>
      %c0_13 = arith.constant 0 : index
      %c0_14 = arith.constant 0 : index
      %15 = vector.load %arg5[%c0_13, %c0_14] : memref<1x8xf32, #tpu.memory_space<vmem>>, vector<1x8xf32>
      %16 = vector.broadcast %15 : vector<1x8xf32> to vector<128x8xf32>
      %17 = arith.addf %14, %16 : vector<128x8xf32>
      %c0_15 = arith.constant 0 : index
      %c0_16 = arith.constant 0 : index
      %18 = vector.load %arg6[%c0_15, %c0_16] : memref<128x8xf32, #tpu.memory_space<vmem>>, vector<128x8xf32>
      tpu.vector_store %arg6[%c0_15, %c0_16], %17 {strides = array<i32>} : memref<128x8xf32, #tpu.memory_space<vmem>>, vector<128x8xf32>,
    } else {
    }
    return
  }
  func.func @transform_0(%arg0: i32, %arg1: i32, %arg2: i32) -> (i32, i32) {
    %c0_i32 = arith.constant 0 : i32
    return %arg0, %arg2 : i32, i32
  }
  func.func @transform_1(%arg0: i32, %arg1: i32, %arg2: i32) -> (i32, i32) {
    %c0_i32 = arith.constant 0 : i32
    return %arg2, %arg1 : i32, i32
  }
  func.func @transform_2(%arg0: i32, %arg1: i32, %arg2: i32) -> (i32, i32) {
    %c0_i32 = arith.constant 0 : i32
    %c0_i32_0 = arith.constant 0 : i32
    return %c0_i32, %arg1 : i32, i32
  }
  func.func @transform_3(%arg0: i32, %arg1: i32, %arg2: i32) -> (i32, i32) {
    %c0_i32 = arith.constant 0 : i32
    return %arg0, %arg1 : i32, i32
  }
}

module attributes {stable_mosaic.version = 11 : i64} {
  func.func @_matmul_fused_kernel(%arg0: i32, %arg1: i32, %arg2: i32, %arg3: memref<256x8xbf16, #tpu.memory_space<vmem>>, %arg4: memref<8x1xbf16, #tpu.memory_space<vmem>>, %arg5: memref<1x1xf32, #tpu.memory_space<vmem>>, %arg6: memref<256x1xf32, #tpu.memory_space<vmem>>) attributes {dimension_semantics = [#tpu.dimension_semantics<parallel>, #tpu.dimension_semantics<parallel>, #tpu.dimension_semantics<arbitrary>], iteration_bounds = array<i64: 2, 1, 1>, scalar_prefetch = 0 : i64, scratch_operands = 0 : i64, tpu.core_type = #tpu.core_type<tc>, window_params = [{transform_indices = @transform_0, window_bounds = array<i64: 256, 8>}, {transform_indices = @transform_1, window_bounds = array<i64: 8, 1>}, {transform_indices = @transform_2, window_bounds = array<i64: 1, 1>}, {transform_indices = @transform_3, window_bounds = array<i64: 256, 1>}]} {
    %c0 = arith.constant 0 : index
    %c0_0 = arith.constant 0 : index
    %0 = vector.load %arg3[%c0, %c0_0] : memref<256x8xbf16, #tpu.memory_space<vmem>>, vector<256x8xbf16>
    %cst = arith.constant 0.000000e+00 : bf16
    %1 = vector.broadcast %cst : bf16 to vector<256x8xbf16>
    %2 = arith.maximumf %0, %1 : vector<256x8xbf16>
    %c0_i32 = arith.constant 0 : i32
    %3 = arith.cmpi eq, %arg2, %c0_i32 : i32
    %4 = arith.extui %3 : i1 to i32
    %c0_i32_1 = arith.constant 0 : i32
    %5 = arith.cmpi ne, %4, %c0_i32_1 : i32
    scf.if %5 {
      %cst_11 = arith.constant 0.000000e+00 : f32
      %14 = vector.broadcast %cst_11 : f32 to vector<256x1xf32>
      %c0_12 = arith.constant 0 : index
      %c0_13 = arith.constant 0 : index
      %15 = vector.load %arg6[%c0_12, %c0_13] : memref<256x1xf32, #tpu.memory_space<vmem>>, vector<256x1xf32>
      tpu.vector_store %arg6[%c0_12, %c0_13], %14 {strides = array<i32>} : memref<256x1xf32, #tpu.memory_space<vmem>>, vector<256x1xf32>,
    } else {
    }
    %c0_2 = arith.constant 0 : index
    %c0_3 = arith.constant 0 : index
    %6 = vector.load %arg6[%c0_2, %c0_3] : memref<256x1xf32, #tpu.memory_space<vmem>>, vector<256x1xf32>
    %c0_4 = arith.constant 0 : index
    %c0_5 = arith.constant 0 : index
    %7 = vector.load %arg4[%c0_4, %c0_5] : memref<8x1xbf16, #tpu.memory_space<vmem>>, vector<8x1xbf16>
    %cst_6 = arith.constant dense<0.000000e+00> : vector<256x1xf32>
    %8 = tpu.matmul %2, %7, %cst_6 {dimension_numbers = #tpu.dot_dimension_numbers<[1], [0], [0], [1], [0, 0, 1, 1], [], []>} : vector<256x8xbf16>, vector<8x1xbf16>, vector<256x1xf32> -> vector<256x1xf32>
    %9 = arith.addf %6, %8 : vector<256x1xf32>
    %c0_7 = arith.constant 0 : index
    %c0_8 = arith.constant 0 : index
    %10 = vector.load %arg6[%c0_7, %c0_8] : memref<256x1xf32, #tpu.memory_space<vmem>>, vector<256x1xf32>
    tpu.vector_store %arg6[%c0_7, %c0_8], %9 {strides = array<i32>} : memref<256x1xf32, #tpu.memory_space<vmem>>, vector<256x1xf32>,
    %c0_i32_9 = arith.constant 0 : i32
    %11 = arith.cmpi eq, %arg2, %c0_i32_9 : i32
    %12 = arith.extui %11 : i1 to i32
    %c0_i32_10 = arith.constant 0 : i32
    %13 = arith.cmpi ne, %12, %c0_i32_10 : i32
    scf.if %13 {
      %c0_11 = arith.constant 0 : index
      %c0_12 = arith.constant 0 : index
      %14 = vector.load %arg6[%c0_11, %c0_12] : memref<256x1xf32, #tpu.memory_space<vmem>>, vector<256x1xf32>
      %c0_13 = arith.constant 0 : index
      %c0_14 = arith.constant 0 : index
      %15 = vector.load %arg5[%c0_13, %c0_14] : memref<1x1xf32, #tpu.memory_space<vmem>>, vector<1x1xf32>
      %16 = vector.broadcast %15 : vector<1x1xf32> to vector<256x1xf32>
      %17 = arith.addf %14, %16 : vector<256x1xf32>
      %cst_15 = arith.constant 0.000000e+00 : f32
      %18 = vector.broadcast %cst_15 : f32 to vector<256x1xf32>
      %19 = arith.subf %18, %17 : vector<256x1xf32>
      %20 = math.exp %19 : vector<256x1xf32>
      %cst_16 = arith.constant 1.000000e+00 : f32
      %21 = vector.broadcast %cst_16 : f32 to vector<256x1xf32>
      %22 = arith.addf %21, %20 : vector<256x1xf32>
      %cst_17 = arith.constant 1.000000e+00 : f32
      %23 = vector.broadcast %cst_17 : f32 to vector<256x1xf32>
      %24 = arith.divf %23, %22 : vector<256x1xf32>
      %c0_18 = arith.constant 0 : index
      %c0_19 = arith.constant 0 : index
      %25 = vector.load %arg6[%c0_18, %c0_19] : memref<256x1xf32, #tpu.memory_space<vmem>>, vector<256x1xf32>
      tpu.vector_store %arg6[%c0_18, %c0_19], %24 {strides = array<i32>} : memref<256x1xf32, #tpu.memory_space<vmem>>, vector<256x1xf32>,
    } else {
    }
    return
  }
  func.func @transform_0(%arg0: i32, %arg1: i32, %arg2: i32) -> (i32, i32) {
    %c0_i32 = arith.constant 0 : i32
    return %arg0, %arg2 : i32, i32
  }
  func.func @transform_1(%arg0: i32, %arg1: i32, %arg2: i32) -> (i32, i32) {
    %c0_i32 = arith.constant 0 : i32
    return %arg2, %arg1 : i32, i32
  }
  func.func @transform_2(%arg0: i32, %arg1: i32, %arg2: i32) -> (i32, i32) {
    %c0_i32 = arith.constant 0 : i32
    %c0_i32_0 = arith.constant 0 : i32
    return %c0_i32, %arg1 : i32, i32
  }
  func.func @transform_3(%arg0: i32, %arg1: i32, %arg2: i32) -> (i32, i32) {
    %c0_i32 = arith.constant 0 : i32
    return %arg0, %arg1 : i32, i32
  }
}

</mosaic_0001>

<llo_original>
// kernel: _lambda_.24
$region0: #{_lambda_.24}
  #allocation0 [shape = 'u32[]', space=smem, size = 0x4, offset = 0x4, fixed_abs, tag = 'smem constant byte address 0x4 - core index']
  #allocation1 [shape = 'u32[144,128]{1,0:T(1,128)}', space=vmem, size = 0x12000, scoped, tag = 'internal scratch']
  %s0 = inlined_call_operand.vmem [shape: bf16[128,48], index: 0, kind: input, shape index: {}]
  %s1 = inlined_call_operand.vmem [shape: bf16[48,8], index: 1, kind: input, shape index: {}]
  %s2 = inlined_call_operand.vmem [shape: f32[1,8], index: 2, kind: input, shape index: {}]
  %s3 = inlined_call_operand.vmem [shape: f32[128,8], index: 3, kind: output, shape index: {}]
  %s4 = sld [smem:[#allocation0]]
  $region30: #{_lambda_.24} parent=0
    _
  %s6 = ssub.s32 1, %s4
  %s7 = scalar_select 0, %s6, %s4
  // Predicated region
  $region2: #{_lambda_.24} parent=0 // pred_check
    _
  $region3: #{_lambda_.24} parent=0 // pred_check_branch
    %9 = sbr.rel (0) target = $region5
  $region4: #{_lambda_.24} parent=0 // pred_region
    _
  $region5: #{_lambda_.24} parent=0 // pred_fallthru
    _
  // Predicated region
  $region6: #{_lambda_.24} parent=0 // pred_check
    _
  $region7: #{_lambda_.24} parent=0 // pred_check_branch
    %11 = sbr.rel (0) target = $region9
  $region8: #{_lambda_.24} parent=0 // pred_region
    _
  $region9: #{_lambda_.24} parent=0 // pred_fallthru
    _
  // Predicated region
  $region10: #{_lambda_.24} parent=0 // pred_check
    _
  $region11: #{_lambda_.24} parent=0 // pred_check_branch
    %13 = sbr.rel (0) target = $region13
  $region12: #{_lambda_.24} parent=0 // pred_region
    _
  $region13: #{_lambda_.24} parent=0 // pred_fallthru
    _
  %v15 = vld [vmem:[%s0] sm:$0xf]
  %v16 = vld [vmem:[%s0 + $0x4] sm:$0xf]
  %v17 = vld [vmem:[%s0 + $0x8] sm:$0xf]
  %v18 = vld [vmem:[%s0 + $0xc] sm:$0xf]
  %v19 = vld [vmem:[%s0 + $0x10] sm:$0xf]
  %v20 = vld [vmem:[%s0 + $0x14] sm:$0xf]
  %v21 = vld [vmem:[%s0 + $0x18] sm:$0xf]
  %v22 = vld [vmem:[%s0 + $0x1c] sm:$0xf]
  %v23 = vld [vmem:[%s0 + $0x20] sm:$0xf]
  %v24 = vld [vmem:[%s0 + $0x24] sm:$0xf]
  %v25 = vld [vmem:[%s0 + $0x28] sm:$0xf]
  %v26 = vld [vmem:[%s0 + $0x2c] sm:$0xf]
  %v27 = vld [vmem:[%s0 + $0x30] sm:$0xf]
  %v28 = vld [vmem:[%s0 + $0x34] sm:$0xf]
  %v29 = vld [vmem:[%s0 + $0x38] sm:$0xf]
  %v30 = vld [vmem:[%s0 + $0x3c] sm:$0xf]
  %p31 = scmp.eq.s32.totalorder 0, 0
  // Predicated region
  $region14: #{_lambda_.24} parent=0 // pred_check
    %p32 = pneg %p31
  $region15: #{_lambda_.24} parent=0 // pred_check_branch
    %34 = sbr.rel (%p32) target = $region17
  $region16: #{_lambda_.24} parent=0 // pred_region
    %vm35 = vcmask 64512
    %36 = vst.msk [vmem:[%s3] sm:$0xff] %vm35, 0.0
    %37 = vst.msk [vmem:[%s3 + $0x8] sm:$0xff] %vm35, 0.0
    %38 = vst.msk [vmem:[%s3 + $0x10] sm:$0xff] %vm35, 0.0
    %39 = vst.msk [vmem:[%s3 + $0x18] sm:$0xff] %vm35, 0.0
    %40 = vst.msk [vmem:[%s3 + $0x20] sm:$0xff] %vm35, 0.0
    %41 = vst.msk [vmem:[%s3 + $0x28] sm:$0xff] %vm35, 0.0
    %42 = vst.msk [vmem:[%s3 + $0x30] sm:$0xff] %vm35, 0.0
    %43 = vst.msk [vmem:[%s3 + $0x38] sm:$0xff] %vm35, 0.0
    %44 = vst.msk [vmem:[%s3 + $0x40] sm:$0xff] %vm35, 0.0
    %45 = vst.msk [vmem:[%s3 + $0x48] sm:$0xff] %vm35, 0.0
    %46 = vst.msk [vmem:[%s3 + $0x50] sm:$0xff] %vm35, 0.0
    %47 = vst.msk [vmem:[%s3 + $0x58] sm:$0xff] %vm35, 0.0
    %48 = vst.msk [vmem:[%s3 + $0x60] sm:$0xff] %vm35, 0.0
    %49 = vst.msk [vmem:[%s3 + $0x68] sm:$0xff] %vm35, 0.0
    %50 = vst.msk [vmem:[%s3 + $0x70] sm:$0xff] %vm35, 0.0
    %51 = vst.msk [vmem:[%s3 + $0x78] sm:$0xff] %vm35, 0.0
  $region17: #{_lambda_.24} parent=0 // pred_fallthru
    _
  %v52 = vld [vmem:[%s3] sm:$0xff]
  %v53 = vld [vmem:[%s3 + $0x8] sm:$0xff]
  %v54 = vld [vmem:[%s3 + $0x10] sm:$0xff]
  %v55 = vld [vmem:[%s3 + $0x18] sm:$0xff]
  %v56 = vld [vmem:[%s3 + $0x20] sm:$0xff]
  %v57 = vld [vmem:[%s3 + $0x28] sm:$0xff]
  %v58 = vld [vmem:[%s3 + $0x30] sm:$0xff]
  %v59 = vld [vmem:[%s3 + $0x38] sm:$0xff]
  %v60 = vld [vmem:[%s3 + $0x40] sm:$0xff]
  %v61 = vld [vmem:[%s3 + $0x48] sm:$0xff]
  %v62 = vld [vmem:[%s3 + $0x50] sm:$0xff]
  %v63 = vld [vmem:[%s3 + $0x58] sm:$0xff]
  %v64 = vld [vmem:[%s3 + $0x60] sm:$0xff]
  %v65 = vld [vmem:[%s3 + $0x68] sm:$0xff]
  %v66 = vld [vmem:[%s3 + $0x70] sm:$0xff]
  %v67 = vld [vmem:[%s3 + $0x78] sm:$0xff]
  %v68 = vld [vmem:[%s1] sm:$0xf]
  %v69 = vld [vmem:[%s1 + $0x4] sm:$0xf]
  %v70 = vld [vmem:[%s1 + $0x8] sm:$0xf]
  %v71 = vld [vmem:[%s1 + $0xc] sm:$0xf]
  %v72 = vld [vmem:[%s1 + $0x10] sm:$0xf]
  %v73 = vld [vmem:[%s1 + $0x14] sm:$0xf]
  %v90 = vunpack.c.l.b16 %v15
  %v91 = vunpack.c.l.b16 %v16
  %v92 = vunpack.c.l.b16 %v17
  %v93 = vunpack.c.l.b16 %v18
  %v94 = vunpack.c.l.b16 %v19
  %v95 = vunpack.c.l.b16 %v20
  %v96 = vunpack.c.l.b16 %v21
  %v97 = vunpack.c.l.b16 %v22
  %v98 = vunpack.c.l.b16 %v23
  %v99 = vunpack.c.l.b16 %v24
  %v100 = vunpack.c.l.b16 %v25
  %v101 = vunpack.c.l.b16 %v26
  %v102 = vunpack.c.l.b16 %v27
  %v103 = vunpack.c.l.b16 %v28
  %v104 = vunpack.c.l.b16 %v29
  %v105 = vunpack.c.l.b16 %v30
  %v106 = vpack.c.b16 %v91, %v90
  %v107 = vpack.c.b16 %v93, %v92
  %v108 = vpack.c.b16 %v95, %v94
  %v109 = vpack.c.b16 %v97, %v96
  %v110 = vpack.c.b16 %v99, %v98
  %v111 = vpack.c.b16 %v101, %v100
  %v112 = vpack.c.b16 %v103, %v102
  %v113 = vpack.c.b16 %v105, %v104
  %v120 = vunpack.c.l.b16 %v68
  %v121 = vunpack.c.l.b16 %v69
  %v122 = vunpack.c.l.b16 %v70
  %v123 = vunpack.c.l.b16 %v71
  %v124 = vunpack.c.l.b16 %v72
  %v125 = vunpack.c.l.b16 %v73
  %v126 = vpack.c.b16 %v121, %v120
  %v127 = vpack.c.b16 %v123, %v122
  %v128 = vpack.c.b16 %v125, %v124
  %vm132 = vcmask 392192
  %v134 = vsel %vm132, %v106, 0
  %v137 = vsel %vm132, %v107, 0
  %v140 = vsel %vm132, %v108, 0
  %v143 = vsel %vm132, %v109, 0
  %v146 = vsel %vm132, %v110, 0
  %v149 = vsel %vm132, %v111, 0
  %v152 = vsel %vm132, %v112, 0
  %v155 = vsel %vm132, %v113, 0
  %157 = vmatprep.subr.bf16.mxu0 0
  %158 = vmatpush1.bf16.msra.mxu0 %v126
  %159 = vmatprep.subr.bf16.mxu0 0
  %160 = vmatpush1.bf16.msra.mxu0 %v127
  %161 = vmatprep.subr.bf16.mxu0 0
  %162 = vmatpush1.bf16.msra.mxu0 %v128
  %163 = vmatprep.subr.bf16.mxu0 0
  %164 = vmatpush1.bf16.msra.mxu0 0
  %165 = vmatprep.subr.bf16.mxu0 0
  %166 = vmatpush1.bf16.msra.mxu0 0
  %167 = vmatprep.subr.bf16.mxu0 0
  %168 = vmatpush1.bf16.msra.mxu0 0
  %169 = vmatprep.subr.bf16.mxu0 0
  %170 = vmatpush1.bf16.msra.mxu0 0
  %171 = vmatprep.subr.bf16.mxu0 0
  %172 = vmatpush1.bf16.msra.mxu0 0
  %173 = vmatprep.subr.bf16.mxu0 0
  %174 = vmatpush1.bf16.msra.mxu0 0
  %175 = vmatprep.subr.bf16.mxu0 0
  %176 = vmatpush1.bf16.msra.mxu0 0
  %177 = vmatprep.subr.bf16.mxu0 0
  %178 = vmatpush1.bf16.msra.mxu0 0
  %179 = vmatprep.subr.bf16.mxu0 0
  %180 = vmatpush1.bf16.msra.mxu0 0
  %181 = vmatprep.subr.bf16.mxu0 0
  %182 = vmatpush1.bf16.msra.mxu0 0
  %183 = vmatprep.subr.bf16.mxu0 0
  %184 = vmatpush1.bf16.msra.mxu0 0
  %185 = vmatprep.subr.bf16.mxu0 0
  %186 = vmatpush1.bf16.msra.mxu0 0
  %187 = vmatprep.subr.bf16.mxu0 0
  %188 = vmatpush1.bf16.msra.mxu0 0
  %189 = vmatprep.mubr.bf16.mxu0 0
  %190 = vmatmul.mubr.bf16.gmra.mrb[0].mxu0 %v134
  %v191 = vpop.f32.mrb[0].mxu0
  %v192 = vadd.f32 0.0, %v191
  %v193 = vpop.f32.mrb[0].mxu0
  %v194 = vpop.f32.mrb[0].mxu0
  %v195 = vadd.f32 0.0, %v194
  %v196 = vpop.f32.mrb[0].mxu0
  %197 = vmatprep.mubr.bf16.mxu0 0
  %198 = vmatmul.mubr.bf16.gmra.mrb[0].mxu0 %v137
  %v199 = vpop.f32.mrb[0].mxu0
  %v200 = vadd.f32 0.0, %v199
  %v201 = vpop.f32.mrb[0].mxu0
  %v202 = vpop.f32.mrb[0].mxu0
  %v203 = vadd.f32 0.0, %v202
  %v204 = vpop.f32.mrb[0].mxu0
  %205 = vmatprep.mubr.bf16.mxu0 0
  %206 = vmatmul.mubr.bf16.gmra.mrb[0].mxu0 %v140
  %v207 = vpop.f32.mrb[0].mxu0
  %v208 = vadd.f32 0.0, %v207
  %v209 = vpop.f32.mrb[0].mxu0
  %v210 = vpop.f32.mrb[0].mxu0
  %v211 = vadd.f32 0.0, %v210
  %v212 = vpop.f32.mrb[0].mxu0
  %213 = vmatprep.mubr.bf16.mxu0 0
  %214 = vmatmul.mubr.bf16.gmra.mrb[0].mxu0 %v143
  %v215 = vpop.f32.mrb[0].mxu0
  %v216 = vadd.f32 0.0, %v215
  %v217 = vpop.f32.mrb[0].mxu0
  %v218 = vpop.f32.mrb[0].mxu0
  %v219 = vadd.f32 0.0, %v218
  %v220 = vpop.f32.mrb[0].mxu0
  %221 = vmatprep.mubr.bf16.mxu0 0
  %222 = vmatmul.mubr.bf16.gmra.mrb[0].mxu0 %v146
  %v223 = vpop.f32.mrb[0].mxu0
  %v224 = vadd.f32 0.0, %v223
  %v225 = vpop.f32.mrb[0].mxu0
  %v226 = vpop.f32.mrb[0].mxu0
  %v227 = vadd.f32 0.0, %v226
  %v228 = vpop.f32.mrb[0].mxu0
  %229 = vmatprep.mubr.bf16.mxu0 0
  %230 = vmatmul.mubr.bf16.gmra.mrb[0].mxu0 %v149
  %v231 = vpop.f32.mrb[0].mxu0
  %v232 = vadd.f32 0.0, %v231
  %v233 = vpop.f32.mrb[0].mxu0
  %v234 = vpop.f32.mrb[0].mxu0
  %v235 = vadd.f32 0.0, %v234
  %v236 = vpop.f32.mrb[0].mxu0
  %237 = vmatprep.mubr.bf16.mxu0 0
  %238 = vmatmul.mubr.bf16.gmra.mrb[0].mxu0 %v152
  %v239 = vpop.f32.mrb[0].mxu0
  %v240 = vadd.f32 0.0, %v239
  %v241 = vpop.f32.mrb[0].mxu0
  %v242 = vpop.f32.mrb[0].mxu0
  %v243 = vadd.f32 0.0, %v242
  %v244 = vpop.f32.mrb[0].mxu0
  %245 = vmatprep.mubr.bf16.mxu0 0
  %246 = vmatmul.mubr.bf16.gmra.mrb[0].mxu0 %v155
  %v247 = vpop.f32.mrb[0].mxu0
  %v248 = vadd.f32 0.0, %v247
  %v249 = vpop.f32.mrb[0].mxu0
  %v250 = vpop.f32.mrb[0].mxu0
  %v251 = vadd.f32 0.0, %v250
  %v252 = vpop.f32.mrb[0].mxu0
  %253 = vdwg.mxu0
  %v254 = vadd.f32 %v52, %v192
  %v255 = vadd.f32 %v53, %v195
  %v256 = vadd.f32 %v54, %v200
  %v257 = vadd.f32 %v55, %v203
  %v258 = vadd.f32 %v56, %v208
  %v259 = vadd.f32 %v57, %v211
  %v260 = vadd.f32 %v58, %v216
  %v261 = vadd.f32 %v59, %v219
  %v262 = vadd.f32 %v60, %v224
  %v263 = vadd.f32 %v61, %v227
  %v264 = vadd.f32 %v62, %v232
  %v265 = vadd.f32 %v63, %v235
  %v266 = vadd.f32 %v64, %v240
  %v267 = vadd.f32 %v65, %v243
  %v268 = vadd.f32 %v66, %v248
  %v269 = vadd.f32 %v67, %v251
  %vm270 = vcmask 64512
  %271 = vst.msk [vmem:[%s3] sm:$0xff] %vm270, %v254
  %272 = vst.msk [vmem:[%s3 + $0x8] sm:$0xff] %vm270, %v255
  %273 = vst.msk [vmem:[%s3 + $0x10] sm:$0xff] %vm270, %v256
  %274 = vst.msk [vmem:[%s3 + $0x18] sm:$0xff] %vm270, %v257
  %275 = vst.msk [vmem:[%s3 + $0x20] sm:$0xff] %vm270, %v258
  %276 = vst.msk [vmem:[%s3 + $0x28] sm:$0xff] %vm270, %v259
  %277 = vst.msk [vmem:[%s3 + $0x30] sm:$0xff] %vm270, %v260
  %278 = vst.msk [vmem:[%s3 + $0x38] sm:$0xff] %vm270, %v261
  %279 = vst.msk [vmem:[%s3 + $0x40] sm:$0xff] %vm270, %v262
  %280 = vst.msk [vmem:[%s3 + $0x48] sm:$0xff] %vm270, %v263
  %281 = vst.msk [vmem:[%s3 + $0x50] sm:$0xff] %vm270, %v264
  %282 = vst.msk [vmem:[%s3 + $0x58] sm:$0xff] %vm270, %v265
  %283 = vst.msk [vmem:[%s3 + $0x60] sm:$0xff] %vm270, %v266
  %284 = vst.msk [vmem:[%s3 + $0x68] sm:$0xff] %vm270, %v267
  %285 = vst.msk [vmem:[%s3 + $0x70] sm:$0xff] %vm270, %v268
  %286 = vst.msk [vmem:[%s3 + $0x78] sm:$0xff] %vm270, %v269
  // Predicated region
  $region18: #{_lambda_.24} parent=0 // pred_check
    %p287 = pneg %p31
  $region19: #{_lambda_.24} parent=0 // pred_check_branch
    %289 = sbr.rel (%p287) target = $region21
  $region20: #{_lambda_.24} parent=0 // pred_region
    %v290 = vld [vmem:[%s3] sm:$0xff]
    %v291 = vld [vmem:[%s3 + $0x8] sm:$0xff]
    %v292 = vld [vmem:[%s3 + $0x10] sm:$0xff]
    %v293 = vld [vmem:[%s3 + $0x18] sm:$0xff]
    %v294 = vld [vmem:[%s3 + $0x20] sm:$0xff]
    %v295 = vld [vmem:[%s3 + $0x28] sm:$0xff]
    %v296 = vld [vmem:[%s3 + $0x30] sm:$0xff]
    %v297 = vld [vmem:[%s3 + $0x38] sm:$0xff]
    %v298 = vld [vmem:[%s3 + $0x40] sm:$0xff]
    %v299 = vld [vmem:[%s3 + $0x48] sm:$0xff]
    %v300 = vld [vmem:[%s3 + $0x50] sm:$0xff]
    %v301 = vld [vmem:[%s3 + $0x58] sm:$0xff]
    %v302 = vld [vmem:[%s3 + $0x60] sm:$0xff]
    %v303 = vld [vmem:[%s3 + $0x68] sm:$0xff]
    %v304 = vld [vmem:[%s3 + $0x70] sm:$0xff]
    %v305 = vld [vmem:[%s3 + $0x78] sm:$0xff]
    %v306 = vld [vmem:[%s2] sm:$0x1]
    %v308 = vlaneseq
    %v309 = vshrl.u32 %v308, 7
    %v310 = vsub.s32 0, %v309
    %v311 = vrot.slane %v306, %v310
    %v313 = vadd.f32 %v290, %v311
    %v314 = vadd.f32 %v291, %v311
    %v315 = vadd.f32 %v292, %v311
    %v316 = vadd.f32 %v293, %v311
    %v317 = vadd.f32 %v294, %v311
    %v318 = vadd.f32 %v295, %v311
    %v319 = vadd.f32 %v296, %v311
    %v320 = vadd.f32 %v297, %v311
    %v321 = vadd.f32 %v298, %v311
    %v322 = vadd.f32 %v299, %v311
    %v323 = vadd.f32 %v300, %v311
    %v324 = vadd.f32 %v301, %v311
    %v325 = vadd.f32 %v302, %v311
    %v326 = vadd.f32 %v303, %v311
    %v327 = vadd.f32 %v304, %v311
    %v328 = vadd.f32 %v305, %v311
    %329 = vst.msk [vmem:[%s3] sm:$0xff] %vm270, %v313
    %330 = vst.msk [vmem:[%s3 + $0x8] sm:$0xff] %vm270, %v314
    %331 = vst.msk [vmem:[%s3 + $0x10] sm:$0xff] %vm270, %v315
    %332 = vst.msk [vmem:[%s3 + $0x18] sm:$0xff] %vm270, %v316
    %333 = vst.msk [vmem:[%s3 + $0x20] sm:$0xff] %vm270, %v317
    %334 = vst.msk [vmem:[%s3 + $0x28] sm:$0xff] %vm270, %v318
    %335 = vst.msk [vmem:[%s3 + $0x30] sm:$0xff] %vm270, %v319
    %336 = vst.msk [vmem:[%s3 + $0x38] sm:$0xff] %vm270, %v320
    %337 = vst.msk [vmem:[%s3 + $0x40] sm:$0xff] %vm270, %v321
    %338 = vst.msk [vmem:[%s3 + $0x48] sm:$0xff] %vm270, %v322
    %339 = vst.msk [vmem:[%s3 + $0x50] sm:$0xff] %vm270, %v323
    %340 = vst.msk [vmem:[%s3 + $0x58] sm:$0xff] %vm270, %v324
    %341 = vst.msk [vmem:[%s3 + $0x60] sm:$0xff] %vm270, %v325
    %342 = vst.msk [vmem:[%s3 + $0x68] sm:$0xff] %vm270, %v326
    %343 = vst.msk [vmem:[%s3 + $0x70] sm:$0xff] %vm270, %v327
    %344 = vst.msk [vmem:[%s3 + $0x78] sm:$0xff] %vm270, %v328
  $region21: #{_lambda_.24} parent=0 // pred_fallthru
    _
  // Predicated region
  $region22: #{_lambda_.24} parent=0 // pred_check
    _
  $region23: #{_lambda_.24} parent=0 // pred_check_branch
    %346 = sbr.rel (0) target = $region25
  $region24: #{_lambda_.24} parent=0 // pred_region
    _
  $region25: #{_lambda_.24} parent=0 // pred_fallthru
    _
  // Predicated region
  $region26: #{_lambda_.24} parent=0 // pred_check
    _
  $region27: #{_lambda_.24} parent=0 // pred_check_branch
    %348 = sbr.rel (0) target = $region29
  $region28: #{_lambda_.24} parent=0 // pred_region
    _
  $region29: #{_lambda_.24} parent=0 // pred_fallthru
    _

// kernel: squeeze.8
$region0: #{squeeze.8}
  %s0 = inlined_call_operand.vmem [shape: f32[64], index: 0, kind: input, shape index: {}]
  %s1 = inlined_call_operand.vmem [shape: f32[4,16], index: 1, kind: output, shape index: {}]
  $region1: #{squeeze.8} parent=0
    #allocation0 [shape = 'u8[4096]{0}', space=vmem, size = 0x1000, scoped, tag = 'scoped mem for output reshape']
    #allocation1 [shape = 'u8[4096]{0}', space=vmem, size = 0x1000, scoped, tag = 'scoped mem for input reshape']
    %s3 = sshllo.u32 0, 1
    %v4 = vld [vmem:[%s0] sm:%s3]
    %5 = vst [vmem:[#allocation1] sm:%s3] %v4
    %v6 = vld [vmem:[#allocation1] sm:$0x1]
    %vm7 = vcmask 130048
    %8 = vst.msk [vmem:[#allocation0] sm:$0x1] %vm7, %v6
    %v9 = vld [vmem:[#allocation1] sm:$0x1]
    %10 = vrot.lane.b32.xlu0 %v9, 112
    %v11 = vpop.permute.xlu0 %10
    %vm12 = vcmask 130048
    %s13 = scalar_lea.vmem [#allocation0], 1
    %14 = vst.msk [vmem:[%s13] sm:$0x1] %vm12, %v11
    %v15 = vld [vmem:[#allocation1] sm:$0x1]
    %16 = vrot.lane.b32.xlu0 %v15, 96
    %v17 = vpop.permute.xlu0 %16
    %vm18 = vcmask 130048
    %s19 = scalar_lea.vmem [#allocation0], 2
    %20 = vst.msk [vmem:[%s19] sm:$0x1] %vm18, %v17
    %v21 = vld [vmem:[#allocation1] sm:$0x1]
    %22 = vrot.lane.b32.xlu0 %v21, 80
    %v23 = vpop.permute.xlu0 %22
    %vm24 = vcmask 130048
    %s25 = scalar_lea.vmem [#allocation0], 3
    %26 = vst.msk [vmem:[%s25] sm:$0x1] %vm24, %v23
    %s28 = sshllo.u32 0, 4
    %v30 = vld [vmem:[#allocation0] sm:%s28]
    %s31 = sshllo.u32 0, 4
    %32 = vst [vmem:[%s1] sm:%s31] %v30

// kernel: tile.48
$region0: #{tile.48}
  #allocation0 [shape = 's32[1]{0}', space=sflag, size = 0x4, scoped, tag = 'scoped memory for tile.48']
  %s0 = inlined_call_operand.vmem [shape: f32[16], index: 0, kind: input, shape index: {}]
  %s1 = inlined_call_operand.vmem [shape: f32[4,16], index: 1, kind: output, shape index: {}]
  // Predicated region
  $region2: #{tile.48} parent=0 // pred_check
    _
  $region3: #{tile.48} parent=0 // pred_check_branch
    %3 = sbr.rel (0) target = $region5
  $region4: #{tile.48} parent=0 // pred_region
    _
  $region5: #{tile.48} parent=0 // pred_fallthru
    _
  %v4 = vld [vmem:[%s0] ss:$0 sm:$0xff]
  %5 = vst [vmem:[%s1] sm:$0xf] %v4

// kernel: tile.49
$region0: #{tile.49}
  %s0 = inlined_call_operand.vmem [shape: f32[4,16], index: 0, kind: input, shape index: {}]
  %s1 = inlined_call_operand.vmem [shape: f32[1,64], index: 1, kind: output, shape index: {}]
  $region1: #{tile.49} parent=0
    #allocation0 [shape = 'u8[4096]{0}', space=vmem, size = 0x1000, scoped, tag = 'scoped mem for output reshape']
    #allocation1 [shape = 'u8[4096]{0}', space=vmem, size = 0x1000, scoped, tag = 'scoped mem for input reshape']
    %s3 = sshllo.u32 0, 4
    %v4 = vld [vmem:[%s0] sm:%s3]
    %5 = vst [vmem:[#allocation1] sm:%s3] %v4
    %v6 = vld [vmem:[#allocation1] sm:$0x1]
    %vm7 = vcmask 130048
    %8 = vst.msk [vmem:[#allocation0] sm:$0x1] %vm7, %v6
    %s9 = scalar_lea.vmem [#allocation1], 3
    %v10 = vld [vmem:[%s9] sm:$0x1]
    %11 = vrot.lane.b32.xlu0 %v10, 48
    %v12 = vpop.permute.xlu0 %11
    %vm13 = vcmask 523648
    %14 = vst.msk [vmem:[#allocation0] sm:$0x1] %vm13, %v12
    %s15 = scalar_lea.vmem [#allocation1], 2
    %v16 = vld [vmem:[%s15] sm:$0x1]
    %17 = vrot.lane.b32.xlu0 %v16, 32
    %v18 = vpop.permute.xlu0 %17
    %vm19 = vcmask 392448
    %20 = vst.msk [vmem:[#allocation0] sm:$0x1] %vm19, %v18
    %s21 = scalar_lea.vmem [#allocation1], 1
    %v22 = vld [vmem:[%s21] sm:$0x1]
    %23 = vrot.lane.b32.xlu0 %v22, 16
    %v24 = vpop.permute.xlu0 %23
    %vm25 = vcmask 261248
    %26 = vst.msk [vmem:[#allocation0] sm:$0x1] %vm25, %v24
    %s28 = sshllo.u32 0, 1
    %v30 = vld [vmem:[#allocation0] sm:%s28]
    %s31 = sshllo.u32 0, 1
    %32 = vst [vmem:[%s1] sm:%s31] %v30

// kernel: _lambda_.25
$region0: #{_lambda_.25}
  #allocation0 [shape = 'u32[]', space=smem, size = 0x4, offset = 0x4, fixed_abs, tag = 'smem constant byte address 0x4 - core index']
  #allocation1 [shape = 'u32[144,128]{1,0:T(1,128)}', space=vmem, size = 0x12000, scoped, tag = 'internal scratch']
  %s0 = inlined_call_operand.vmem [shape: bf16[32,128], index: 0, kind: input, shape index: {}]
  %s1 = inlined_call_operand.vmem [shape: bf16[128,16], index: 1, kind: input, shape index: {}]
  %s2 = inlined_call_operand.vmem [shape: f32[32,16], index: 2, kind: output, shape index: {}]
  %s3 = sld [smem:[#allocation0]]
  $region22: #{_lambda_.25} parent=0
    _
  %s5 = ssub.s32 1, %s3
  %s6 = scalar_select 0, %s5, %s3
  // Predicated region
  $region2: #{_lambda_.25} parent=0 // pred_check
    _
  $region3: #{_lambda_.25} parent=0 // pred_check_branch
    %8 = sbr.rel (0) target = $region5
  $region4: #{_lambda_.25} parent=0 // pred_region
    _
  $region5: #{_lambda_.25} parent=0 // pred_fallthru
    _
  // Predicated region
  $region6: #{_lambda_.25} parent=0 // pred_check
    _
  $region7: #{_lambda_.25} parent=0 // pred_check_branch
    %10 = sbr.rel (0) target = $region9
  $region8: #{_lambda_.25} parent=0 // pred_region
    _
  $region9: #{_lambda_.25} parent=0 // pred_fallthru
    _
  %v13 = vld [vmem:[%s0] sm:$0xf]
  %v14 = vld [vmem:[%s0 + $0x4] sm:$0xf]
  %v15 = vld [vmem:[%s0 + $0x8] sm:$0xf]
  %v16 = vld [vmem:[%s0 + $0xc] sm:$0xf]
  %vm17 = vcmp.gt.bf16.partialorder %v13, 0
  %vm18 = vcmp.gt.bf16.partialorder %v14, 0
  %vm19 = vcmp.gt.bf16.partialorder %v15, 0
  %vm20 = vcmp.gt.bf16.partialorder %v16, 0
  %v21 = vmul.bf16 %v13, 1045249613
  %v22 = vmul.bf16 %v14, 1045249613
  %v23 = vmul.bf16 %v15, 1045249613
  %v24 = vmul.bf16 %v16, 1045249613
  %v25 = vsel %vm17, %v13, %v21
  %v26 = vsel %vm18, %v14, %v22
  %v27 = vsel %vm19, %v15, %v23
  %v28 = vsel %vm20, %v16, %v24
  %p29 = scmp.eq.s32.totalorder 0, 0
  // Predicated region
  $region10: #{_lambda_.25} parent=0 // pred_check
    %p30 = pneg %p29
  $region11: #{_lambda_.25} parent=0 // pred_check_branch
    %32 = sbr.rel (%p30) target = $region13
  $region12: #{_lambda_.25} parent=0 // pred_region
    %vm33 = vcmask 130048
    %34 = vst.msk [vmem:[%s2] sm:$0xff] %vm33, 0.0
    %35 = vst.msk [vmem:[%s2 + $0x8] sm:$0xff] %vm33, 0.0
    %36 = vst.msk [vmem:[%s2 + $0x10] sm:$0xff] %vm33, 0.0
    %37 = vst.msk [vmem:[%s2 + $0x18] sm:$0xff] %vm33, 0.0
  $region13: #{_lambda_.25} parent=0 // pred_fallthru
    _
  %v38 = vld [vmem:[%s2] sm:$0xff]
  %v39 = vld [vmem:[%s2 + $0x8] sm:$0xff]
  %v40 = vld [vmem:[%s2 + $0x10] sm:$0xff]
  %v41 = vld [vmem:[%s2 + $0x18] sm:$0xff]
  %v42 = vld [vmem:[%s1] sm:$0xf]
  %v43 = vld [vmem:[%s1 + $0x4] sm:$0xf]
  %v44 = vld [vmem:[%s1 + $0x8] sm:$0xf]
  %v45 = vld [vmem:[%s1 + $0xc] sm:$0xf]
  %v46 = vld [vmem:[%s1 + $0x10] sm:$0xf]
  %v47 = vld [vmem:[%s1 + $0x14] sm:$0xf]
  %v48 = vld [vmem:[%s1 + $0x18] sm:$0xf]
  %v49 = vld [vmem:[%s1 + $0x1c] sm:$0xf]
  %v50 = vld [vmem:[%s1 + $0x20] sm:$0xf]
  %v51 = vld [vmem:[%s1 + $0x24] sm:$0xf]
  %v52 = vld [vmem:[%s1 + $0x28] sm:$0xf]
  %v53 = vld [vmem:[%s1 + $0x2c] sm:$0xf]
  %v54 = vld [vmem:[%s1 + $0x30] sm:$0xf]
  %v55 = vld [vmem:[%s1 + $0x34] sm:$0xf]
  %v56 = vld [vmem:[%s1 + $0x38] sm:$0xf]
  %v57 = vld [vmem:[%s1 + $0x3c] sm:$0xf]
  %v62 = vunpack.c.l.b16 %v25
  %v63 = vunpack.c.l.b16 %v26
  %v64 = vunpack.c.l.b16 %v27
  %v65 = vunpack.c.l.b16 %v28
  %v66 = vpack.c.b16 %v63, %v62
  %v67 = vpack.c.b16 %v65, %v64
  %v86 = vunpack.c.l.b16 %v42
  %v87 = vunpack.c.l.b16 %v43
  %v88 = vunpack.c.l.b16 %v44
  %v89 = vunpack.c.l.b16 %v45
  %v90 = vunpack.c.l.b16 %v46
  %v91 = vunpack.c.l.b16 %v47
  %v92 = vunpack.c.l.b16 %v48
  %v93 = vunpack.c.l.b16 %v49
  %v94 = vunpack.c.l.b16 %v50
  %v95 = vunpack.c.l.b16 %v51
  %v96 = vunpack.c.l.b16 %v52
  %v97 = vunpack.c.l.b16 %v53
  %v98 = vunpack.c.l.b16 %v54
  %v99 = vunpack.c.l.b16 %v55
  %v100 = vunpack.c.l.b16 %v56
  %v101 = vunpack.c.l.b16 %v57
  %v102 = vpack.c.b16 %v87, %v86
  %v103 = vpack.c.b16 %v89, %v88
  %v104 = vpack.c.b16 %v91, %v90
  %v105 = vpack.c.b16 %v93, %v92
  %v106 = vpack.c.b16 %v95, %v94
  %v107 = vpack.c.b16 %v97, %v96
  %v108 = vpack.c.b16 %v99, %v98
  %v109 = vpack.c.b16 %v101, %v100
  %118 = vmatprep.subr.bf16.mxu0 0
  %119 = vmatpush1.bf16.msra.mxu0 %v102
  %120 = vmatprep.subr.bf16.mxu0 0
  %121 = vmatpush1.bf16.msra.mxu0 %v103
  %122 = vmatprep.subr.bf16.mxu0 0
  %123 = vmatpush1.bf16.msra.mxu0 %v104
  %124 = vmatprep.subr.bf16.mxu0 0
  %125 = vmatpush1.bf16.msra.mxu0 %v105
  %126 = vmatprep.subr.bf16.mxu0 0
  %127 = vmatpush1.bf16.msra.mxu0 %v106
  %128 = vmatprep.subr.bf16.mxu0 0
  %129 = vmatpush1.bf16.msra.mxu0 %v107
  %130 = vmatprep.subr.bf16.mxu0 0
  %131 = vmatpush1.bf16.msra.mxu0 %v108
  %132 = vmatprep.subr.bf16.mxu0 0
  %133 = vmatpush1.bf16.msra.mxu0 %v109
  %134 = vmatprep.subr.bf16.mxu0 0
  %135 = vmatpush1.bf16.msra.mxu0 0
  %136 = vmatprep.subr.bf16.mxu0 0
  %137 = vmatpush1.bf16.msra.mxu0 0
  %138 = vmatprep.subr.bf16.mxu0 0
  %139 = vmatpush1.bf16.msra.mxu0 0
  %140 = vmatprep.subr.bf16.mxu0 0
  %141 = vmatpush1.bf16.msra.mxu0 0
  %142 = vmatprep.subr.bf16.mxu0 0
  %143 = vmatpush1.bf16.msra.mxu0 0
  %144 = vmatprep.subr.bf16.mxu0 0
  %145 = vmatpush1.bf16.msra.mxu0 0
  %146 = vmatprep.subr.bf16.mxu0 0
  %147 = vmatpush1.bf16.msra.mxu0 0
  %148 = vmatprep.subr.bf16.mxu0 0
  %149 = vmatpush1.bf16.msra.mxu0 0
  %150 = vmatprep.mubr.bf16.mxu0 0
  %151 = vmatmul.mubr.bf16.gmra.mrb[0].mxu0 %v66
  %v152 = vpop.f32.mrb[0].mxu0
  %v153 = vadd.f32 0.0, %v152
  %v154 = vpop.f32.mrb[0].mxu0
  %v155 = vpop.f32.mrb[0].mxu0
  %v156 = vadd.f32 0.0, %v155
  %v157 = vpop.f32.mrb[0].mxu0
  %158 = vmatprep.mubr.bf16.mxu0 0
  %159 = vmatmul.mubr.bf16.gmra.mrb[0].mxu0 %v67
  %v160 = vpop.f32.mrb[0].mxu0
  %v161 = vadd.f32 0.0, %v160
  %v162 = vpop.f32.mrb[0].mxu0
  %v163 = vpop.f32.mrb[0].mxu0
  %v164 = vadd.f32 0.0, %v163
  %v165 = vpop.f32.mrb[0].mxu0
  %166 = vdwg.mxu0
  %v167 = vadd.f32 %v38, %v153
  %v168 = vadd.f32 %v39, %v156
  %v169 = vadd.f32 %v40, %v161
  %v170 = vadd.f32 %v41, %v164
  %vm171 = vcmask 130048
  %172 = vst.msk [vmem:[%s2] sm:$0xff] %vm171, %v167
  %173 = vst.msk [vmem:[%s2 + $0x8] sm:$0xff] %vm171, %v168
  %174 = vst.msk [vmem:[%s2 + $0x10] sm:$0xff] %vm171, %v169
  %175 = vst.msk [vmem:[%s2 + $0x18] sm:$0xff] %vm171, %v170
  // Predicated region
  $region14: #{_lambda_.25} parent=0 // pred_check
    _
  $region15: #{_lambda_.25} parent=0 // pred_check_branch
    %177 = sbr.rel (0) target = $region17
  $region16: #{_lambda_.25} parent=0 // pred_region
    _
  $region17: #{_lambda_.25} parent=0 // pred_fallthru
    _
  // Predicated region
  $region18: #{_lambda_.25} parent=0 // pred_check
    _
  $region19: #{_lambda_.25} parent=0 // pred_check_branch
    %179 = sbr.rel (0) target = $region21
  $region20: #{_lambda_.25} parent=0 // pred_region
    _
  $region21: #{_lambda_.25} parent=0 // pred_fallthru
    _

// kernel: _lambda_.26
$region0: #{_lambda_.26}
  #allocation0 [shape = 'u32[]', space=smem, size = 0x4, offset = 0x4, fixed_abs, tag = 'smem constant byte address 0x4 - core index']
  #allocation1 [shape = 'u32[144,128]{1,0:T(1,128)}', space=vmem, size = 0x12000, scoped, tag = 'internal scratch']
  %s0 = inlined_call_operand.vmem [shape: f32[8,64], index: 0, kind: input, shape index: {}]
  %s1 = inlined_call_operand.vmem [shape: f32[8,64], index: 1, kind: output, shape index: {}]
  %s2 = sld [smem:[#allocation0]]
  $region18: #{_lambda_.26} parent=0
    _
  %s4 = ssub.s32 1, %s2
  %s5 = scalar_select 0, %s4, %s2
  // Predicated region
  $region2: #{_lambda_.26} parent=0 // pred_check
    _
  $region3: #{_lambda_.26} parent=0 // pred_check_branch
    %7 = sbr.rel (0) target = $region5
  $region4: #{_lambda_.26} parent=0 // pred_region
    _
  $region5: #{_lambda_.26} parent=0 // pred_fallthru
    _
  %p8 = scmp.eq.s32.totalorder 0, 0
  // Predicated region
  $region6: #{_lambda_.26} parent=0 // pred_check
    %p9 = pneg %p8
  $region7: #{_lambda_.26} parent=0 // pred_check_branch
    %11 = sbr.rel (%p9) target = $region9
  $region8: #{_lambda_.26} parent=0 // pred_region
    %vm12 = vcmask 523264
    %13 = vst.msk [vmem:[%s1] sm:$0xff] %vm12, 0.0
  $region9: #{_lambda_.26} parent=0 // pred_fallthru
    _
  %v14 = vld [vmem:[%s0] sm:$0xff]
  %vm15 = vcmask 523264
  %v16 = vsel %vm15, %v14, 0.0
  %v17 = vrot.slane %v16, 4
  %v18 = vadd.f32 %v16, %v17
  %v19 = vrot.slane %v18, 2
  %v20 = vadd.f32 %v18, %v19
  %v21 = vrot.slane %v20, 1
  %v22 = vadd.f32 %v20, %v21
  %v23 = vmul.f32 %v14, %v14
  %v24 = vsel %vm15, %v23, 0.0
  %v25 = vrot.slane %v24, 4
  %v26 = vadd.f32 %v24, %v25
  %v27 = vrot.slane %v26, 2
  %v28 = vadd.f32 %v26, %v27
  %v29 = vrot.slane %v28, 1
  %v30 = vadd.f32 %v28, %v29
  %v31 = vlaneseq
  %v32 = vshrl.u32 %v31, 7
  %v33 = vld [vmem:[%s1] sm:$0xff]
  %vm34 = vcmp.eq.s32.totalorder %v32, 0
  %v35 = vsel %vm34, %v22, 0.0
  %vm36 = vcmp.eq.s32.totalorder %v32, 1
  %v37 = vsel %vm36, %v30, 0.0
  %v38 = vadd.f32 %v35, %v37
  %v39 = vadd.f32 %v33, %v38
  %40 = vst.msk [vmem:[%s1] sm:$0xff] %vm15, %v39
  // Predicated region
  $region10: #{_lambda_.26} parent=0 // pred_check
    _
  $region11: #{_lambda_.26} parent=0 // pred_check_branch
    %42 = sbr.rel (0) target = $region13
  $region12: #{_lambda_.26} parent=0 // pred_region
    _
  $region13: #{_lambda_.26} parent=0 // pred_fallthru
    _
  // Predicated region
  $region14: #{_lambda_.26} parent=0 // pred_check
    _
  $region15: #{_lambda_.26} parent=0 // pred_check_branch
    %44 = sbr.rel (0) target = $region17
  $region16: #{_lambda_.26} parent=0 // pred_region
    _
  $region17: #{_lambda_.26} parent=0 // pred_fallthru
    _

// kernel: _lambda_.27
$region0: #{_lambda_.27}
  #allocation0 [shape = 'u32[]', space=smem, size = 0x4, offset = 0x4, fixed_abs, tag = 'smem constant byte address 0x4 - core index']
  #allocation1 [shape = 'u32[144,128]{1,0:T(1,128)}', space=vmem, size = 0x12000, scoped, tag = 'internal scratch']
  %s0 = inlined_call_operand.vmem [shape: f32[8,64], index: 0, kind: input, shape index: {}]
  %s1 = inlined_call_operand.vmem [shape: f32[1,64], index: 1, kind: input, shape index: {}]
  %s2 = inlined_call_operand.vmem [shape: f32[1,64], index: 2, kind: input, shape index: {}]
  %s3 = inlined_call_operand.vmem [shape: f32[8,64], index: 3, kind: output, shape index: {}]
  %s4 = sld [smem:[#allocation0]]
  $region22: #{_lambda_.27} parent=0
    _
  %s6 = ssub.s32 1, %s4
  %s7 = scalar_select 0, %s6, %s4
  // Predicated region
  $region2: #{_lambda_.27} parent=0 // pred_check
    _
  $region3: #{_lambda_.27} parent=0 // pred_check_branch
    %9 = sbr.rel (0) target = $region5
  $region4: #{_lambda_.27} parent=0 // pred_region
    _
  $region5: #{_lambda_.27} parent=0 // pred_fallthru
    _
  // Predicated region
  $region6: #{_lambda_.27} parent=0 // pred_check
    _
  $region7: #{_lambda_.27} parent=0 // pred_check_branch
    %11 = sbr.rel (0) target = $region9
  $region8: #{_lambda_.27} parent=0 // pred_region
    _
  $region9: #{_lambda_.27} parent=0 // pred_fallthru
    _
  // Predicated region
  $region10: #{_lambda_.27} parent=0 // pred_check
    _
  $region11: #{_lambda_.27} parent=0 // pred_check_branch
    %13 = sbr.rel (0) target = $region13
  $region12: #{_lambda_.27} parent=0 // pred_region
    _
  $region13: #{_lambda_.27} parent=0 // pred_fallthru
    _
  %v14 = vld [vmem:[%s0] sm:$0xff]
  %v15 = vld [vmem:[%s1] sm:$0x1]
  %v17 = vlaneseq
  %v18 = vshrl.u32 %v17, 7
  %v19 = vsub.s32 0, %v18
  %v20 = vrot.slane %v15, %v19
  %v22 = vmul.f32 %v14, %v20
  %v23 = vld [vmem:[%s2] sm:$0x1]
  %v25 = vlaneseq
  %v26 = vshrl.u32 %v25, 7
  %v27 = vsub.s32 0, %v26
  %v28 = vrot.slane %v23, %v27
  %v30 = vadd.f32 %v22, %v28
  %vm31 = vcmask 523264
  %32 = vst.msk [vmem:[%s3] sm:$0xff] %vm31, %v30
  // Predicated region
  $region14: #{_lambda_.27} parent=0 // pred_check
    _
  $region15: #{_lambda_.27} parent=0 // pred_check_branch
    %34 = sbr.rel (0) target = $region17
  $region16: #{_lambda_.27} parent=0 // pred_region
    _
  $region17: #{_lambda_.27} parent=0 // pred_fallthru
    _
  // Predicated region
  $region18: #{_lambda_.27} parent=0 // pred_check
    _
  $region19: #{_lambda_.27} parent=0 // pred_check_branch
    %36 = sbr.rel (0) target = $region21
  $region20: #{_lambda_.27} parent=0 // pred_region
    _
  $region21: #{_lambda_.27} parent=0 // pred_fallthru
    _

// kernel: squeeze.10
$region0: #{squeeze.10}
  %s0 = inlined_call_operand.vmem [shape: f32[64], index: 0, kind: input, shape index: {}]
  %s1 = inlined_call_operand.vmem [shape: f32[2,32], index: 1, kind: output, shape index: {}]
  $region1: #{squeeze.10} parent=0
    #allocation0 [shape = 'u8[4096]{0}', space=vmem, size = 0x1000, scoped, tag = 'scoped mem for output reshape']
    #allocation1 [shape = 'u8[4096]{0}', space=vmem, size = 0x1000, scoped, tag = 'scoped mem for input reshape']
    %s3 = sshllo.u32 0, 1
    %v4 = vld [vmem:[%s0] sm:%s3]
    %5 = vst [vmem:[#allocation1] sm:%s3] %v4
    %v6 = vld [vmem:[#allocation1] sm:$0x1]
    %vm7 = vcmask 261120
    %8 = vst.msk [vmem:[#allocation0] sm:$0x1] %vm7, %v6
    %v9 = vld [vmem:[#allocation1] sm:$0x1]
    %10 = vrot.lane.b32.xlu0 %v9, 96
    %v11 = vpop.permute.xlu0 %10
    %vm12 = vcmask 261120
    %s13 = scalar_lea.vmem [#allocation0], 1
    %14 = vst.msk [vmem:[%s13] sm:$0x1] %vm12, %v11
    %s16 = sshllo.u32 0, 2
    %v18 = vld [vmem:[#allocation0] sm:%s16]
    %s19 = sshllo.u32 0, 2
    %20 = vst [vmem:[%s1] sm:%s19] %v18

// kernel: tile.58
$region0: #{tile.58}
  #allocation0 [shape = 's32[1]{0}', space=sflag, size = 0x4, scoped, tag = 'scoped memory for tile.58']
  %s0 = inlined_call_operand.vmem [shape: f32[32], index: 0, kind: input, shape index: {}]
  %s1 = inlined_call_operand.vmem [shape: f32[2,32], index: 1, kind: output, shape index: {}]
  // Predicated region
  $region2: #{tile.58} parent=0 // pred_check
    _
  $region3: #{tile.58} parent=0 // pred_check_branch
    %3 = sbr.rel (0) target = $region5
  $region4: #{tile.58} parent=0 // pred_region
    _
  $region5: #{tile.58} parent=0 // pred_fallthru
    _
  %v4 = vld [vmem:[%s0] ss:$0 sm:$0xff]
  %5 = vst [vmem:[%s1] sm:$0x3] %v4

// kernel: tile.59
$region0: #{tile.59}
  %s0 = inlined_call_operand.vmem [shape: f32[2,32], index: 0, kind: input, shape index: {}]
  %s1 = inlined_call_operand.vmem [shape: f32[1,64], index: 1, kind: output, shape index: {}]
  $region1: #{tile.59} parent=0
    #allocation0 [shape = 'u8[4096]{0}', space=vmem, size = 0x1000, scoped, tag = 'scoped mem for output reshape']
    #allocation1 [shape = 'u8[4096]{0}', space=vmem, size = 0x1000, scoped, tag = 'scoped mem for input reshape']
    %s3 = sshllo.u32 0, 2
    %v4 = vld [vmem:[%s0] sm:%s3]
    %5 = vst [vmem:[#allocation1] sm:%s3] %v4
    %v6 = vld [vmem:[#allocation1] sm:$0x1]
    %vm7 = vcmask 261120
    %8 = vst.msk [vmem:[#allocation0] sm:$0x1] %vm7, %v6
    %s9 = scalar_lea.vmem [#allocation1], 1
    %v10 = vld [vmem:[%s9] sm:$0x1]
    %11 = vrot.lane.b32.xlu0 %v10, 32
    %v12 = vpop.permute.xlu0 %11
    %vm13 = vcmask 523520
    %14 = vst.msk [vmem:[#allocation0] sm:$0x1] %vm13, %v12
    %s16 = sshllo.u32 0, 1
    %v18 = vld [vmem:[#allocation0] sm:%s16]
    %s19 = sshllo.u32 0, 1
    %20 = vst [vmem:[%s1] sm:%s19] %v18

// kernel: _lambda_.28
$region0: #{_lambda_.28}
  #allocation0 [shape = 'u32[]', space=smem, size = 0x4, offset = 0x4, fixed_abs, tag = 'smem constant byte address 0x4 - core index']
  #allocation1 [shape = 'u32[144,128]{1,0:T(1,128)}', space=vmem, size = 0x12000, scoped, tag = 'internal scratch']
  %s0 = inlined_call_operand.vmem [shape: bf16[8,256], index: 0, kind: input, shape index: {}]
  %s1 = inlined_call_operand.vmem [shape: bf16[256,32], index: 1, kind: input, shape index: {}]
  %s2 = inlined_call_operand.vmem [shape: f32[8,32], index: 2, kind: output, shape index: {}]
  %s3 = sld [smem:[#allocation0]]
  $region22: #{_lambda_.28} parent=0
    _
  %s5 = ssub.s32 1, %s3
  %s6 = scalar_select 0, %s5, %s3
  // Predicated region
  $region2: #{_lambda_.28} parent=0 // pred_check
    _
  $region3: #{_lambda_.28} parent=0 // pred_check_branch
    %8 = sbr.rel (0) target = $region5
  $region4: #{_lambda_.28} parent=0 // pred_region
    _
  $region5: #{_lambda_.28} parent=0 // pred_fallthru
    _
  // Predicated region
  $region6: #{_lambda_.28} parent=0 // pred_check
    _
  $region7: #{_lambda_.28} parent=0 // pred_check_branch
    %10 = sbr.rel (0) target = $region9
  $region8: #{_lambda_.28} parent=0 // pred_region
    _
  $region9: #{_lambda_.28} parent=0 // pred_fallthru
    _
  %v13 = vld [vmem:[%s0] sm:$0xff]
  %vm14 = vcmp.gt.bf16.partialorder %v13, 0
  %v15 = vmul.bf16 %v13, 1045249613
  %v16 = vsel %vm14, %v13, %v15
  %p17 = scmp.eq.s32.totalorder 0, 0
  // Predicated region
  $region10: #{_lambda_.28} parent=0 // pred_check
    %p18 = pneg %p17
  $region11: #{_lambda_.28} parent=0 // pred_check_branch
    %20 = sbr.rel (%p18) target = $region13
  $region12: #{_lambda_.28} parent=0 // pred_region
    %vm21 = vcmask 261120
    %22 = vst.msk [vmem:[%s2] sm:$0xff] %vm21, 0.0
  $region13: #{_lambda_.28} parent=0 // pred_fallthru
    _
  %v23 = vld [vmem:[%s2] sm:$0xff]
  %v24 = vld [vmem:[%s1] sm:$0xf]
  %v25 = vld [vmem:[%s1 + $0x4] sm:$0xf]
  %v26 = vld [vmem:[%s1 + $0x8] sm:$0xf]
  %v27 = vld [vmem:[%s1 + $0xc] sm:$0xf]
  %v28 = vld [vmem:[%s1 + $0x10] sm:$0xf]
  %v29 = vld [vmem:[%s1 + $0x14] sm:$0xf]
  %v30 = vld [vmem:[%s1 + $0x18] sm:$0xf]
  %v31 = vld [vmem:[%s1 + $0x1c] sm:$0xf]
  %v32 = vld [vmem:[%s1 + $0x20] sm:$0xf]
  %v33 = vld [vmem:[%s1 + $0x24] sm:$0xf]
  %v34 = vld [vmem:[%s1 + $0x28] sm:$0xf]
  %v35 = vld [vmem:[%s1 + $0x2c] sm:$0xf]
  %v36 = vld [vmem:[%s1 + $0x30] sm:$0xf]
  %v37 = vld [vmem:[%s1 + $0x34] sm:$0xf]
  %v38 = vld [vmem:[%s1 + $0x38] sm:$0xf]
  %v39 = vld [vmem:[%s1 + $0x3c] sm:$0xf]
  %v40 = vld [vmem:[%s1 + $0x40] sm:$0xf]
  %v41 = vld [vmem:[%s1 + $0x44] sm:$0xf]
  %v42 = vld [vmem:[%s1 + $0x48] sm:$0xf]
  %v43 = vld [vmem:[%s1 + $0x4c] sm:$0xf]
  %v44 = vld [vmem:[%s1 + $0x50] sm:$0xf]
  %v45 = vld [vmem:[%s1 + $0x54] sm:$0xf]
  %v46 = vld [vmem:[%s1 + $0x58] sm:$0xf]
  %v47 = vld [vmem:[%s1 + $0x5c] sm:$0xf]
  %v48 = vld [vmem:[%s1 + $0x60] sm:$0xf]
  %v49 = vld [vmem:[%s1 + $0x64] sm:$0xf]
  %v50 = vld [vmem:[%s1 + $0x68] sm:$0xf]
  %v51 = vld [vmem:[%s1 + $0x6c] sm:$0xf]
  %v52 = vld [vmem:[%s1 + $0x70] sm:$0xf]
  %v53 = vld [vmem:[%s1 + $0x74] sm:$0xf]
  %v54 = vld [vmem:[%s1 + $0x78] sm:$0xf]
  %v55 = vld [vmem:[%s1 + $0x7c] sm:$0xf]
  %v57 = vunpack.c.l.b16 %v16
  %v58 = vunpack.c.h.b16 %v16
  %v59 = vpack.c.b16 %v57, %v57
  %v60 = vpack.c.b16 %v58, %v58
  %v95 = vunpack.c.l.b16 %v24
  %v96 = vunpack.c.l.b16 %v25
  %v97 = vunpack.c.l.b16 %v26
  %v98 = vunpack.c.l.b16 %v27
  %v99 = vunpack.c.l.b16 %v28
  %v100 = vunpack.c.l.b16 %v29
  %v101 = vunpack.c.l.b16 %v30
  %v102 = vunpack.c.l.b16 %v31
  %v103 = vunpack.c.l.b16 %v32
  %v104 = vunpack.c.l.b16 %v33
  %v105 = vunpack.c.l.b16 %v34
  %v106 = vunpack.c.l.b16 %v35
  %v107 = vunpack.c.l.b16 %v36
  %v108 = vunpack.c.l.b16 %v37
  %v109 = vunpack.c.l.b16 %v38
  %v110 = vunpack.c.l.b16 %v39
  %v111 = vunpack.c.l.b16 %v40
  %v112 = vunpack.c.l.b16 %v41
  %v113 = vunpack.c.l.b16 %v42
  %v114 = vunpack.c.l.b16 %v43
  %v115 = vunpack.c.l.b16 %v44
  %v116 = vunpack.c.l.b16 %v45
  %v117 = vunpack.c.l.b16 %v46
  %v118 = vunpack.c.l.b16 %v47
  %v119 = vunpack.c.l.b16 %v48
  %v120 = vunpack.c.l.b16 %v49
  %v121 = vunpack.c.l.b16 %v50
  %v122 = vunpack.c.l.b16 %v51
  %v123 = vunpack.c.l.b16 %v52
  %v124 = vunpack.c.l.b16 %v53
  %v125 = vunpack.c.l.b16 %v54
  %v126 = vunpack.c.l.b16 %v55
  %v127 = vpack.c.b16 %v96, %v95
  %v128 = vpack.c.b16 %v98, %v97
  %v129 = vpack.c.b16 %v100, %v99
  %v130 = vpack.c.b16 %v102, %v101
  %v131 = vpack.c.b16 %v104, %v103
  %v132 = vpack.c.b16 %v106, %v105
  %v133 = vpack.c.b16 %v108, %v107
  %v134 = vpack.c.b16 %v110, %v109
  %v135 = vpack.c.b16 %v112, %v111
  %v136 = vpack.c.b16 %v114, %v113
  %v137 = vpack.c.b16 %v116, %v115
  %v138 = vpack.c.b16 %v118, %v117
  %v139 = vpack.c.b16 %v120, %v119
  %v140 = vpack.c.b16 %v122, %v121
  %v141 = vpack.c.b16 %v124, %v123
  %v142 = vpack.c.b16 %v126, %v125
  %159 = vmatprep.subr.bf16.mxu0 0
  %160 = vmatpush1.bf16.msra.mxu0 %v127
  %161 = vmatprep.subr.bf16.mxu0 0
  %162 = vmatpush1.bf16.msra.mxu0 %v128
  %163 = vmatprep.subr.bf16.mxu0 0
  %164 = vmatpush1.bf16.msra.mxu0 %v129
  %165 = vmatprep.subr.bf16.mxu0 0
  %166 = vmatpush1.bf16.msra.mxu0 %v130
  %167 = vmatprep.subr.bf16.mxu0 0
  %168 = vmatpush1.bf16.msra.mxu0 %v131
  %169 = vmatprep.subr.bf16.mxu0 0
  %170 = vmatpush1.bf16.msra.mxu0 %v132
  %171 = vmatprep.subr.bf16.mxu0 0
  %172 = vmatpush1.bf16.msra.mxu0 %v133
  %173 = vmatprep.subr.bf16.mxu0 0
  %174 = vmatpush1.bf16.msra.mxu0 %v134
  %175 = vmatprep.subr.bf16.mxu0 0
  %176 = vmatpush1.bf16.msra.mxu0 %v135
  %177 = vmatprep.subr.bf16.mxu0 0
  %178 = vmatpush1.bf16.msra.mxu0 %v136
  %179 = vmatprep.subr.bf16.mxu0 0
  %180 = vmatpush1.bf16.msra.mxu0 %v137
  %181 = vmatprep.subr.bf16.mxu0 0
  %182 = vmatpush1.bf16.msra.mxu0 %v138
  %183 = vmatprep.subr.bf16.mxu0 0
  %184 = vmatpush1.bf16.msra.mxu0 %v139
  %185 = vmatprep.subr.bf16.mxu0 0
  %186 = vmatpush1.bf16.msra.mxu0 %v140
  %187 = vmatprep.subr.bf16.mxu0 0
  %188 = vmatpush1.bf16.msra.mxu0 %v141
  %189 = vmatprep.subr.bf16.mxu0 0
  %190 = vmatpush1.bf16.msra.mxu0 %v142
  %191 = vmatprep.mubr.bf16.mxu0 %v60
  %192 = vmatmul.mubr.bf16.gmra.mrb[0].mxu0 %v59
  %v193 = vpop.f32.mrb[0].mxu0
  %v194 = vadd.f32 0.0, %v193
  %v195 = vpop.f32.mrb[0].mxu0
  %v196 = vpop.f32.mrb[0].mxu0
  %v197 = vpop.f32.mrb[0].mxu0
  %198 = vdwg.mxu0
  %v199 = vadd.f32 %v23, %v194
  %vm200 = vcmask 261120
  %201 = vst.msk [vmem:[%s2] sm:$0xff] %vm200, %v199
  // Predicated region
  $region14: #{_lambda_.28} parent=0 // pred_check
    _
  $region15: #{_lambda_.28} parent=0 // pred_check_branch
    %203 = sbr.rel (0) target = $region17
  $region16: #{_lambda_.28} parent=0 // pred_region
    _
  $region17: #{_lambda_.28} parent=0 // pred_fallthru
    _
  // Predicated region
  $region18: #{_lambda_.28} parent=0 // pred_check
    _
  $region19: #{_lambda_.28} parent=0 // pred_check_branch
    %205 = sbr.rel (0) target = $region21
  $region20: #{_lambda_.28} parent=0 // pred_region
    _
  $region21: #{_lambda_.28} parent=0 // pred_fallthru
    _

// kernel: _lambda_.31
$region0: #{_lambda_.31}
  #allocation0 [shape = 'u32[]', space=smem, size = 0x4, offset = 0x4, fixed_abs, tag = 'smem constant byte address 0x4 - core index']
  #allocation1 [shape = 'u32[144,128]{1,0:T(1,128)}', space=vmem, size = 0x12000, scoped, tag = 'internal scratch']
  %s0 = inlined_call_operand.vmem [shape: bf16[8,128], index: 0, kind: input, shape index: {}]
  %s1 = inlined_call_operand.vmem [shape: bf16[128,16], index: 1, kind: input, shape index: {}]
  %s2 = inlined_call_operand.vmem [shape: f32[8,16], index: 2, kind: output, shape index: {}]
  %s3 = sld [smem:[#allocation0]]
  $region22: #{_lambda_.31} parent=0
    _
  %s5 = ssub.s32 1, %s3
  %s6 = scalar_select 0, %s5, %s3
  // Predicated region
  $region2: #{_lambda_.31} parent=0 // pred_check
    _
  $region3: #{_lambda_.31} parent=0 // pred_check_branch
    %8 = sbr.rel (0) target = $region5
  $region4: #{_lambda_.31} parent=0 // pred_region
    _
  $region5: #{_lambda_.31} parent=0 // pred_fallthru
    _
  // Predicated region
  $region6: #{_lambda_.31} parent=0 // pred_check
    _
  $region7: #{_lambda_.31} parent=0 // pred_check_branch
    %10 = sbr.rel (0) target = $region9
  $region8: #{_lambda_.31} parent=0 // pred_region
    _
  $region9: #{_lambda_.31} parent=0 // pred_fallthru
    _
  %v12 = vld [vmem:[%s0] sm:$0xf]
  %v13 = vmax.bf16 %v12, 0
  %p14 = scmp.eq.s32.totalorder 0, 0
  // Predicated region
  $region10: #{_lambda_.31} parent=0 // pred_check
    %p15 = pneg %p14
  $region11: #{_lambda_.31} parent=0 // pred_check_branch
    %17 = sbr.rel (%p15) target = $region13
  $region12: #{_lambda_.31} parent=0 // pred_region
    %vm18 = vcmask 130048
    %19 = vst.msk [vmem:[%s2] sm:$0xff] %vm18, 0.0
  $region13: #{_lambda_.31} parent=0 // pred_fallthru
    _
  %v20 = vld [vmem:[%s2] sm:$0xff]
  %v21 = vld [vmem:[%s1] sm:$0xf]
  %v22 = vld [vmem:[%s1 + $0x4] sm:$0xf]
  %v23 = vld [vmem:[%s1 + $0x8] sm:$0xf]
  %v24 = vld [vmem:[%s1 + $0xc] sm:$0xf]
  %v25 = vld [vmem:[%s1 + $0x10] sm:$0xf]
  %v26 = vld [vmem:[%s1 + $0x14] sm:$0xf]
  %v27 = vld [vmem:[%s1 + $0x18] sm:$0xf]
  %v28 = vld [vmem:[%s1 + $0x1c] sm:$0xf]
  %v29 = vld [vmem:[%s1 + $0x20] sm:$0xf]
  %v30 = vld [vmem:[%s1 + $0x24] sm:$0xf]
  %v31 = vld [vmem:[%s1 + $0x28] sm:$0xf]
  %v32 = vld [vmem:[%s1 + $0x2c] sm:$0xf]
  %v33 = vld [vmem:[%s1 + $0x30] sm:$0xf]
  %v34 = vld [vmem:[%s1 + $0x34] sm:$0xf]
  %v35 = vld [vmem:[%s1 + $0x38] sm:$0xf]
  %v36 = vld [vmem:[%s1 + $0x3c] sm:$0xf]
  %v53 = vunpack.c.l.b16 %v21
  %v54 = vunpack.c.l.b16 %v22
  %v55 = vunpack.c.l.b16 %v23
  %v56 = vunpack.c.l.b16 %v24
  %v57 = vunpack.c.l.b16 %v25
  %v58 = vunpack.c.l.b16 %v26
  %v59 = vunpack.c.l.b16 %v27
  %v60 = vunpack.c.l.b16 %v28
  %v61 = vunpack.c.l.b16 %v29
  %v62 = vunpack.c.l.b16 %v30
  %v63 = vunpack.c.l.b16 %v31
  %v64 = vunpack.c.l.b16 %v32
  %v65 = vunpack.c.l.b16 %v33
  %v66 = vunpack.c.l.b16 %v34
  %v67 = vunpack.c.l.b16 %v35
  %v68 = vunpack.c.l.b16 %v36
  %v69 = vpack.c.b16 %v54, %v53
  %v70 = vpack.c.b16 %v56, %v55
  %v71 = vpack.c.b16 %v58, %v57
  %v72 = vpack.c.b16 %v60, %v59
  %v73 = vpack.c.b16 %v62, %v61
  %v74 = vpack.c.b16 %v64, %v63
  %v75 = vpack.c.b16 %v66, %v65
  %v76 = vpack.c.b16 %v68, %v67
  %85 = vmatprep.subr.bf16.mxu0 0
  %86 = vmatpush1.bf16.msra.mxu0 %v69
  %87 = vmatprep.subr.bf16.mxu0 0
  %88 = vmatpush1.bf16.msra.mxu0 %v70
  %89 = vmatprep.subr.bf16.mxu0 0
  %90 = vmatpush1.bf16.msra.mxu0 %v71
  %91 = vmatprep.subr.bf16.mxu0 0
  %92 = vmatpush1.bf16.msra.mxu0 %v72
  %93 = vmatprep.subr.bf16.mxu0 0
  %94 = vmatpush1.bf16.msra.mxu0 %v73
  %95 = vmatprep.subr.bf16.mxu0 0
  %96 = vmatpush1.bf16.msra.mxu0 %v74
  %97 = vmatprep.subr.bf16.mxu0 0
  %98 = vmatpush1.bf16.msra.mxu0 %v75
  %99 = vmatprep.subr.bf16.mxu0 0
  %100 = vmatpush1.bf16.msra.mxu0 %v76
  %101 = vmatprep.subr.bf16.mxu0 0
  %102 = vmatpush1.bf16.msra.mxu0 0
  %103 = vmatprep.subr.bf16.mxu0 0
  %104 = vmatpush1.bf16.msra.mxu0 0
  %105 = vmatprep.subr.bf16.mxu0 0
  %106 = vmatpush1.bf16.msra.mxu0 0
  %107 = vmatprep.subr.bf16.mxu0 0
  %108 = vmatpush1.bf16.msra.mxu0 0
  %109 = vmatprep.subr.bf16.mxu0 0
  %110 = vmatpush1.bf16.msra.mxu0 0
  %111 = vmatprep.subr.bf16.mxu0 0
  %112 = vmatpush1.bf16.msra.mxu0 0
  %113 = vmatprep.subr.bf16.mxu0 0
  %114 = vmatpush1.bf16.msra.mxu0 0
  %115 = vmatprep.subr.bf16.mxu0 0
  %116 = vmatpush1.bf16.msra.mxu0 0
  %117 = vmatprep.mubr.bf16.mxu0 0
  %118 = vmatmul.mubr.bf16.gmra.mrb[0].mxu0 %v13
  %v119 = vpop.f32.mrb[0].mxu0
  %v120 = vadd.f32 0.0, %v119
  %v121 = vpop.f32.mrb[0].mxu0
  %v122 = vpop.f32.mrb[0].mxu0
  %v123 = vpop.f32.mrb[0].mxu0
  %124 = vdwg.mxu0
  %v125 = vadd.f32 %v20, %v120
  %vm126 = vcmask 130048
  %127 = vst.msk [vmem:[%s2] sm:$0xff] %vm126, %v125
  // Predicated region
  $region14: #{_lambda_.31} parent=0 // pred_check
    _
  $region15: #{_lambda_.31} parent=0 // pred_check_branch
    %129 = sbr.rel (0) target = $region17
  $region16: #{_lambda_.31} parent=0 // pred_region
    _
  $region17: #{_lambda_.31} parent=0 // pred_fallthru
    _
  // Predicated region
  $region18: #{_lambda_.31} parent=0 // pred_check
    _
  $region19: #{_lambda_.31} parent=0 // pred_check_branch
    %131 = sbr.rel (0) target = $region21
  $region20: #{_lambda_.31} parent=0 // pred_region
    _
  $region21: #{_lambda_.31} parent=0 // pred_fallthru
    _

// kernel: squeeze.14
$region0: #{squeeze.14}
  %s0 = inlined_call_operand.vmem [shape: f32[64], index: 0, kind: input, shape index: {}]
  %s1 = inlined_call_operand.vmem [shape: f32[8,8], index: 1, kind: output, shape index: {}]
  $region1: #{squeeze.14} parent=0
    #allocation0 [shape = 'u8[4096]{0}', space=vmem, size = 0x1000, scoped, tag = 'scoped mem for input reshape']
    %s3 = sshllo.u32 0, 1
    %v4 = vld [vmem:[%s0] sm:%s3]
    %5 = vst [vmem:[#allocation0] sm:%s3] %v4
    %v6 = vld [vmem:[#allocation0] sm:$0x1]
    %vm7 = vcmask 64512
    %8 = vst.msk [vmem:[%s1] sm:$0x1] %vm7, %v6
    %v9 = vld [vmem:[#allocation0] sm:$0x1]
    %10 = vrot.lane.b32.xlu0 %v9, 120
    %v11 = vpop.permute.xlu0 %10
    %vm12 = vcmask 64512
    %s13 = scalar_lea.vmem %s1, 1
    %14 = vst.msk [vmem:[%s13] sm:$0x1] %vm12, %v11
    %v15 = vld [vmem:[#allocation0] sm:$0x1]
    %16 = vrot.lane.b32.xlu0 %v15, 112
    %v17 = vpop.permute.xlu0 %16
    %vm18 = vcmask 64512
    %s19 = scalar_lea.vmem %s1, 2
    %20 = vst.msk [vmem:[%s19] sm:$0x1] %vm18, %v17
    %v21 = vld [vmem:[#allocation0] sm:$0x1]
    %22 = vrot.lane.b32.xlu0 %v21, 104
    %v23 = vpop.permute.xlu0 %22
    %vm24 = vcmask 64512
    %s25 = scalar_lea.vmem %s1, 3
    %26 = vst.msk [vmem:[%s25] sm:$0x1] %vm24, %v23
    %v27 = vld [vmem:[#allocation0] sm:$0x1]
    %28 = vrot.lane.b32.xlu0 %v27, 96
    %v29 = vpop.permute.xlu0 %28
    %vm30 = vcmask 64512
    %s31 = scalar_lea.vmem %s1, 4
    %32 = vst.msk [vmem:[%s31] sm:$0x1] %vm30, %v29
    %v33 = vld [vmem:[#allocation0] sm:$0x1]
    %34 = vrot.lane.b32.xlu0 %v33, 88
    %v35 = vpop.permute.xlu0 %34
    %vm36 = vcmask 64512
    %s37 = scalar_lea.vmem %s1, 5
    %38 = vst.msk [vmem:[%s37] sm:$0x1] %vm36, %v35
    %v39 = vld [vmem:[#allocation0] sm:$0x1]
    %40 = vrot.lane.b32.xlu0 %v39, 80
    %v41 = vpop.permute.xlu0 %40
    %vm42 = vcmask 64512
    %s43 = scalar_lea.vmem %s1, 6
    %44 = vst.msk [vmem:[%s43] sm:$0x1] %vm42, %v41
    %v45 = vld [vmem:[#allocation0] sm:$0x1]
    %46 = vrot.lane.b32.xlu0 %v45, 72
    %v47 = vpop.permute.xlu0 %46
    %vm48 = vcmask 64512
    %s49 = scalar_lea.vmem %s1, 7
    %50 = vst.msk [vmem:[%s49] sm:$0x1] %vm48, %v47

// kernel: tile.78
$region0: #{tile.78}
  #allocation0 [shape = 's32[1]{0}', space=sflag, size = 0x4, scoped, tag = 'scoped memory for tile.78']
  %s0 = inlined_call_operand.vmem [shape: f32[8], index: 0, kind: input, shape index: {}]
  %s1 = inlined_call_operand.vmem [shape: f32[8,8], index: 1, kind: output, shape index: {}]
  // Predicated region
  $region2: #{tile.78} parent=0 // pred_check
    _
  $region3: #{tile.78} parent=0 // pred_check_branch
    %3 = sbr.rel (0) target = $region5
  $region4: #{tile.78} parent=0 // pred_region
    _
  $region5: #{tile.78} parent=0 // pred_fallthru
    _
  %v4 = vld [vmem:[%s0] ss:$0 sm:$0xff]
  %5 = vst [vmem:[%s1] sm:$0xff] %v4

// kernel: tile.79
$region0: #{tile.79}
  %s0 = inlined_call_operand.vmem [shape: f32[8,8], index: 0, kind: input, shape index: {}]
  %s1 = inlined_call_operand.vmem [shape: f32[1,64], index: 1, kind: output, shape index: {}]
  $region1: #{tile.79} parent=0
    #allocation0 [shape = 'u8[4096]{0}', space=vmem, size = 0x1000, scoped, tag = 'scoped mem for output reshape']
    %v2 = vld [vmem:[%s0] sm:$0x1]
    %vm3 = vcmask 64512
    %4 = vst.msk [vmem:[#allocation0] sm:$0x1] %vm3, %v2
    %s5 = scalar_lea.vmem %s0, 7
    %v6 = vld [vmem:[%s5] sm:$0x1]
    %7 = vrot.lane.b32.xlu0 %v6, 56
    %v8 = vpop.permute.xlu0 %7
    %vm9 = vcmask 523712
    %10 = vst.msk [vmem:[#allocation0] sm:$0x1] %vm9, %v8
    %s11 = scalar_lea.vmem %s0, 6
    %v12 = vld [vmem:[%s11] sm:$0x1]
    %13 = vrot.lane.b32.xlu0 %v12, 48
    %v14 = vpop.permute.xlu0 %13
    %vm15 = vcmask 458112
    %16 = vst.msk [vmem:[#allocation0] sm:$0x1] %vm15, %v14
    %s17 = scalar_lea.vmem %s0, 5
    %v18 = vld [vmem:[%s17] sm:$0x1]
    %19 = vrot.lane.b32.xlu0 %v18, 40
    %v20 = vpop.permute.xlu0 %19
    %vm21 = vcmask 392512
    %22 = vst.msk [vmem:[#allocation0] sm:$0x1] %vm21, %v20
    %s23 = scalar_lea.vmem %s0, 4
    %v24 = vld [vmem:[%s23] sm:$0x1]
    %25 = vrot.lane.b32.xlu0 %v24, 32
    %v26 = vpop.permute.xlu0 %25
    %vm27 = vcmask 326912
    %28 = vst.msk [vmem:[#allocation0] sm:$0x1] %vm27, %v26
    %s29 = scalar_lea.vmem %s0, 3
    %v30 = vld [vmem:[%s29] sm:$0x1]
    %31 = vrot.lane.b32.xlu0 %v30, 24
    %v32 = vpop.permute.xlu0 %31
    %vm33 = vcmask 261312
    %34 = vst.msk [vmem:[#allocation0] sm:$0x1] %vm33, %v32
    %s35 = scalar_lea.vmem %s0, 2
    %v36 = vld [vmem:[%s35] sm:$0x1]
    %37 = vrot.lane.b32.xlu0 %v36, 16
    %v38 = vpop.permute.xlu0 %37
    %vm39 = vcmask 195712
    %40 = vst.msk [vmem:[#allocation0] sm:$0x1] %vm39, %v38
    %s41 = scalar_lea.vmem %s0, 1
    %v42 = vld [vmem:[%s41] sm:$0x1]
    %43 = vrot.lane.b32.xlu0 %v42, 8
    %v44 = vpop.permute.xlu0 %43
    %vm45 = vcmask 130112
    %46 = vst.msk [vmem:[#allocation0] sm:$0x1] %vm45, %v44
    %s48 = sshllo.u32 0, 1
    %v50 = vld [vmem:[#allocation0] sm:%s48]
    %s51 = sshllo.u32 0, 1
    %52 = vst [vmem:[%s1] sm:%s51] %v50

// kernel: _lambda_.40
$region0: #{_lambda_.40}
  #allocation0 [shape = 'u32[]', space=smem, size = 0x4, offset = 0x4, fixed_abs, tag = 'smem constant byte address 0x4 - core index']
  #allocation1 [shape = 'u32[144,128]{1,0:T(1,128)}', space=vmem, size = 0x12000, scoped, tag = 'internal scratch']
  %s0 = inlined_call_operand.vmem [shape: bf16[32,128], index: 0, kind: input, shape index: {}]
  %s1 = inlined_call_operand.vmem [shape: bf16[128,8], index: 1, kind: input, shape index: {}]
  %s2 = inlined_call_operand.vmem [shape: f32[32,8], index: 2, kind: output, shape index: {}]
  %s3 = sld [smem:[#allocation0]]
  $region22: #{_lambda_.40} parent=0
    _
  %s5 = ssub.s32 1, %s3
  %s6 = scalar_select 0, %s5, %s3
  // Predicated region
  $region2: #{_lambda_.40} parent=0 // pred_check
    _
  $region3: #{_lambda_.40} parent=0 // pred_check_branch
    %8 = sbr.rel (0) target = $region5
  $region4: #{_lambda_.40} parent=0 // pred_region
    _
  $region5: #{_lambda_.40} parent=0 // pred_fallthru
    _
  // Predicated region
  $region6: #{_lambda_.40} parent=0 // pred_check
    _
  $region7: #{_lambda_.40} parent=0 // pred_check_branch
    %10 = sbr.rel (0) target = $region9
  $region8: #{_lambda_.40} parent=0 // pred_region
    _
  $region9: #{_lambda_.40} parent=0 // pred_fallthru
    _
  %v12 = vld [vmem:[%s0] sm:$0xf]
  %v13 = vld [vmem:[%s0 + $0x4] sm:$0xf]
  %v14 = vld [vmem:[%s0 + $0x8] sm:$0xf]
  %v15 = vld [vmem:[%s0 + $0xc] sm:$0xf]
  %v16 = vmax.bf16 %v12, 0
  %v17 = vmax.bf16 %v13, 0
  %v18 = vmax.bf16 %v14, 0
  %v19 = vmax.bf16 %v15, 0
  %p20 = scmp.eq.s32.totalorder 0, 0
  // Predicated region
  $region10: #{_lambda_.40} parent=0 // pred_check
    %p21 = pneg %p20
  $region11: #{_lambda_.40} parent=0 // pred_check_branch
    %23 = sbr.rel (%p21) target = $region13
  $region12: #{_lambda_.40} parent=0 // pred_region
    %vm24 = vcmask 64512
    %25 = vst.msk [vmem:[%s2] sm:$0xff] %vm24, 0.0
    %26 = vst.msk [vmem:[%s2 + $0x8] sm:$0xff] %vm24, 0.0
    %27 = vst.msk [vmem:[%s2 + $0x10] sm:$0xff] %vm24, 0.0
    %28 = vst.msk [vmem:[%s2 + $0x18] sm:$0xff] %vm24, 0.0
  $region13: #{_lambda_.40} parent=0 // pred_fallthru
    _
  %v29 = vld [vmem:[%s2] sm:$0xff]
  %v30 = vld [vmem:[%s2 + $0x8] sm:$0xff]
  %v31 = vld [vmem:[%s2 + $0x10] sm:$0xff]
  %v32 = vld [vmem:[%s2 + $0x18] sm:$0xff]
  %v33 = vld [vmem:[%s1] sm:$0xf]
  %v34 = vld [vmem:[%s1 + $0x4] sm:$0xf]
  %v35 = vld [vmem:[%s1 + $0x8] sm:$0xf]
  %v36 = vld [vmem:[%s1 + $0xc] sm:$0xf]
  %v37 = vld [vmem:[%s1 + $0x10] sm:$0xf]
  %v38 = vld [vmem:[%s1 + $0x14] sm:$0xf]
  %v39 = vld [vmem:[%s1 + $0x18] sm:$0xf]
  %v40 = vld [vmem:[%s1 + $0x1c] sm:$0xf]
  %v41 = vld [vmem:[%s1 + $0x20] sm:$0xf]
  %v42 = vld [vmem:[%s1 + $0x24] sm:$0xf]
  %v43 = vld [vmem:[%s1 + $0x28] sm:$0xf]
  %v44 = vld [vmem:[%s1 + $0x2c] sm:$0xf]
  %v45 = vld [vmem:[%s1 + $0x30] sm:$0xf]
  %v46 = vld [vmem:[%s1 + $0x34] sm:$0xf]
  %v47 = vld [vmem:[%s1 + $0x38] sm:$0xf]
  %v48 = vld [vmem:[%s1 + $0x3c] sm:$0xf]
  %v53 = vunpack.c.l.b16 %v16
  %v54 = vunpack.c.l.b16 %v17
  %v55 = vunpack.c.l.b16 %v18
  %v56 = vunpack.c.l.b16 %v19
  %v57 = vpack.c.b16 %v54, %v53
  %v58 = vpack.c.b16 %v56, %v55
  %v77 = vunpack.c.l.b16 %v33
  %v78 = vunpack.c.l.b16 %v34
  %v79 = vunpack.c.l.b16 %v35
  %v80 = vunpack.c.l.b16 %v36
  %v81 = vunpack.c.l.b16 %v37
  %v82 = vunpack.c.l.b16 %v38
  %v83 = vunpack.c.l.b16 %v39
  %v84 = vunpack.c.l.b16 %v40
  %v85 = vunpack.c.l.b16 %v41
  %v86 = vunpack.c.l.b16 %v42
  %v87 = vunpack.c.l.b16 %v43
  %v88 = vunpack.c.l.b16 %v44
  %v89 = vunpack.c.l.b16 %v45
  %v90 = vunpack.c.l.b16 %v46
  %v91 = vunpack.c.l.b16 %v47
  %v92 = vunpack.c.l.b16 %v48
  %v93 = vpack.c.b16 %v78, %v77
  %v94 = vpack.c.b16 %v80, %v79
  %v95 = vpack.c.b16 %v82, %v81
  %v96 = vpack.c.b16 %v84, %v83
  %v97 = vpack.c.b16 %v86, %v85
  %v98 = vpack.c.b16 %v88, %v87
  %v99 = vpack.c.b16 %v90, %v89
  %v100 = vpack.c.b16 %v92, %v91
  %109 = vmatprep.subr.bf16.mxu0 0
  %110 = vmatpush1.bf16.msra.mxu0 %v93
  %111 = vmatprep.subr.bf16.mxu0 0
  %112 = vmatpush1.bf16.msra.mxu0 %v94
  %113 = vmatprep.subr.bf16.mxu0 0
  %114 = vmatpush1.bf16.msra.mxu0 %v95
  %115 = vmatprep.subr.bf16.mxu0 0
  %116 = vmatpush1.bf16.msra.mxu0 %v96
  %117 = vmatprep.subr.bf16.mxu0 0
  %118 = vmatpush1.bf16.msra.mxu0 %v97
  %119 = vmatprep.subr.bf16.mxu0 0
  %120 = vmatpush1.bf16.msra.mxu0 %v98
  %121 = vmatprep.subr.bf16.mxu0 0
  %122 = vmatpush1.bf16.msra.mxu0 %v99
  %123 = vmatprep.subr.bf16.mxu0 0
  %124 = vmatpush1.bf16.msra.mxu0 %v100
  %125 = vmatprep.subr.bf16.mxu0 0
  %126 = vmatpush1.bf16.msra.mxu0 0
  %127 = vmatprep.subr.bf16.mxu0 0
  %128 = vmatpush1.bf16.msra.mxu0 0
  %129 = vmatprep.subr.bf16.mxu0 0
  %130 = vmatpush1.bf16.msra.mxu0 0
  %131 = vmatprep.subr.bf16.mxu0 0
  %132 = vmatpush1.bf16.msra.mxu0 0
  %133 = vmatprep.subr.bf16.mxu0 0
  %134 = vmatpush1.bf16.msra.mxu0 0
  %135 = vmatprep.subr.bf16.mxu0 0
  %136 = vmatpush1.bf16.msra.mxu0 0
  %137 = vmatprep.subr.bf16.mxu0 0
  %138 = vmatpush1.bf16.msra.mxu0 0
  %139 = vmatprep.subr.bf16.mxu0 0
  %140 = vmatpush1.bf16.msra.mxu0 0
  %141 = vmatprep.mubr.bf16.mxu0 0
  %142 = vmatmul.mubr.bf16.gmra.mrb[0].mxu0 %v57
  %v143 = vpop.f32.mrb[0].mxu0
  %v144 = vadd.f32 0.0, %v143
  %v145 = vpop.f32.mrb[0].mxu0
  %v146 = vpop.f32.mrb[0].mxu0
  %v147 = vadd.f32 0.0, %v146
  %v148 = vpop.f32.mrb[0].mxu0
  %149 = vmatprep.mubr.bf16.mxu0 0
  %150 = vmatmul.mubr.bf16.gmra.mrb[0].mxu0 %v58
  %v151 = vpop.f32.mrb[0].mxu0
  %v152 = vadd.f32 0.0, %v151
  %v153 = vpop.f32.mrb[0].mxu0
  %v154 = vpop.f32.mrb[0].mxu0
  %v155 = vadd.f32 0.0, %v154
  %v156 = vpop.f32.mrb[0].mxu0
  %157 = vdwg.mxu0
  %v158 = vadd.f32 %v29, %v144
  %v159 = vadd.f32 %v30, %v147
  %v160 = vadd.f32 %v31, %v152
  %v161 = vadd.f32 %v32, %v155
  %vm162 = vcmask 64512
  %163 = vst.msk [vmem:[%s2] sm:$0xff] %vm162, %v158
  %164 = vst.msk [vmem:[%s2 + $0x8] sm:$0xff] %vm162, %v159
  %165 = vst.msk [vmem:[%s2 + $0x10] sm:$0xff] %vm162, %v160
  %166 = vst.msk [vmem:[%s2 + $0x18] sm:$0xff] %vm162, %v161
  // Predicated region
  $region14: #{_lambda_.40} parent=0 // pred_check
    _
  $region15: #{_lambda_.40} parent=0 // pred_check_branch
    %168 = sbr.rel (0) target = $region17
  $region16: #{_lambda_.40} parent=0 // pred_region
    _
  $region17: #{_lambda_.40} parent=0 // pred_fallthru
    _
  // Predicated region
  $region18: #{_lambda_.40} parent=0 // pred_check
    _
  $region19: #{_lambda_.40} parent=0 // pred_check_branch
    %170 = sbr.rel (0) target = $region21
  $region20: #{_lambda_.40} parent=0 // pred_region
    _
  $region21: #{_lambda_.40} parent=0 // pred_fallthru
    _

// kernel: _lambda_.41
$region0: #{_lambda_.41}
  #allocation0 [shape = 'u32[]', space=smem, size = 0x4, offset = 0x4, fixed_abs, tag = 'smem constant byte address 0x4 - core index']
  #allocation1 [shape = 'u32[144,128]{1,0:T(1,128)}', space=vmem, size = 0x12000, scoped, tag = 'internal scratch']
  %s0 = inlined_call_operand.vmem [shape: f32[16,64], index: 0, kind: input, shape index: {}]
  %s1 = inlined_call_operand.vmem [shape: f32[8,64], index: 1, kind: output, shape index: {}]
  %s2 = sld [smem:[#allocation0]]
  $region18: #{_lambda_.41} parent=0
    _
  %s4 = ssub.s32 1, %s2
  %s5 = scalar_select 0, %s4, %s2
  // Predicated region
  $region2: #{_lambda_.41} parent=0 // pred_check
    _
  $region3: #{_lambda_.41} parent=0 // pred_check_branch
    %7 = sbr.rel (0) target = $region5
  $region4: #{_lambda_.41} parent=0 // pred_region
    _
  $region5: #{_lambda_.41} parent=0 // pred_fallthru
    _
  %p8 = scmp.eq.s32.totalorder 0, 0
  // Predicated region
  $region6: #{_lambda_.41} parent=0 // pred_check
    %p9 = pneg %p8
  $region7: #{_lambda_.41} parent=0 // pred_check_branch
    %11 = sbr.rel (%p9) target = $region9
  $region8: #{_lambda_.41} parent=0 // pred_region
    %vm12 = vcmask 523264
    %13 = vst.msk [vmem:[%s1] sm:$0xff] %vm12, 0.0
  $region9: #{_lambda_.41} parent=0 // pred_fallthru
    _
  %v14 = vld [vmem:[%s0] sm:$0xff]
  %v15 = vld [vmem:[%s0 + $0x8] sm:$0xff]
  %vm16 = vcmask 523264
  %v17 = vsel %vm16, %v14, 0.0
  %v18 = vsel %vm16, %v15, 0.0
  %v19 = vadd.f32 %v17, %v18
  %v20 = vrot.slane %v19, 4
  %v21 = vadd.f32 %v19, %v20
  %v22 = vrot.slane %v21, 2
  %v23 = vadd.f32 %v21, %v22
  %v24 = vrot.slane %v23, 1
  %v25 = vadd.f32 %v23, %v24
  %v26 = vmul.f32 %v14, %v14
  %v27 = vmul.f32 %v15, %v15
  %v28 = vsel %vm16, %v26, 0.0
  %v29 = vsel %vm16, %v27, 0.0
  %v30 = vadd.f32 %v28, %v29
  %v31 = vrot.slane %v30, 4
  %v32 = vadd.f32 %v30, %v31
  %v33 = vrot.slane %v32, 2
  %v34 = vadd.f32 %v32, %v33
  %v35 = vrot.slane %v34, 1
  %v36 = vadd.f32 %v34, %v35
  %v37 = vlaneseq
  %v38 = vshrl.u32 %v37, 7
  %v39 = vld [vmem:[%s1] sm:$0xff]
  %vm40 = vcmp.eq.s32.totalorder %v38, 0
  %v41 = vsel %vm40, %v25, 0.0
  %vm42 = vcmp.eq.s32.totalorder %v38, 1
  %v43 = vsel %vm42, %v36, 0.0
  %v44 = vadd.f32 %v41, %v43
  %v45 = vadd.f32 %v39, %v44
  %46 = vst.msk [vmem:[%s1] sm:$0xff] %vm16, %v45
  // Predicated region
  $region10: #{_lambda_.41} parent=0 // pred_check
    _
  $region11: #{_lambda_.41} parent=0 // pred_check_branch
    %48 = sbr.rel (0) target = $region13
  $region12: #{_lambda_.41} parent=0 // pred_region
    _
  $region13: #{_lambda_.41} parent=0 // pred_fallthru
    _
  // Predicated region
  $region14: #{_lambda_.41} parent=0 // pred_check
    _
  $region15: #{_lambda_.41} parent=0 // pred_check_branch
    %50 = sbr.rel (0) target = $region17
  $region16: #{_lambda_.41} parent=0 // pred_region
    _
  $region17: #{_lambda_.41} parent=0 // pred_fallthru
    _

// kernel: _lambda_.42
$region0: #{_lambda_.42}
  #allocation0 [shape = 'u32[]', space=smem, size = 0x4, offset = 0x4, fixed_abs, tag = 'smem constant byte address 0x4 - core index']
  #allocation1 [shape = 'u32[144,128]{1,0:T(1,128)}', space=vmem, size = 0x12000, scoped, tag = 'internal scratch']
  %s0 = inlined_call_operand.vmem [shape: f32[16,64], index: 0, kind: input, shape index: {}]
  %s1 = inlined_call_operand.vmem [shape: f32[1,64], index: 1, kind: input, shape index: {}]
  %s2 = inlined_call_operand.vmem [shape: f32[1,64], index: 2, kind: input, shape index: {}]
  %s3 = inlined_call_operand.vmem [shape: f32[16,64], index: 3, kind: output, shape index: {}]
  %s4 = sld [smem:[#allocation0]]
  $region22: #{_lambda_.42} parent=0
    _
  %s6 = ssub.s32 1, %s4
  %s7 = scalar_select 0, %s6, %s4
  // Predicated region
  $region2: #{_lambda_.42} parent=0 // pred_check
    _
  $region3: #{_lambda_.42} parent=0 // pred_check_branch
    %9 = sbr.rel (0) target = $region5
  $region4: #{_lambda_.42} parent=0 // pred_region
    _
  $region5: #{_lambda_.42} parent=0 // pred_fallthru
    _
  // Predicated region
  $region6: #{_lambda_.42} parent=0 // pred_check
    _
  $region7: #{_lambda_.42} parent=0 // pred_check_branch
    %11 = sbr.rel (0) target = $region9
  $region8: #{_lambda_.42} parent=0 // pred_region
    _
  $region9: #{_lambda_.42} parent=0 // pred_fallthru
    _
  // Predicated region
  $region10: #{_lambda_.42} parent=0 // pred_check
    _
  $region11: #{_lambda_.42} parent=0 // pred_check_branch
    %13 = sbr.rel (0) target = $region13
  $region12: #{_lambda_.42} parent=0 // pred_region
    _
  $region13: #{_lambda_.42} parent=0 // pred_fallthru
    _
  %v14 = vld [vmem:[%s0] sm:$0xff]
  %v15 = vld [vmem:[%s0 + $0x8] sm:$0xff]
  %v16 = vld [vmem:[%s1] sm:$0x1]
  %v18 = vlaneseq
  %v19 = vshrl.u32 %v18, 7
  %v20 = vsub.s32 0, %v19
  %v21 = vrot.slane %v16, %v20
  %v23 = vmul.f32 %v14, %v21
  %v24 = vmul.f32 %v15, %v21
  %v25 = vld [vmem:[%s2] sm:$0x1]
  %v27 = vlaneseq
  %v28 = vshrl.u32 %v27, 7
  %v29 = vsub.s32 0, %v28
  %v30 = vrot.slane %v25, %v29
  %v32 = vadd.f32 %v23, %v30
  %v33 = vadd.f32 %v24, %v30
  %vm34 = vcmask 523264
  %35 = vst.msk [vmem:[%s3] sm:$0xff] %vm34, %v32
  %36 = vst.msk [vmem:[%s3 + $0x8] sm:$0xff] %vm34, %v33
  // Predicated region
  $region14: #{_lambda_.42} parent=0 // pred_check
    _
  $region15: #{_lambda_.42} parent=0 // pred_check_branch
    %38 = sbr.rel (0) target = $region17
  $region16: #{_lambda_.42} parent=0 // pred_region
    _
  $region17: #{_lambda_.42} parent=0 // pred_fallthru
    _
  // Predicated region
  $region18: #{_lambda_.42} parent=0 // pred_check
    _
  $region19: #{_lambda_.42} parent=0 // pred_check_branch
    %40 = sbr.rel (0) target = $region21
  $region20: #{_lambda_.42} parent=0 // pred_region
    _
  $region21: #{_lambda_.42} parent=0 // pred_fallthru
    _

// kernel: _lambda_.46
$region0: #{_lambda_.46}
  #allocation0 [shape = 'u32[]', space=smem, size = 0x4, offset = 0x4, fixed_abs, tag = 'smem constant byte address 0x4 - core index']
  #allocation1 [shape = 'u32[144,128]{1,0:T(1,128)}', space=vmem, size = 0x12000, scoped, tag = 'internal scratch']
  %s0 = inlined_call_operand.vmem [shape: bf16[128,64], index: 0, kind: input, shape index: {}]
  %s1 = inlined_call_operand.vmem [shape: bf16[64,8], index: 1, kind: input, shape index: {}]
  %s2 = inlined_call_operand.vmem [shape: f32[1,8], index: 2, kind: input, shape index: {}]
  %s3 = inlined_call_operand.vmem [shape: f32[128,8], index: 3, kind: output, shape index: {}]
  %s4 = sld [smem:[#allocation0]]
  $region30: #{_lambda_.46} parent=0
    _
  %s6 = ssub.s32 1, %s4
  %s7 = scalar_select 0, %s6, %s4
  // Predicated region
  $region2: #{_lambda_.46} parent=0 // pred_check
    _
  $region3: #{_lambda_.46} parent=0 // pred_check_branch
    %9 = sbr.rel (0) target = $region5
  $region4: #{_lambda_.46} parent=0 // pred_region
    _
  $region5: #{_lambda_.46} parent=0 // pred_fallthru
    _
  // Predicated region
  $region6: #{_lambda_.46} parent=0 // pred_check
    _
  $region7: #{_lambda_.46} parent=0 // pred_check_branch
    %11 = sbr.rel (0) target = $region9
  $region8: #{_lambda_.46} parent=0 // pred_region
    _
  $region9: #{_lambda_.46} parent=0 // pred_fallthru
    _
  // Predicated region
  $region10: #{_lambda_.46} parent=0 // pred_check
    _
  $region11: #{_lambda_.46} parent=0 // pred_check_branch
    %13 = sbr.rel (0) target = $region13
  $region12: #{_lambda_.46} parent=0 // pred_region
    _
  $region13: #{_lambda_.46} parent=0 // pred_fallthru
    _
  %v15 = vld [vmem:[%s0] sm:$0xf]
  %v16 = vld [vmem:[%s0 + $0x4] sm:$0xf]
  %v17 = vld [vmem:[%s0 + $0x8] sm:$0xf]
  %v18 = vld [vmem:[%s0 + $0xc] sm:$0xf]
  %v19 = vld [vmem:[%s0 + $0x10] sm:$0xf]
  %v20 = vld [vmem:[%s0 + $0x14] sm:$0xf]
  %v21 = vld [vmem:[%s0 + $0x18] sm:$0xf]
  %v22 = vld [vmem:[%s0 + $0x1c] sm:$0xf]
  %v23 = vld [vmem:[%s0 + $0x20] sm:$0xf]
  %v24 = vld [vmem:[%s0 + $0x24] sm:$0xf]
  %v25 = vld [vmem:[%s0 + $0x28] sm:$0xf]
  %v26 = vld [vmem:[%s0 + $0x2c] sm:$0xf]
  %v27 = vld [vmem:[%s0 + $0x30] sm:$0xf]
  %v28 = vld [vmem:[%s0 + $0x34] sm:$0xf]
  %v29 = vld [vmem:[%s0 + $0x38] sm:$0xf]
  %v30 = vld [vmem:[%s0 + $0x3c] sm:$0xf]
  %v31 = vmax.bf16 %v15, 0
  %v32 = vmax.bf16 %v16, 0
  %v33 = vmax.bf16 %v17, 0
  %v34 = vmax.bf16 %v18, 0
  %v35 = vmax.bf16 %v19, 0
  %v36 = vmax.bf16 %v20, 0
  %v37 = vmax.bf16 %v21, 0
  %v38 = vmax.bf16 %v22, 0
  %v39 = vmax.bf16 %v23, 0
  %v40 = vmax.bf16 %v24, 0
  %v41 = vmax.bf16 %v25, 0
  %v42 = vmax.bf16 %v26, 0
  %v43 = vmax.bf16 %v27, 0
  %v44 = vmax.bf16 %v28, 0
  %v45 = vmax.bf16 %v29, 0
  %v46 = vmax.bf16 %v30, 0
  %p47 = scmp.eq.s32.totalorder 0, 0
  // Predicated region
  $region14: #{_lambda_.46} parent=0 // pred_check
    %p48 = pneg %p47
  $region15: #{_lambda_.46} parent=0 // pred_check_branch
    %50 = sbr.rel (%p48) target = $region17
  $region16: #{_lambda_.46} parent=0 // pred_region
    %vm51 = vcmask 64512
    %52 = vst.msk [vmem:[%s3] sm:$0xff] %vm51, 0.0
    %53 = vst.msk [vmem:[%s3 + $0x8] sm:$0xff] %vm51, 0.0
    %54 = vst.msk [vmem:[%s3 + $0x10] sm:$0xff] %vm51, 0.0
    %55 = vst.msk [vmem:[%s3 + $0x18] sm:$0xff] %vm51, 0.0
    %56 = vst.msk [vmem:[%s3 + $0x20] sm:$0xff] %vm51, 0.0
    %57 = vst.msk [vmem:[%s3 + $0x28] sm:$0xff] %vm51, 0.0
    %58 = vst.msk [vmem:[%s3 + $0x30] sm:$0xff] %vm51, 0.0
    %59 = vst.msk [vmem:[%s3 + $0x38] sm:$0xff] %vm51, 0.0
    %60 = vst.msk [vmem:[%s3 + $0x40] sm:$0xff] %vm51, 0.0
    %61 = vst.msk [vmem:[%s3 + $0x48] sm:$0xff] %vm51, 0.0
    %62 = vst.msk [vmem:[%s3 + $0x50] sm:$0xff] %vm51, 0.0
    %63 = vst.msk [vmem:[%s3 + $0x58] sm:$0xff] %vm51, 0.0
    %64 = vst.msk [vmem:[%s3 + $0x60] sm:$0xff] %vm51, 0.0
    %65 = vst.msk [vmem:[%s3 + $0x68] sm:$0xff] %vm51, 0.0
    %66 = vst.msk [vmem:[%s3 + $0x70] sm:$0xff] %vm51, 0.0
    %67 = vst.msk [vmem:[%s3 + $0x78] sm:$0xff] %vm51, 0.0
  $region17: #{_lambda_.46} parent=0 // pred_fallthru
    _
  %v68 = vld [vmem:[%s3] sm:$0xff]
  %v69 = vld [vmem:[%s3 + $0x8] sm:$0xff]
  %v70 = vld [vmem:[%s3 + $0x10] sm:$0xff]
  %v71 = vld [vmem:[%s3 + $0x18] sm:$0xff]
  %v72 = vld [vmem:[%s3 + $0x20] sm:$0xff]
  %v73 = vld [vmem:[%s3 + $0x28] sm:$0xff]
  %v74 = vld [vmem:[%s3 + $0x30] sm:$0xff]
  %v75 = vld [vmem:[%s3 + $0x38] sm:$0xff]
  %v76 = vld [vmem:[%s3 + $0x40] sm:$0xff]
  %v77 = vld [vmem:[%s3 + $0x48] sm:$0xff]
  %v78 = vld [vmem:[%s3 + $0x50] sm:$0xff]
  %v79 = vld [vmem:[%s3 + $0x58] sm:$0xff]
  %v80 = vld [vmem:[%s3 + $0x60] sm:$0xff]
  %v81 = vld [vmem:[%s3 + $0x68] sm:$0xff]
  %v82 = vld [vmem:[%s3 + $0x70] sm:$0xff]
  %v83 = vld [vmem:[%s3 + $0x78] sm:$0xff]
  %v84 = vld [vmem:[%s1] sm:$0xf]
  %v85 = vld [vmem:[%s1 + $0x4] sm:$0xf]
  %v86 = vld [vmem:[%s1 + $0x8] sm:$0xf]
  %v87 = vld [vmem:[%s1 + $0xc] sm:$0xf]
  %v88 = vld [vmem:[%s1 + $0x10] sm:$0xf]
  %v89 = vld [vmem:[%s1 + $0x14] sm:$0xf]
  %v90 = vld [vmem:[%s1 + $0x18] sm:$0xf]
  %v91 = vld [vmem:[%s1 + $0x1c] sm:$0xf]
  %v108 = vunpack.c.l.b16 %v31
  %v109 = vunpack.c.l.b16 %v32
  %v110 = vunpack.c.l.b16 %v33
  %v111 = vunpack.c.l.b16 %v34
  %v112 = vunpack.c.l.b16 %v35
  %v113 = vunpack.c.l.b16 %v36
  %v114 = vunpack.c.l.b16 %v37
  %v115 = vunpack.c.l.b16 %v38
  %v116 = vunpack.c.l.b16 %v39
  %v117 = vunpack.c.l.b16 %v40
  %v118 = vunpack.c.l.b16 %v41
  %v119 = vunpack.c.l.b16 %v42
  %v120 = vunpack.c.l.b16 %v43
  %v121 = vunpack.c.l.b16 %v44
  %v122 = vunpack.c.l.b16 %v45
  %v123 = vunpack.c.l.b16 %v46
  %v124 = vpack.c.b16 %v109, %v108
  %v125 = vpack.c.b16 %v111, %v110
  %v126 = vpack.c.b16 %v113, %v112
  %v127 = vpack.c.b16 %v115, %v114
  %v128 = vpack.c.b16 %v117, %v116
  %v129 = vpack.c.b16 %v119, %v118
  %v130 = vpack.c.b16 %v121, %v120
  %v131 = vpack.c.b16 %v123, %v122
  %v140 = vunpack.c.l.b16 %v84
  %v141 = vunpack.c.l.b16 %v85
  %v142 = vunpack.c.l.b16 %v86
  %v143 = vunpack.c.l.b16 %v87
  %v144 = vunpack.c.l.b16 %v88
  %v145 = vunpack.c.l.b16 %v89
  %v146 = vunpack.c.l.b16 %v90
  %v147 = vunpack.c.l.b16 %v91
  %v148 = vpack.c.b16 %v141, %v140
  %v149 = vpack.c.b16 %v143, %v142
  %v150 = vpack.c.b16 %v145, %v144
  %v151 = vpack.c.b16 %v147, %v146
  %vm156 = vcmask 523264
  %v158 = vsel %vm156, %v124, 0
  %v161 = vsel %vm156, %v125, 0
  %v164 = vsel %vm156, %v126, 0
  %v167 = vsel %vm156, %v127, 0
  %v170 = vsel %vm156, %v128, 0
  %v173 = vsel %vm156, %v129, 0
  %v176 = vsel %vm156, %v130, 0
  %v179 = vsel %vm156, %v131, 0
  %181 = vmatprep.subr.bf16.mxu0 0
  %182 = vmatpush1.bf16.msra.mxu0 %v148
  %183 = vmatprep.subr.bf16.mxu0 0
  %184 = vmatpush1.bf16.msra.mxu0 %v149
  %185 = vmatprep.subr.bf16.mxu0 0
  %186 = vmatpush1.bf16.msra.mxu0 %v150
  %187 = vmatprep.subr.bf16.mxu0 0
  %188 = vmatpush1.bf16.msra.mxu0 %v151
  %189 = vmatprep.subr.bf16.mxu0 0
  %190 = vmatpush1.bf16.msra.mxu0 0
  %191 = vmatprep.subr.bf16.mxu0 0
  %192 = vmatpush1.bf16.msra.mxu0 0
  %193 = vmatprep.subr.bf16.mxu0 0
  %194 = vmatpush1.bf16.msra.mxu0 0
  %195 = vmatprep.subr.bf16.mxu0 0
  %196 = vmatpush1.bf16.msra.mxu0 0
  %197 = vmatprep.subr.bf16.mxu0 0
  %198 = vmatpush1.bf16.msra.mxu0 0
  %199 = vmatprep.subr.bf16.mxu0 0
  %200 = vmatpush1.bf16.msra.mxu0 0
  %201 = vmatprep.subr.bf16.mxu0 0
  %202 = vmatpush1.bf16.msra.mxu0 0
  %203 = vmatprep.subr.bf16.mxu0 0
  %204 = vmatpush1.bf16.msra.mxu0 0
  %205 = vmatprep.subr.bf16.mxu0 0
  %206 = vmatpush1.bf16.msra.mxu0 0
  %207 = vmatprep.subr.bf16.mxu0 0
  %208 = vmatpush1.bf16.msra.mxu0 0
  %209 = vmatprep.subr.bf16.mxu0 0
  %210 = vmatpush1.bf16.msra.mxu0 0
  %211 = vmatprep.subr.bf16.mxu0 0
  %212 = vmatpush1.bf16.msra.mxu0 0
  %213 = vmatprep.mubr.bf16.mxu0 0
  %214 = vmatmul.mubr.bf16.gmra.mrb[0].mxu0 %v158
  %v215 = vpop.f32.mrb[0].mxu0
  %v216 = vadd.f32 0.0, %v215
  %v217 = vpop.f32.mrb[0].mxu0
  %v218 = vpop.f32.mrb[0].mxu0
  %v219 = vadd.f32 0.0, %v218
  %v220 = vpop.f32.mrb[0].mxu0
  %221 = vmatprep.mubr.bf16.mxu0 0
  %222 = vmatmul.mubr.bf16.gmra.mrb[0].mxu0 %v161
  %v223 = vpop.f32.mrb[0].mxu0
  %v224 = vadd.f32 0.0, %v223
  %v225 = vpop.f32.mrb[0].mxu0
  %v226 = vpop.f32.mrb[0].mxu0
  %v227 = vadd.f32 0.0, %v226
  %v228 = vpop.f32.mrb[0].mxu0
  %229 = vmatprep.mubr.bf16.mxu0 0
  %230 = vmatmul.mubr.bf16.gmra.mrb[0].mxu0 %v164
  %v231 = vpop.f32.mrb[0].mxu0
  %v232 = vadd.f32 0.0, %v231
  %v233 = vpop.f32.mrb[0].mxu0
  %v234 = vpop.f32.mrb[0].mxu0
  %v235 = vadd.f32 0.0, %v234
  %v236 = vpop.f32.mrb[0].mxu0
  %237 = vmatprep.mubr.bf16.mxu0 0
  %238 = vmatmul.mubr.bf16.gmra.mrb[0].mxu0 %v167
  %v239 = vpop.f32.mrb[0].mxu0
  %v240 = vadd.f32 0.0, %v239
  %v241 = vpop.f32.mrb[0].mxu0
  %v242 = vpop.f32.mrb[0].mxu0
  %v243 = vadd.f32 0.0, %v242
  %v244 = vpop.f32.mrb[0].mxu0
  %245 = vmatprep.mubr.bf16.mxu0 0
  %246 = vmatmul.mubr.bf16.gmra.mrb[0].mxu0 %v170
  %v247 = vpop.f32.mrb[0].mxu0
  %v248 = vadd.f32 0.0, %v247
  %v249 = vpop.f32.mrb[0].mxu0
  %v250 = vpop.f32.mrb[0].mxu0
  %v251 = vadd.f32 0.0, %v250
  %v252 = vpop.f32.mrb[0].mxu0
  %253 = vmatprep.mubr.bf16.mxu0 0
  %254 = vmatmul.mubr.bf16.gmra.mrb[0].mxu0 %v173
  %v255 = vpop.f32.mrb[0].mxu0
  %v256 = vadd.f32 0.0, %v255
  %v257 = vpop.f32.mrb[0].mxu0
  %v258 = vpop.f32.mrb[0].mxu0
  %v259 = vadd.f32 0.0, %v258
  %v260 = vpop.f32.mrb[0].mxu0
  %261 = vmatprep.mubr.bf16.mxu0 0
  %262 = vmatmul.mubr.bf16.gmra.mrb[0].mxu0 %v176
  %v263 = vpop.f32.mrb[0].mxu0
  %v264 = vadd.f32 0.0, %v263
  %v265 = vpop.f32.mrb[0].mxu0
  %v266 = vpop.f32.mrb[0].mxu0
  %v267 = vadd.f32 0.0, %v266
  %v268 = vpop.f32.mrb[0].mxu0
  %269 = vmatprep.mubr.bf16.mxu0 0
  %270 = vmatmul.mubr.bf16.gmra.mrb[0].mxu0 %v179
  %v271 = vpop.f32.mrb[0].mxu0
  %v272 = vadd.f32 0.0, %v271
  %v273 = vpop.f32.mrb[0].mxu0
  %v274 = vpop.f32.mrb[0].mxu0
  %v275 = vadd.f32 0.0, %v274
  %v276 = vpop.f32.mrb[0].mxu0
  %277 = vdwg.mxu0
  %v278 = vadd.f32 %v68, %v216
  %v279 = vadd.f32 %v69, %v219
  %v280 = vadd.f32 %v70, %v224
  %v281 = vadd.f32 %v71, %v227
  %v282 = vadd.f32 %v72, %v232
  %v283 = vadd.f32 %v73, %v235
  %v284 = vadd.f32 %v74, %v240
  %v285 = vadd.f32 %v75, %v243
  %v286 = vadd.f32 %v76, %v248
  %v287 = vadd.f32 %v77, %v251
  %v288 = vadd.f32 %v78, %v256
  %v289 = vadd.f32 %v79, %v259
  %v290 = vadd.f32 %v80, %v264
  %v291 = vadd.f32 %v81, %v267
  %v292 = vadd.f32 %v82, %v272
  %v293 = vadd.f32 %v83, %v275
  %vm294 = vcmask 64512
  %295 = vst.msk [vmem:[%s3] sm:$0xff] %vm294, %v278
  %296 = vst.msk [vmem:[%s3 + $0x8] sm:$0xff] %vm294, %v279
  %297 = vst.msk [vmem:[%s3 + $0x10] sm:$0xff] %vm294, %v280
  %298 = vst.msk [vmem:[%s3 + $0x18] sm:$0xff] %vm294, %v281
  %299 = vst.msk [vmem:[%s3 + $0x20] sm:$0xff] %vm294, %v282
  %300 = vst.msk [vmem:[%s3 + $0x28] sm:$0xff] %vm294, %v283
  %301 = vst.msk [vmem:[%s3 + $0x30] sm:$0xff] %vm294, %v284
  %302 = vst.msk [vmem:[%s3 + $0x38] sm:$0xff] %vm294, %v285
  %303 = vst.msk [vmem:[%s3 + $0x40] sm:$0xff] %vm294, %v286
  %304 = vst.msk [vmem:[%s3 + $0x48] sm:$0xff] %vm294, %v287
  %305 = vst.msk [vmem:[%s3 + $0x50] sm:$0xff] %vm294, %v288
  %306 = vst.msk [vmem:[%s3 + $0x58] sm:$0xff] %vm294, %v289
  %307 = vst.msk [vmem:[%s3 + $0x60] sm:$0xff] %vm294, %v290
  %308 = vst.msk [vmem:[%s3 + $0x68] sm:$0xff] %vm294, %v291
  %309 = vst.msk [vmem:[%s3 + $0x70] sm:$0xff] %vm294, %v292
  %310 = vst.msk [vmem:[%s3 + $0x78] sm:$0xff] %vm294, %v293
  // Predicated region
  $region18: #{_lambda_.46} parent=0 // pred_check
    %p311 = pneg %p47
  $region19: #{_lambda_.46} parent=0 // pred_check_branch
    %313 = sbr.rel (%p311) target = $region21
  $region20: #{_lambda_.46} parent=0 // pred_region
    %v314 = vld [vmem:[%s3] sm:$0xff]
    %v315 = vld [vmem:[%s3 + $0x8] sm:$0xff]
    %v316 = vld [vmem:[%s3 + $0x10] sm:$0xff]
    %v317 = vld [vmem:[%s3 + $0x18] sm:$0xff]
    %v318 = vld [vmem:[%s3 + $0x20] sm:$0xff]
    %v319 = vld [vmem:[%s3 + $0x28] sm:$0xff]
    %v320 = vld [vmem:[%s3 + $0x30] sm:$0xff]
    %v321 = vld [vmem:[%s3 + $0x38] sm:$0xff]
    %v322 = vld [vmem:[%s3 + $0x40] sm:$0xff]
    %v323 = vld [vmem:[%s3 + $0x48] sm:$0xff]
    %v324 = vld [vmem:[%s3 + $0x50] sm:$0xff]
    %v325 = vld [vmem:[%s3 + $0x58] sm:$0xff]
    %v326 = vld [vmem:[%s3 + $0x60] sm:$0xff]
    %v327 = vld [vmem:[%s3 + $0x68] sm:$0xff]
    %v328 = vld [vmem:[%s3 + $0x70] sm:$0xff]
    %v329 = vld [vmem:[%s3 + $0x78] sm:$0xff]
    %v330 = vld [vmem:[%s2] sm:$0x1]
    %v332 = vlaneseq
    %v333 = vshrl.u32 %v332, 7
    %v334 = vsub.s32 0, %v333
    %v335 = vrot.slane %v330, %v334
    %v337 = vadd.f32 %v314, %v335
    %v338 = vadd.f32 %v315, %v335
    %v339 = vadd.f32 %v316, %v335
    %v340 = vadd.f32 %v317, %v335
    %v341 = vadd.f32 %v318, %v335
    %v342 = vadd.f32 %v319, %v335
    %v343 = vadd.f32 %v320, %v335
    %v344 = vadd.f32 %v321, %v335
    %v345 = vadd.f32 %v322, %v335
    %v346 = vadd.f32 %v323, %v335
    %v347 = vadd.f32 %v324, %v335
    %v348 = vadd.f32 %v325, %v335
    %v349 = vadd.f32 %v326, %v335
    %v350 = vadd.f32 %v327, %v335
    %v351 = vadd.f32 %v328, %v335
    %v352 = vadd.f32 %v329, %v335
    %353 = vst.msk [vmem:[%s3] sm:$0xff] %vm294, %v337
    %354 = vst.msk [vmem:[%s3 + $0x8] sm:$0xff] %vm294, %v338
    %355 = vst.msk [vmem:[%s3 + $0x10] sm:$0xff] %vm294, %v339
    %356 = vst.msk [vmem:[%s3 + $0x18] sm:$0xff] %vm294, %v340
    %357 = vst.msk [vmem:[%s3 + $0x20] sm:$0xff] %vm294, %v341
    %358 = vst.msk [vmem:[%s3 + $0x28] sm:$0xff] %vm294, %v342
    %359 = vst.msk [vmem:[%s3 + $0x30] sm:$0xff] %vm294, %v343
    %360 = vst.msk [vmem:[%s3 + $0x38] sm:$0xff] %vm294, %v344
    %361 = vst.msk [vmem:[%s3 + $0x40] sm:$0xff] %vm294, %v345
    %362 = vst.msk [vmem:[%s3 + $0x48] sm:$0xff] %vm294, %v346
    %363 = vst.msk [vmem:[%s3 + $0x50] sm:$0xff] %vm294, %v347
    %364 = vst.msk [vmem:[%s3 + $0x58] sm:$0xff] %vm294, %v348
    %365 = vst.msk [vmem:[%s3 + $0x60] sm:$0xff] %vm294, %v349
    %366 = vst.msk [vmem:[%s3 + $0x68] sm:$0xff] %vm294, %v350
    %367 = vst.msk [vmem:[%s3 + $0x70] sm:$0xff] %vm294, %v351
    %368 = vst.msk [vmem:[%s3 + $0x78] sm:$0xff] %vm294, %v352
  $region21: #{_lambda_.46} parent=0 // pred_fallthru
    _
  // Predicated region
  $region22: #{_lambda_.46} parent=0 // pred_check
    _
  $region23: #{_lambda_.46} parent=0 // pred_check_branch
    %370 = sbr.rel (0) target = $region25
  $region24: #{_lambda_.46} parent=0 // pred_region
    _
  $region25: #{_lambda_.46} parent=0 // pred_fallthru
    _
  // Predicated region
  $region26: #{_lambda_.46} parent=0 // pred_check
    _
  $region27: #{_lambda_.46} parent=0 // pred_check_branch
    %372 = sbr.rel (0) target = $region29
  $region28: #{_lambda_.46} parent=0 // pred_region
    _
  $region29: #{_lambda_.46} parent=0 // pred_fallthru
    _

// kernel: _lambda_.47
$region0: #{_lambda_.47}
  #allocation0 [shape = 'u32[]', space=smem, size = 0x4, offset = 0x4, fixed_abs, tag = 'smem constant byte address 0x4 - core index']
  #allocation1 [shape = 'u32[144,128]{1,0:T(1,128)}', space=vmem, size = 0x12000, scoped, tag = 'internal scratch']
  #allocation2 [shape = 'f32[1,1]{1,0:T(1,128)S(1)}', space=vmem, size = 0x200, scoped, tag = 'scoped memory for _lambda_.47']
  %s0 = inlined_call_operand.vmem [shape: bf16[512,8], index: 0, kind: input, shape index: {}]
  %s1 = inlined_call_operand.vmem [shape: bf16[8,1], index: 1, kind: input, shape index: {}]
  %s2 = inlined_call_operand.<no memory space> [shape: f32[1,1], index: 2, kind: input, shape index: {}]
  %s3 = inlined_call_operand.vmem [shape: f32[512,1], index: 3, kind: output, shape index: {}]
  %s4 = sld [smem:[#allocation0]]
  $region53: #{_lambda_.47} parent=0
    _
  %s6 = ssub.s32 1, %s4
  %s7 = scalar_select 0, %s6, %s4
  %v8 = vstv %s2
  %9 = vst [vmem:[#allocation2] sm:$0x1] %v8
  loop: start=0, step=1, limit=4
  $region2: #{_lambda_.47} parent=0 // loop_pre_header
    _
  $region3: #{_lambda_.47} parent=0 // loop_header
    %s11 = sphi 0, %s15
    %p12 = scmp.ge.s32.totalorder %s11, 4
    %s18 = sphi 0, %s37
    %s19 = sphi 0, %s33
    %s20 = sphi 0, %s29
    %s21 = sphi 0, %s18
    %s22 = sphi 0, %s19
    %s23 = sphi 0, %s20
    %s24 = sphi 0, %s21
    %s25 = sphi 0, %s22
    %s26 = sphi 0, %s23
    %s42 = sphi 0, %s44
    %s45 = sphi 0, %s42
    %s46 = sphi 0, %s45
    %s62 = sphi 0, %s46
    %s70 = sphi 0, %s72
    %s73 = sphi 0, %s70
    %s74 = sphi 0, %s73
    %s90 = sphi 0, %s74
    %s96 = sphi 0, %s98
    %s99 = sphi 0, %s96
    %s100 = sphi 0, %s99
    %s116 = sphi 0, %s100
    %s124 = sphi 0, %s126
    %s127 = sphi 0, %s124
    %s128 = sphi 0, %s127
    %s144 = sphi 0, %s128
  $region4: #{_lambda_.47} parent=0 // loop_header_branch
    %14 = sbr.rel (%p12) target = $region8
  $region5: #{_lambda_.47} parent=0 // loop_body
    %s16 = ssub.s32 %s11, 1
    %s17 = ssub.s32 %s11, 2
    %s27 = sadd.s32 1, %s20
    %p28 = scmp.ge.s32.totalorder %s27, 1
    %s29 = scalar_select %p28, 0, %s27
    %s30 = sadd.s32 1, %s19
    %s31 = scalar_select %p28, %s30, %s19
    %p32 = scmp.ge.s32.totalorder %s31, 1
    %s33 = scalar_select %p32, 0, %s31
    %s34 = sadd.s32 1, %s18
    %s35 = scalar_select %p32, %s34, %s18
    %p36 = scmp.ge.s32.totalorder %s35, 2
    %s37 = scalar_select %p36, 0, %s35
    %s38 = ssub.s32 %s18, %s37
    %s39 = ssub.s32 %s20, %s29
    %s40 = sor.u32 %s38, %s39
    %p41 = scmp.eq.s32.totalorder %s40, 0
    %s43 = sadd.s32 %s42, 1
    %s44 = scalar_select %p41, %s42, %s43
    %p47 = pneg %p41
    %p48 = scmp.eq.s32.totalorder %s11, 1
    %p49 = por %p47, %p48
    %p50 = scmp.ne.s32.totalorder %s42, %s45
    %p51 = scmp.eq.s32.totalorder %s11, 0
    %p52 = por %p50, %p51
    %p53 = scmp.ne.s32.totalorder %s42, %s45
    %p54 = scmp.eq.s32.totalorder %s16, 1
    %p55 = por %p53, %p54
    %p56 = scmp.ne.s32.totalorder %s45, %s46
    %p57 = scmp.eq.s32.totalorder %s16, 0
    %p58 = por %p56, %p57
    %p59 = scmp.ne.s32.totalorder %s45, %s46
    %p60 = scmp.eq.s32.totalorder %s17, 1
    %p61 = por %p59, %p60
    %p63 = scmp.ne.s32.totalorder %s46, %s62
    %p64 = scmp.eq.s32.totalorder %s17, 0
    %p65 = por %p63, %p64
    %s66 = ssub.s32 %s20, %s29
    %s67 = ssub.s32 %s19, %s33
    %s68 = sor.u32 %s66, %s67
    %p69 = scmp.eq.s32.totalorder %s68, 0
    %s71 = sadd.s32 %s70, 1
    %s72 = scalar_select %p69, %s70, %s71
    %p75 = pneg %p69
    %p76 = scmp.eq.s32.totalorder %s11, 1
    %p77 = por %p75, %p76
    %p78 = scmp.ne.s32.totalorder %s70, %s73
    %p79 = scmp.eq.s32.totalorder %s11, 0
    %p80 = por %p78, %p79
    %p81 = scmp.ne.s32.totalorder %s70, %s73
    %p82 = scmp.eq.s32.totalorder %s16, 1
    %p83 = por %p81, %p82
    %p84 = scmp.ne.s32.totalorder %s73, %s74
    %p85 = scmp.eq.s32.totalorder %s16, 0
    %p86 = por %p84, %p85
    %p87 = scmp.ne.s32.totalorder %s73, %s74
    %p88 = scmp.eq.s32.totalorder %s17, 1
    %p89 = por %p87, %p88
    %p91 = scmp.ne.s32.totalorder %s74, %s90
    %p92 = scmp.eq.s32.totalorder %s17, 0
    %p93 = por %p91, %p92
    %s94 = ssub.s32 %s19, %s33
    %p95 = scmp.eq.s32.totalorder %s94, 0
    %s97 = sadd.s32 %s96, 1
    %s98 = scalar_select %p95, %s96, %s97
    %p101 = pneg %p95
    %p102 = scmp.eq.s32.totalorder %s11, 1
    %p103 = por %p101, %p102
    %p104 = scmp.ne.s32.totalorder %s96, %s99
    %p105 = scmp.eq.s32.totalorder %s11, 0
    %p106 = por %p104, %p105
    %p107 = scmp.ne.s32.totalorder %s96, %s99
    %p108 = scmp.eq.s32.totalorder %s16, 1
    %p109 = por %p107, %p108
    %p110 = scmp.ne.s32.totalorder %s99, %s100
    %p111 = scmp.eq.s32.totalorder %s16, 0
    %p112 = por %p110, %p111
    %p113 = scmp.ne.s32.totalorder %s99, %s100
    %p114 = scmp.eq.s32.totalorder %s17, 1
    %p115 = por %p113, %p114
    %p117 = scmp.ne.s32.totalorder %s100, %s116
    %p118 = scmp.eq.s32.totalorder %s17, 0
    %p119 = por %p117, %p118
    %s120 = ssub.s32 %s18, %s37
    %s121 = ssub.s32 %s19, %s33
    %s122 = sor.u32 %s120, %s121
    %p123 = scmp.eq.s32.totalorder %s122, 0
    %s125 = sadd.s32 %s124, 1
    %s126 = scalar_select %p123, %s124, %s125
    %p129 = pneg %p123
    %p130 = scmp.eq.s32.totalorder %s11, 1
    %p131 = por %p129, %p130
    %p132 = scmp.ne.s32.totalorder %s124, %s127
    %p133 = scmp.eq.s32.totalorder %s11, 0
    %p134 = por %p132, %p133
    %p135 = scmp.ne.s32.totalorder %s124, %s127
    %p136 = scmp.eq.s32.totalorder %s16, 1
    %p137 = por %p135, %p136
    %p138 = scmp.ne.s32.totalorder %s127, %s128
    %p139 = scmp.eq.s32.totalorder %s16, 0
    %p140 = por %p138, %p139
    %p141 = scmp.ne.s32.totalorder %s127, %s128
    %p142 = scmp.eq.s32.totalorder %s17, 1
    %p143 = por %p141, %p142
    %p145 = scmp.ne.s32.totalorder %s128, %s144
    %p146 = scmp.eq.s32.totalorder %s17, 0
    %p147 = por %p145, %p146
    %p148 = scmp.le.s32.totalorder 1, %s11
    %p149 = scmp.lt.s32.totalorder %s11, 3
    %p150 = pnand %p148, %p149
    %p151 = pneg %p150
    // Predicated region
    $region9: #{_lambda_.47} parent=5 // pred_check
      _
    $region10: #{_lambda_.47} parent=5 // pred_check_branch
      %153 = sbr.rel (%p150) target = $region12
    $region11: #{_lambda_.47} parent=5 // pred_region
      %s154 = ssub.s32 %s11, 1
      // Predicated region
      $region13: #{_lambda_.47} parent=11 // pred_check
        %p155 = pneg %p86
      $region14: #{_lambda_.47} parent=11 // pred_check_branch
        %157 = sbr.rel (%p155) target = $region16
      $region15: #{_lambda_.47} parent=11 // pred_region
        %p158 = scmp.lt.s32.totalorder %s23, 0
        %s159 = scalar_select %p158, %s23, 0
        %p160 = scmp.lt.s32.totalorder %s22, 0
        %s161 = scalar_select %p160, %s22, 0
        %s162 = sadd.s32 %s161, %s159
        %s163 = smul.addr %s162, 4
        %s164 = scalar_lea.vmem %s1, %s163
      $region16: #{_lambda_.47} parent=11 // pred_fallthru
        _
      // Predicated region
      $region17: #{_lambda_.47} parent=11 // pred_check
        %p165 = pneg %p112
      $region18: #{_lambda_.47} parent=11 // pred_check_branch
        %167 = sbr.rel (%p165) target = $region20
      $region19: #{_lambda_.47} parent=11 // pred_region
        %p168 = scmp.lt.s32.totalorder %s22, 0
        %s169 = scalar_select %p168, %s22, 0
        %s170 = scalar_lea.vmem [#allocation2], %s169
      $region20: #{_lambda_.47} parent=11 // pred_fallthru
        _
    $region12: #{_lambda_.47} parent=5 // pred_fallthru
      _
    %p171 = scmp.lt.s32.totalorder %s11, 2
    // Predicated region
    $region21: #{_lambda_.47} parent=5 // pred_check
      %p172 = pneg %p171
    $region22: #{_lambda_.47} parent=5 // pred_check_branch
      %174 = sbr.rel (%p172) target = $region24
    $region23: #{_lambda_.47} parent=5 // pred_region
      // Predicated region
      $region25: #{_lambda_.47} parent=23 // pred_check
        %p175 = pneg %p52
      $region26: #{_lambda_.47} parent=23 // pred_check_branch
        %177 = sbr.rel (%p175) target = $region28
      $region27: #{_lambda_.47} parent=23 // pred_region
        %s178 = smul.u32 32, %s18
        %p179 = scmp.lt.s32.totalorder %s178, 63
        %s180 = scalar_select %p179, %s178, 63
        %p181 = scmp.lt.s32.totalorder %s20, 0
        %s182 = scalar_select %p181, %s20, 0
        %s183 = sadd.s32 %s182, %s180
        %s184 = smul.addr %s183, 4
        %s185 = scalar_lea.vmem %s0, %s184
        %s186 = smul.u32 32, %s18
      $region28: #{_lambda_.47} parent=23 // pred_fallthru
        _
    $region24: #{_lambda_.47} parent=5 // pred_fallthru
      _
    %p187 = scmp.le.s32.totalorder 1, %s11
    %p188 = scmp.lt.s32.totalorder %s11, 3
    %p189 = pnand %p187, %p188
    %p190 = pneg %p189
    // Predicated region
    $region29: #{_lambda_.47} parent=5 // pred_check
      _
    $region30: #{_lambda_.47} parent=5 // pred_check_branch
      %192 = sbr.rel (%p189) target = $region32
    $region31: #{_lambda_.47} parent=5 // pred_region
      %s193 = ssub.s32 %s11, 1
      %s194 = smul.u32 32, %s21
      %p195 = scmp.lt.s32.totalorder %s194, 63
      %s196 = scalar_select %p195, %s194, 63
      %p197 = scmp.lt.s32.totalorder %s23, 0
      %s198 = scalar_select %p197, %s23, 0
      %s199 = sadd.s32 %s198, %s196
      %s200 = smul.addr %s199, 4
      %s201 = scalar_lea.vmem %s0, %s200
      %p202 = pneg %p58
      %p203 = pneg %p55
      %p204 = scmp.lt.s32.totalorder %s23, 0
      %s205 = scalar_select %p204, %s23, 0
      %p206 = scmp.lt.s32.totalorder %s22, 0
      %s207 = scalar_select %p206, %s22, 0
      %s208 = sadd.s32 %s207, %s205
      %s209 = smul.addr %s208, 4
      %s210 = scalar_lea.vmem %s1, %s209
      %p211 = pneg %p86
      %p212 = pneg %p83
      %p213 = scmp.lt.s32.totalorder %s22, 0
      %s214 = scalar_select %p213, %s22, 0
      %s215 = scalar_lea.vmem [#allocation2], %s214
      %p216 = pneg %p112
      %p217 = pneg %p109
      %p218 = pneg %p140
      %p219 = pneg %p137
      %s220 = smul.u32 32, %s21
      %p221 = scmp.lt.s32.totalorder %s220, 63
      %s222 = scalar_select %p221, %s220, 63
      %p223 = scmp.lt.s32.totalorder %s22, 0
      %s224 = scalar_select %p223, %s22, 0
      %s225 = sadd.s32 %s224, %s222
      %s226 = smul.addr %s225, 8
      %s227 = scalar_lea.vmem %s3, %s226
      %s228 = smul.u32 32, %s21
      %p229 = scmp.lt.s32.totalorder %s228, 63
      %s230 = scalar_select %p229, %s228, 63
      %p231 = scmp.lt.s32.totalorder %s23, 0
      %s232 = scalar_select %p231, %s23, 0
      %s233 = sadd.s32 %s232, %s230
      %s234 = smul.addr %s233, 4
      %s235 = scalar_lea.vmem %s0, %s234
      %s236 = smul.u32 32, %s21
      %p237 = scmp.lt.s32.totalorder %s23, 0
      %s238 = scalar_select %p237, %s23, 0
      %p239 = scmp.lt.s32.totalorder %s22, 0
      %s240 = scalar_select %p239, %s22, 0
      %s241 = sadd.s32 %s240, %s238
      %s242 = smul.addr %s241, 4
      %s243 = scalar_lea.vmem %s1, %s242
      %p244 = scmp.lt.s32.totalorder %s22, 0
      %s245 = scalar_select %p244, %s22, 0
      %s246 = scalar_lea.vmem [#allocation2], %s245
      %s247 = smul.u32 32, %s21
      %p248 = scmp.lt.s32.totalorder %s247, 63
      %s249 = scalar_select %p248, %s247, 63
      %p250 = scmp.lt.s32.totalorder %s22, 0
      %s251 = scalar_select %p250, %s22, 0
      %s252 = sadd.s32 %s251, %s249
      %s253 = smul.addr %s252, 8
      %s254 = scalar_lea.vmem %s3, %s253
      %s255 = smul.u32 32, %s21
      %v257 = vld [vmem:[%s235] sm:$0xf]
      %v258 = vld [vmem:[%s235 + $0x4] sm:$0xf]
      %v259 = vld [vmem:[%s235 + $0x8] sm:$0xf]
      %v260 = vld [vmem:[%s235 + $0xc] sm:$0xf]
      %v261 = vld [vmem:[%s235 + $0x10] sm:$0xf]
      %v262 = vld [vmem:[%s235 + $0x14] sm:$0xf]
      %v263 = vld [vmem:[%s235 + $0x18] sm:$0xf]
      %v264 = vld [vmem:[%s235 + $0x1c] sm:$0xf]
      %v265 = vld [vmem:[%s235 + $0x20] sm:$0xf]
      %v266 = vld [vmem:[%s235 + $0x24] sm:$0xf]
      %v267 = vld [vmem:[%s235 + $0x28] sm:$0xf]
      %v268 = vld [vmem:[%s235 + $0x2c] sm:$0xf]
      %v269 = vld [vmem:[%s235 + $0x30] sm:$0xf]
      %v270 = vld [vmem:[%s235 + $0x34] sm:$0xf]
      %v271 = vld [vmem:[%s235 + $0x38] sm:$0xf]
      %v272 = vld [vmem:[%s235 + $0x3c] sm:$0xf]
      %v273 = vld [vmem:[%s235 + $0x40] sm:$0xf]
      %v274 = vld [vmem:[%s235 + $0x44] sm:$0xf]
      %v275 = vld [vmem:[%s235 + $0x48] sm:$0xf]
      %v276 = vld [vmem:[%s235 + $0x4c] sm:$0xf]
      %v277 = vld [vmem:[%s235 + $0x50] sm:$0xf]
      %v278 = vld [vmem:[%s235 + $0x54] sm:$0xf]
      %v279 = vld [vmem:[%s235 + $0x58] sm:$0xf]
      %v280 = vld [vmem:[%s235 + $0x5c] sm:$0xf]
      %v281 = vld [vmem:[%s235 + $0x60] sm:$0xf]
      %v282 = vld [vmem:[%s235 + $0x64] sm:$0xf]
      %v283 = vld [vmem:[%s235 + $0x68] sm:$0xf]
      %v284 = vld [vmem:[%s235 + $0x6c] sm:$0xf]
      %v285 = vld [vmem:[%s235 + $0x70] sm:$0xf]
      %v286 = vld [vmem:[%s235 + $0x74] sm:$0xf]
      %v287 = vld [vmem:[%s235 + $0x78] sm:$0xf]
      %v288 = vld [vmem:[%s235 + $0x7c] sm:$0xf]
      %v289 = vmax.bf16 %v257, 0
      %v290 = vmax.bf16 %v258, 0
      %v291 = vmax.bf16 %v259, 0
      %v292 = vmax.bf16 %v260, 0
      %v293 = vmax.bf16 %v261, 0
      %v294 = vmax.bf16 %v262, 0
      %v295 = vmax.bf16 %v263, 0
      %v296 = vmax.bf16 %v264, 0
      %v297 = vmax.bf16 %v265, 0
      %v298 = vmax.bf16 %v266, 0
      %v299 = vmax.bf16 %v267, 0
      %v300 = vmax.bf16 %v268, 0
      %v301 = vmax.bf16 %v269, 0
      %v302 = vmax.bf16 %v270, 0
      %v303 = vmax.bf16 %v271, 0
      %v304 = vmax.bf16 %v272, 0
      %v305 = vmax.bf16 %v273, 0
      %v306 = vmax.bf16 %v274, 0
      %v307 = vmax.bf16 %v275, 0
      %v308 = vmax.bf16 %v276, 0
      %v309 = vmax.bf16 %v277, 0
      %v310 = vmax.bf16 %v278, 0
      %v311 = vmax.bf16 %v279, 0
      %v312 = vmax.bf16 %v280, 0
      %v313 = vmax.bf16 %v281, 0
      %v314 = vmax.bf16 %v282, 0
      %v315 = vmax.bf16 %v283, 0
      %v316 = vmax.bf16 %v284, 0
      %v317 = vmax.bf16 %v285, 0
      %v318 = vmax.bf16 %v286, 0
      %v319 = vmax.bf16 %v287, 0
      %v320 = vmax.bf16 %v288, 0
      %p321 = scmp.eq.s32.totalorder %s23, 0
      // Predicated region
      $region33: #{_lambda_.47} parent=31 // pred_check
        %p322 = pneg %p321
      $region34: #{_lambda_.47} parent=31 // pred_check_branch
        %324 = sbr.rel (%p322) target = $region36
      $region35: #{_lambda_.47} parent=31 // pred_region
        %vm325 = vcmask 7168
        %326 = vst.msk [vmem:[%s254] sm:$0xff] %vm325, 0.0
        %327 = vst.msk [vmem:[%s254 + $0x8] sm:$0xff] %vm325, 0.0
        %328 = vst.msk [vmem:[%s254 + $0x10] sm:$0xff] %vm325, 0.0
        %329 = vst.msk [vmem:[%s254 + $0x18] sm:$0xff] %vm325, 0.0
        %330 = vst.msk [vmem:[%s254 + $0x20] sm:$0xff] %vm325, 0.0
        %331 = vst.msk [vmem:[%s254 + $0x28] sm:$0xff] %vm325, 0.0
        %332 = vst.msk [vmem:[%s254 + $0x30] sm:$0xff] %vm325, 0.0
        %333 = vst.msk [vmem:[%s254 + $0x38] sm:$0xff] %vm325, 0.0
        %334 = vst.msk [vmem:[%s254 + $0x40] sm:$0xff] %vm325, 0.0
        %335 = vst.msk [vmem:[%s254 + $0x48] sm:$0xff] %vm325, 0.0
        %336 = vst.msk [vmem:[%s254 + $0x50] sm:$0xff] %vm325, 0.0
        %337 = vst.msk [vmem:[%s254 + $0x58] sm:$0xff] %vm325, 0.0
        %338 = vst.msk [vmem:[%s254 + $0x60] sm:$0xff] %vm325, 0.0
        %339 = vst.msk [vmem:[%s254 + $0x68] sm:$0xff] %vm325, 0.0
        %340 = vst.msk [vmem:[%s254 + $0x70] sm:$0xff] %vm325, 0.0
        %341 = vst.msk [vmem:[%s254 + $0x78] sm:$0xff] %vm325, 0.0
        %342 = vst.msk [vmem:[%s254 + $0x80] sm:$0xff] %vm325, 0.0
        %343 = vst.msk [vmem:[%s254 + $0x88] sm:$0xff] %vm325, 0.0
        %344 = vst.msk [vmem:[%s254 + $0x90] sm:$0xff] %vm325, 0.0
        %345 = vst.msk [vmem:[%s254 + $0x98] sm:$0xff] %vm325, 0.0
        %346 = vst.msk [vmem:[%s254 + $0xa0] sm:$0xff] %vm325, 0.0
        %347 = vst.msk [vmem:[%s254 + $0xa8] sm:$0xff] %vm325, 0.0
        %348 = vst.msk [vmem:[%s254 + $0xb0] sm:$0xff] %vm325, 0.0
        %349 = vst.msk [vmem:[%s254 + $0xb8] sm:$0xff] %vm325, 0.0
        %350 = vst.msk [vmem:[%s254 + $0xc0] sm:$0xff] %vm325, 0.0
        %351 = vst.msk [vmem:[%s254 + $0xc8] sm:$0xff] %vm325, 0.0
        %352 = vst.msk [vmem:[%s254 + $0xd0] sm:$0xff] %vm325, 0.0
        %353 = vst.msk [vmem:[%s254 + $0xd8] sm:$0xff] %vm325, 0.0
        %354 = vst.msk [vmem:[%s254 + $0xe0] sm:$0xff] %vm325, 0.0
        %355 = vst.msk [vmem:[%s254 + $0xe8] sm:$0xff] %vm325, 0.0
        %356 = vst.msk [vmem:[%s254 + $0xf0] sm:$0xff] %vm325, 0.0
        %357 = vst.msk [vmem:[%s254 + $0xf8] sm:$0xff] %vm325, 0.0
      $region36: #{_lambda_.47} parent=31 // pred_fallthru
        _
      %v358 = vld [vmem:[%s254] sm:$0xff]
      %v359 = vld [vmem:[%s254 + $0x8] sm:$0xff]
      %v360 = vld [vmem:[%s254 + $0x10] sm:$0xff]
      %v361 = vld [vmem:[%s254 + $0x18] sm:$0xff]
      %v362 = vld [vmem:[%s254 + $0x20] sm:$0xff]
      %v363 = vld [vmem:[%s254 + $0x28] sm:$0xff]
      %v364 = vld [vmem:[%s254 + $0x30] sm:$0xff]
      %v365 = vld [vmem:[%s254 + $0x38] sm:$0xff]
      %v366 = vld [vmem:[%s254 + $0x40] sm:$0xff]
      %v367 = vld [vmem:[%s254 + $0x48] sm:$0xff]
      %v368 = vld [vmem:[%s254 + $0x50] sm:$0xff]
      %v369 = vld [vmem:[%s254 + $0x58] sm:$0xff]
      %v370 = vld [vmem:[%s254 + $0x60] sm:$0xff]
      %v371 = vld [vmem:[%s254 + $0x68] sm:$0xff]
      %v372 = vld [vmem:[%s254 + $0x70] sm:$0xff]
      %v373 = vld [vmem:[%s254 + $0x78] sm:$0xff]
      %v374 = vld [vmem:[%s254 + $0x80] sm:$0xff]
      %v375 = vld [vmem:[%s254 + $0x88] sm:$0xff]
      %v376 = vld [vmem:[%s254 + $0x90] sm:$0xff]
      %v377 = vld [vmem:[%s254 + $0x98] sm:$0xff]
      %v378 = vld [vmem:[%s254 + $0xa0] sm:$0xff]
      %v379 = vld [vmem:[%s254 + $0xa8] sm:$0xff]
      %v380 = vld [vmem:[%s254 + $0xb0] sm:$0xff]
      %v381 = vld [vmem:[%s254 + $0xb8] sm:$0xff]
      %v382 = vld [vmem:[%s254 + $0xc0] sm:$0xff]
      %v383 = vld [vmem:[%s254 + $0xc8] sm:$0xff]
      %v384 = vld [vmem:[%s254 + $0xd0] sm:$0xff]
      %v385 = vld [vmem:[%s254 + $0xd8] sm:$0xff]
      %v386 = vld [vmem:[%s254 + $0xe0] sm:$0xff]
      %v387 = vld [vmem:[%s254 + $0xe8] sm:$0xff]
      %v388 = vld [vmem:[%s254 + $0xf0] sm:$0xff]
      %v389 = vld [vmem:[%s254 + $0xf8] sm:$0xff]
      %v390 = vld [vmem:[%s243] sm:$0xf]
      %v423 = vunpack.c.l.b16 %v289
      %v424 = vunpack.c.l.b16 %v290
      %v425 = vunpack.c.l.b16 %v291
      %v426 = vunpack.c.l.b16 %v292
      %v427 = vunpack.c.l.b16 %v293
      %v428 = vunpack.c.l.b16 %v294
      %v429 = vunpack.c.l.b16 %v295
      %v430 = vunpack.c.l.b16 %v296
      %v431 = vunpack.c.l.b16 %v297
      %v432 = vunpack.c.l.b16 %v298
      %v433 = vunpack.c.l.b16 %v299
      %v434 = vunpack.c.l.b16 %v300
      %v435 = vunpack.c.l.b16 %v301
      %v436 = vunpack.c.l.b16 %v302
      %v437 = vunpack.c.l.b16 %v303
      %v438 = vunpack.c.l.b16 %v304
      %v439 = vunpack.c.l.b16 %v305
      %v440 = vunpack.c.l.b16 %v306
      %v441 = vunpack.c.l.b16 %v307
      %v442 = vunpack.c.l.b16 %v308
      %v443 = vunpack.c.l.b16 %v309
      %v444 = vunpack.c.l.b16 %v310
      %v445 = vunpack.c.l.b16 %v311
      %v446 = vunpack.c.l.b16 %v312
      %v447 = vunpack.c.l.b16 %v313
      %v448 = vunpack.c.l.b16 %v314
      %v449 = vunpack.c.l.b16 %v315
      %v450 = vunpack.c.l.b16 %v316
      %v451 = vunpack.c.l.b16 %v317
      %v452 = vunpack.c.l.b16 %v318
      %v453 = vunpack.c.l.b16 %v319
      %v454 = vunpack.c.l.b16 %v320
      %v455 = vpack.c.b16 %v424, %v423
      %v456 = vpack.c.b16 %v426, %v425
      %v457 = vpack.c.b16 %v428, %v427
      %v458 = vpack.c.b16 %v430, %v429
      %v459 = vpack.c.b16 %v432, %v431
      %v460 = vpack.c.b16 %v434, %v433
      %v461 = vpack.c.b16 %v436, %v435
      %v462 = vpack.c.b16 %v438, %v437
      %v463 = vpack.c.b16 %v440, %v439
      %v464 = vpack.c.b16 %v442, %v441
      %v465 = vpack.c.b16 %v444, %v443
      %v466 = vpack.c.b16 %v446, %v445
      %v467 = vpack.c.b16 %v448, %v447
      %v468 = vpack.c.b16 %v450, %v449
      %v469 = vpack.c.b16 %v452, %v451
      %v470 = vpack.c.b16 %v454, %v453
      %vm471 = vcmask 64512
      %v473 = vsel %vm471, %v455, 0
      %v476 = vsel %vm471, %v456, 0
      %v479 = vsel %vm471, %v457, 0
      %v482 = vsel %vm471, %v458, 0
      %v485 = vsel %vm471, %v459, 0
      %v488 = vsel %vm471, %v460, 0
      %v491 = vsel %vm471, %v461, 0
      %v494 = vsel %vm471, %v462, 0
      %v497 = vsel %vm471, %v463, 0
      %v500 = vsel %vm471, %v464, 0
      %v503 = vsel %vm471, %v465, 0
      %v506 = vsel %vm471, %v466, 0
      %v509 = vsel %vm471, %v467, 0
      %v512 = vsel %vm471, %v468, 0
      %v515 = vsel %vm471, %v469, 0
      %v518 = vsel %vm471, %v470, 0
      %vm520 = vcmask 1043456
      %v522 = vsel %vm520, %v390, 0
      %524 = vmatprep.subr.bf16.mxu0 0
      %525 = vmatpush1.bf16.msra.mxu0 %v522
      %526 = vmatprep.subr.bf16.mxu0 0
      %527 = vmatpush1.bf16.msra.mxu0 0
      %528 = vmatprep.subr.bf16.mxu0 0
      %529 = vmatpush1.bf16.msra.mxu0 0
      %530 = vmatprep.subr.bf16.mxu0 0
      %531 = vmatpush1.bf16.msra.mxu0 0
      %532 = vmatprep.subr.bf16.mxu0 0
      %533 = vmatpush1.bf16.msra.mxu0 0
      %534 = vmatprep.subr.bf16.mxu0 0
      %535 = vmatpush1.bf16.msra.mxu0 0
      %536 = vmatprep.subr.bf16.mxu0 0
      %537 = vmatpush1.bf16.msra.mxu0 0
      %538 = vmatprep.subr.bf16.mxu0 0
      %539 = vmatpush1.bf16.msra.mxu0 0
      %540 = vmatprep.subr.bf16.mxu0 0
      %541 = vmatpush1.bf16.msra.mxu0 0
      %542 = vmatprep.subr.bf16.mxu0 0
      %543 = vmatpush1.bf16.msra.mxu0 0
      %544 = vmatprep.subr.bf16.mxu0 0
      %545 = vmatpush1.bf16.msra.mxu0 0
      %546 = vmatprep.subr.bf16.mxu0 0
      %547 = vmatpush1.bf16.msra.mxu0 0
      %548 = vmatprep.subr.bf16.mxu0 0
      %549 = vmatpush1.bf16.msra.mxu0 0
      %550 = vmatprep.subr.bf16.mxu0 0
      %551 = vmatpush1.bf16.msra.mxu0 0
      %552 = vmatprep.subr.bf16.mxu0 0
      %553 = vmatpush1.bf16.msra.mxu0 0
      %554 = vmatprep.subr.bf16.mxu0 0
      %555 = vmatpush1.bf16.msra.mxu0 0
      %556 = vmatprep.mubr.bf16.mxu0 0
      %557 = vmatmul.mubr.bf16.gmra.mrb[0].mxu0 %v473
      %v558 = vpop.f32.mrb[0].mxu0
      %v559 = vadd.f32 0.0, %v558
      %v560 = vpop.f32.mrb[0].mxu0
      %v561 = vpop.f32.mrb[0].mxu0
      %v562 = vadd.f32 0.0, %v561
      %v563 = vpop.f32.mrb[0].mxu0
      %564 = vmatprep.mubr.bf16.mxu0 0
      %565 = vmatmul.mubr.bf16.gmra.mrb[0].mxu0 %v476
      %v566 = vpop.f32.mrb[0].mxu0
      %v567 = vadd.f32 0.0, %v566
      %v568 = vpop.f32.mrb[0].mxu0
      %v569 = vpop.f32.mrb[0].mxu0
      %v570 = vadd.f32 0.0, %v569
      %v571 = vpop.f32.mrb[0].mxu0
      %572 = vmatprep.mubr.bf16.mxu0 0
      %573 = vmatmul.mubr.bf16.gmra.mrb[0].mxu0 %v479
      %v574 = vpop.f32.mrb[0].mxu0
      %v575 = vadd.f32 0.0, %v574
      %v576 = vpop.f32.mrb[0].mxu0
      %v577 = vpop.f32.mrb[0].mxu0
      %v578 = vadd.f32 0.0, %v577
      %v579 = vpop.f32.mrb[0].mxu0
      %580 = vmatprep.mubr.bf16.mxu0 0
      %581 = vmatmul.mubr.bf16.gmra.mrb[0].mxu0 %v482
      %v582 = vpop.f32.mrb[0].mxu0
      %v583 = vadd.f32 0.0, %v582
      %v584 = vpop.f32.mrb[0].mxu0
      %v585 = vpop.f32.mrb[0].mxu0
      %v586 = vadd.f32 0.0, %v585
      %v587 = vpop.f32.mrb[0].mxu0
      %588 = vmatprep.mubr.bf16.mxu0 0
      %589 = vmatmul.mubr.bf16.gmra.mrb[0].mxu0 %v485
      %v590 = vpop.f32.mrb[0].mxu0
      %v591 = vadd.f32 0.0, %v590
      %v592 = vpop.f32.mrb[0].mxu0
      %v593 = vpop.f32.mrb[0].mxu0
      %v594 = vadd.f32 0.0, %v593
      %v595 = vpop.f32.mrb[0].mxu0
      %596 = vmatprep.mubr.bf16.mxu0 0
      %597 = vmatmul.mubr.bf16.gmra.mrb[0].mxu0 %v488
      %v598 = vpop.f32.mrb[0].mxu0
      %v599 = vadd.f32 0.0, %v598
      %v600 = vpop.f32.mrb[0].mxu0
      %v601 = vpop.f32.mrb[0].mxu0
      %v602 = vadd.f32 0.0, %v601
      %v603 = vpop.f32.mrb[0].mxu0
      %604 = vmatprep.mubr.bf16.mxu0 0
      %605 = vmatmul.mubr.bf16.gmra.mrb[0].mxu0 %v491
      %v606 = vpop.f32.mrb[0].mxu0
      %v607 = vadd.f32 0.0, %v606
      %v608 = vpop.f32.mrb[0].mxu0
      %v609 = vpop.f32.mrb[0].mxu0
      %v610 = vadd.f32 0.0, %v609
      %v611 = vpop.f32.mrb[0].mxu0
      %612 = vmatprep.mubr.bf16.mxu0 0
      %613 = vmatmul.mubr.bf16.gmra.mrb[0].mxu0 %v494
      %v614 = vpop.f32.mrb[0].mxu0
      %v615 = vadd.f32 0.0, %v614
      %v616 = vpop.f32.mrb[0].mxu0
      %v617 = vpop.f32.mrb[0].mxu0
      %v618 = vadd.f32 0.0, %v617
      %v619 = vpop.f32.mrb[0].mxu0
      %620 = vmatprep.mubr.bf16.mxu0 0
      %621 = vmatmul.mubr.bf16.gmra.mrb[0].mxu0 %v497
      %v622 = vpop.f32.mrb[0].mxu0
      %v623 = vadd.f32 0.0, %v622
      %v624 = vpop.f32.mrb[0].mxu0
      %v625 = vpop.f32.mrb[0].mxu0
      %v626 = vadd.f32 0.0, %v625
      %v627 = vpop.f32.mrb[0].mxu0
      %628 = vmatprep.mubr.bf16.mxu0 0
      %629 = vmatmul.mubr.bf16.gmra.mrb[0].mxu0 %v500
      %v630 = vpop.f32.mrb[0].mxu0
      %v631 = vadd.f32 0.0, %v630
      %v632 = vpop.f32.mrb[0].mxu0
      %v633 = vpop.f32.mrb[0].mxu0
      %v634 = vadd.f32 0.0, %v633
      %v635 = vpop.f32.mrb[0].mxu0
      %636 = vmatprep.mubr.bf16.mxu0 0
      %637 = vmatmul.mubr.bf16.gmra.mrb[0].mxu0 %v503
      %v638 = vpop.f32.mrb[0].mxu0
      %v639 = vadd.f32 0.0, %v638
      %v640 = vpop.f32.mrb[0].mxu0
      %v641 = vpop.f32.mrb[0].mxu0
      %v642 = vadd.f32 0.0, %v641
      %v643 = vpop.f32.mrb[0].mxu0
      %644 = vmatprep.mubr.bf16.mxu0 0
      %645 = vmatmul.mubr.bf16.gmra.mrb[0].mxu0 %v506
      %v646 = vpop.f32.mrb[0].mxu0
      %v647 = vadd.f32 0.0, %v646
      %v648 = vpop.f32.mrb[0].mxu0
      %v649 = vpop.f32.mrb[0].mxu0
      %v650 = vadd.f32 0.0, %v649
      %v651 = vpop.f32.mrb[0].mxu0
      %652 = vmatprep.mubr.bf16.mxu0 0
      %653 = vmatmul.mubr.bf16.gmra.mrb[0].mxu0 %v509
      %v654 = vpop.f32.mrb[0].mxu0
      %v655 = vadd.f32 0.0, %v654
      %v656 = vpop.f32.mrb[0].mxu0
      %v657 = vpop.f32.mrb[0].mxu0
      %v658 = vadd.f32 0.0, %v657
      %v659 = vpop.f32.mrb[0].mxu0
      %660 = vmatprep.mubr.bf16.mxu0 0
      %661 = vmatmul.mubr.bf16.gmra.mrb[0].mxu0 %v512
      %v662 = vpop.f32.mrb[0].mxu0
      %v663 = vadd.f32 0.0, %v662
      %v664 = vpop.f32.mrb[0].mxu0
      %v665 = vpop.f32.mrb[0].mxu0
      %v666 = vadd.f32 0.0, %v665
      %v667 = vpop.f32.mrb[0].mxu0
      %668 = vmatprep.mubr.bf16.mxu0 0
      %669 = vmatmul.mubr.bf16.gmra.mrb[0].mxu0 %v515
      %v670 = vpop.f32.mrb[0].mxu0
      %v671 = vadd.f32 0.0, %v670
      %v672 = vpop.f32.mrb[0].mxu0
      %v673 = vpop.f32.mrb[0].mxu0
      %v674 = vadd.f32 0.0, %v673
      %v675 = vpop.f32.mrb[0].mxu0
      %676 = vmatprep.mubr.bf16.mxu0 0
      %677 = vmatmul.mubr.bf16.gmra.mrb[0].mxu0 %v518
      %v678 = vpop.f32.mrb[0].mxu0
      %v679 = vadd.f32 0.0, %v678
      %v680 = vpop.f32.mrb[0].mxu0
      %v681 = vpop.f32.mrb[0].mxu0
      %v682 = vadd.f32 0.0, %v681
      %v683 = vpop.f32.mrb[0].mxu0
      %684 = vdwg.mxu0
      %v685 = vadd.f32 %v358, %v559
      %v686 = vadd.f32 %v359, %v562
      %v687 = vadd.f32 %v360, %v567
      %v688 = vadd.f32 %v361, %v570
      %v689 = vadd.f32 %v362, %v575
      %v690 = vadd.f32 %v363, %v578
      %v691 = vadd.f32 %v364, %v583
      %v692 = vadd.f32 %v365, %v586
      %v693 = vadd.f32 %v366, %v591
      %v694 = vadd.f32 %v367, %v594
      %v695 = vadd.f32 %v368, %v599
      %v696 = vadd.f32 %v369, %v602
      %v697 = vadd.f32 %v370, %v607
      %v698 = vadd.f32 %v371, %v610
      %v699 = vadd.f32 %v372, %v615
      %v700 = vadd.f32 %v373, %v618
      %v701 = vadd.f32 %v374, %v623
      %v702 = vadd.f32 %v375, %v626
      %v703 = vadd.f32 %v376, %v631
      %v704 = vadd.f32 %v377, %v634
      %v705 = vadd.f32 %v378, %v639
      %v706 = vadd.f32 %v379, %v642
      %v707 = vadd.f32 %v380, %v647
      %v708 = vadd.f32 %v381, %v650
      %v709 = vadd.f32 %v382, %v655
      %v710 = vadd.f32 %v383, %v658
      %v711 = vadd.f32 %v384, %v663
      %v712 = vadd.f32 %v385, %v666
      %v713 = vadd.f32 %v386, %v671
      %v714 = vadd.f32 %v387, %v674
      %v715 = vadd.f32 %v388, %v679
      %v716 = vadd.f32 %v389, %v682
      %vm717 = vcmask 7168
      %718 = vst.msk [vmem:[%s254] sm:$0xff] %vm717, %v685
      %719 = vst.msk [vmem:[%s254 + $0x8] sm:$0xff] %vm717, %v686
      %720 = vst.msk [vmem:[%s254 + $0x10] sm:$0xff] %vm717, %v687
      %721 = vst.msk [vmem:[%s254 + $0x18] sm:$0xff] %vm717, %v688
      %722 = vst.msk [vmem:[%s254 + $0x20] sm:$0xff] %vm717, %v689
      %723 = vst.msk [vmem:[%s254 + $0x28] sm:$0xff] %vm717, %v690
      %724 = vst.msk [vmem:[%s254 + $0x30] sm:$0xff] %vm717, %v691
      %725 = vst.msk [vmem:[%s254 + $0x38] sm:$0xff] %vm717, %v692
      %726 = vst.msk [vmem:[%s254 + $0x40] sm:$0xff] %vm717, %v693
      %727 = vst.msk [vmem:[%s254 + $0x48] sm:$0xff] %vm717, %v694
      %728 = vst.msk [vmem:[%s254 + $0x50] sm:$0xff] %vm717, %v695
      %729 = vst.msk [vmem:[%s254 + $0x58] sm:$0xff] %vm717, %v696
      %730 = vst.msk [vmem:[%s254 + $0x60] sm:$0xff] %vm717, %v697
      %731 = vst.msk [vmem:[%s254 + $0x68] sm:$0xff] %vm717, %v698
      %732 = vst.msk [vmem:[%s254 + $0x70] sm:$0xff] %vm717, %v699
      %733 = vst.msk [vmem:[%s254 + $0x78] sm:$0xff] %vm717, %v700
      %734 = vst.msk [vmem:[%s254 + $0x80] sm:$0xff] %vm717, %v701
      %735 = vst.msk [vmem:[%s254 + $0x88] sm:$0xff] %vm717, %v702
      %736 = vst.msk [vmem:[%s254 + $0x90] sm:$0xff] %vm717, %v703
      %737 = vst.msk [vmem:[%s254 + $0x98] sm:$0xff] %vm717, %v704
      %738 = vst.msk [vmem:[%s254 + $0xa0] sm:$0xff] %vm717, %v705
      %739 = vst.msk [vmem:[%s254 + $0xa8] sm:$0xff] %vm717, %v706
      %740 = vst.msk [vmem:[%s254 + $0xb0] sm:$0xff] %vm717, %v707
      %741 = vst.msk [vmem:[%s254 + $0xb8] sm:$0xff] %vm717, %v708
      %742 = vst.msk [vmem:[%s254 + $0xc0] sm:$0xff] %vm717, %v709
      %743 = vst.msk [vmem:[%s254 + $0xc8] sm:$0xff] %vm717, %v710
      %744 = vst.msk [vmem:[%s254 + $0xd0] sm:$0xff] %vm717, %v711
      %745 = vst.msk [vmem:[%s254 + $0xd8] sm:$0xff] %vm717, %v712
      %746 = vst.msk [vmem:[%s254 + $0xe0] sm:$0xff] %vm717, %v713
      %747 = vst.msk [vmem:[%s254 + $0xe8] sm:$0xff] %vm717, %v714
      %748 = vst.msk [vmem:[%s254 + $0xf0] sm:$0xff] %vm717, %v715
      %749 = vst.msk [vmem:[%s254 + $0xf8] sm:$0xff] %vm717, %v716
      // Predicated region
      $region37: #{_lambda_.47} parent=31 // pred_check
        %p750 = pneg %p321
      $region38: #{_lambda_.47} parent=31 // pred_check_branch
        %752 = sbr.rel (%p750) target = $region40
      $region39: #{_lambda_.47} parent=31 // pred_region
        %v753 = vld [vmem:[%s254] sm:$0xff]
        %v754 = vld [vmem:[%s254 + $0x8] sm:$0xff]
        %v755 = vld [vmem:[%s254 + $0x10] sm:$0xff]
        %v756 = vld [vmem:[%s254 + $0x18] sm:$0xff]
        %v757 = vld [vmem:[%s254 + $0x20] sm:$0xff]
        %v758 = vld [vmem:[%s254 + $0x28] sm:$0xff]
        %v759 = vld [vmem:[%s254 + $0x30] sm:$0xff]
        %v760 = vld [vmem:[%s254 + $0x38] sm:$0xff]
        %v761 = vld [vmem:[%s254 + $0x40] sm:$0xff]
        %v762 = vld [vmem:[%s254 + $0x48] sm:$0xff]
        %v763 = vld [vmem:[%s254 + $0x50] sm:$0xff]
        %v764 = vld [vmem:[%s254 + $0x58] sm:$0xff]
        %v765 = vld [vmem:[%s254 + $0x60] sm:$0xff]
        %v766 = vld [vmem:[%s254 + $0x68] sm:$0xff]
        %v767 = vld [vmem:[%s254 + $0x70] sm:$0xff]
        %v768 = vld [vmem:[%s254 + $0x78] sm:$0xff]
        %v769 = vld [vmem:[%s254 + $0x80] sm:$0xff]
        %v770 = vld [vmem:[%s254 + $0x88] sm:$0xff]
        %v771 = vld [vmem:[%s254 + $0x90] sm:$0xff]
        %v772 = vld [vmem:[%s254 + $0x98] sm:$0xff]
        %v773 = vld [vmem:[%s254 + $0xa0] sm:$0xff]
        %v774 = vld [vmem:[%s254 + $0xa8] sm:$0xff]
        %v775 = vld [vmem:[%s254 + $0xb0] sm:$0xff]
        %v776 = vld [vmem:[%s254 + $0xb8] sm:$0xff]
        %v777 = vld [vmem:[%s254 + $0xc0] sm:$0xff]
        %v778 = vld [vmem:[%s254 + $0xc8] sm:$0xff]
        %v779 = vld [vmem:[%s254 + $0xd0] sm:$0xff]
        %v780 = vld [vmem:[%s254 + $0xd8] sm:$0xff]
        %v781 = vld [vmem:[%s254 + $0xe0] sm:$0xff]
        %v782 = vld [vmem:[%s254 + $0xe8] sm:$0xff]
        %v783 = vld [vmem:[%s254 + $0xf0] sm:$0xff]
        %v784 = vld [vmem:[%s254 + $0xf8] sm:$0xff]
        %v785 = vld [vmem:[%s246] sm:$0x1]
        %v787 = vlaneseq
        %v788 = vshrl.u32 %v787, 7
        %v789 = vsub.s32 0, %v788
        %v790 = vrot.slane %v785, %v789
        %v792 = vadd.f32 %v753, %v790
        %v793 = vadd.f32 %v754, %v790
        %v794 = vadd.f32 %v755, %v790
        %v795 = vadd.f32 %v756, %v790
        %v796 = vadd.f32 %v757, %v790
        %v797 = vadd.f32 %v758, %v790
        %v798 = vadd.f32 %v759, %v790
        %v799 = vadd.f32 %v760, %v790
        %v800 = vadd.f32 %v761, %v790
        %v801 = vadd.f32 %v762, %v790
        %v802 = vadd.f32 %v763, %v790
        %v803 = vadd.f32 %v764, %v790
        %v804 = vadd.f32 %v765, %v790
        %v805 = vadd.f32 %v766, %v790
        %v806 = vadd.f32 %v767, %v790
        %v807 = vadd.f32 %v768, %v790
        %v808 = vadd.f32 %v769, %v790
        %v809 = vadd.f32 %v770, %v790
        %v810 = vadd.f32 %v771, %v790
        %v811 = vadd.f32 %v772, %v790
        %v812 = vadd.f32 %v773, %v790
        %v813 = vadd.f32 %v774, %v790
        %v814 = vadd.f32 %v775, %v790
        %v815 = vadd.f32 %v776, %v790
        %v816 = vadd.f32 %v777, %v790
        %v817 = vadd.f32 %v778, %v790
        %v818 = vadd.f32 %v779, %v790
        %v819 = vadd.f32 %v780, %v790
        %v820 = vadd.f32 %v781, %v790
        %v821 = vadd.f32 %v782, %v790
        %v822 = vadd.f32 %v783, %v790
        %v823 = vadd.f32 %v784, %v790
        %v824 = vsub.f32 0.0, %v792
        %v825 = vsub.f32 0.0, %v793
        %v826 = vsub.f32 0.0, %v794
        %v827 = vsub.f32 0.0, %v795
        %v828 = vsub.f32 0.0, %v796
        %v829 = vsub.f32 0.0, %v797
        %v830 = vsub.f32 0.0, %v798
        %v831 = vsub.f32 0.0, %v799
        %v832 = vsub.f32 0.0, %v800
        %v833 = vsub.f32 0.0, %v801
        %v834 = vsub.f32 0.0, %v802
        %v835 = vsub.f32 0.0, %v803
        %v836 = vsub.f32 0.0, %v804
        %v837 = vsub.f32 0.0, %v805
        %v838 = vsub.f32 0.0, %v806
        %v839 = vsub.f32 0.0, %v807
        %v840 = vsub.f32 0.0, %v808
        %v841 = vsub.f32 0.0, %v809
        %v842 = vsub.f32 0.0, %v810
        %v843 = vsub.f32 0.0, %v811
        %v844 = vsub.f32 0.0, %v812
        %v845 = vsub.f32 0.0, %v813
        %v846 = vsub.f32 0.0, %v814
        %v847 = vsub.f32 0.0, %v815
        %v848 = vsub.f32 0.0, %v816
        %v849 = vsub.f32 0.0, %v817
        %v850 = vsub.f32 0.0, %v818
        %v851 = vsub.f32 0.0, %v819
        %v852 = vsub.f32 0.0, %v820
        %v853 = vsub.f32 0.0, %v821
        %v854 = vsub.f32 0.0, %v822
        %v855 = vsub.f32 0.0, %v823
        %v856 = vmul.f32 %v824, 1.442695
        %v857 = vpow.pop %v856
        %v858 = vmul.f32 %v825, 1.442695
        %v859 = vpow.pop %v858
        %v860 = vmul.f32 %v826, 1.442695
        %v861 = vpow.pop %v860
        %v862 = vmul.f32 %v827, 1.442695
        %v863 = vpow.pop %v862
        %v864 = vmul.f32 %v828, 1.442695
        %v865 = vpow.pop %v864
        %v866 = vmul.f32 %v829, 1.442695
        %v867 = vpow.pop %v866
        %v868 = vmul.f32 %v830, 1.442695
        %v869 = vpow.pop %v868
        %v870 = vmul.f32 %v831, 1.442695
        %v871 = vpow.pop %v870
        %v872 = vmul.f32 %v832, 1.442695
        %v873 = vpow.pop %v872
        %v874 = vmul.f32 %v833, 1.442695
        %v875 = vpow.pop %v874
        %v876 = vmul.f32 %v834, 1.442695
        %v877 = vpow.pop %v876
        %v878 = vmul.f32 %v835, 1.442695
        %v879 = vpow.pop %v878
        %v880 = vmul.f32 %v836, 1.442695
        %v881 = vpow.pop %v880
        %v882 = vmul.f32 %v837, 1.442695
        %v883 = vpow.pop %v882
        %v884 = vmul.f32 %v838, 1.442695
        %v885 = vpow.pop %v884
        %v886 = vmul.f32 %v839, 1.442695
        %v887 = vpow.pop %v886
        %v888 = vmul.f32 %v840, 1.442695
        %v889 = vpow.pop %v888
        %v890 = vmul.f32 %v841, 1.442695
        %v891 = vpow.pop %v890
        %v892 = vmul.f32 %v842, 1.442695
        %v893 = vpow.pop %v892
        %v894 = vmul.f32 %v843, 1.442695
        %v895 = vpow.pop %v894
        %v896 = vmul.f32 %v844, 1.442695
        %v897 = vpow.pop %v896
        %v898 = vmul.f32 %v845, 1.442695
        %v899 = vpow.pop %v898
        %v900 = vmul.f32 %v846, 1.442695
        %v901 = vpow.pop %v900
        %v902 = vmul.f32 %v847, 1.442695
        %v903 = vpow.pop %v902
        %v904 = vmul.f32 %v848, 1.442695
        %v905 = vpow.pop %v904
        %v906 = vmul.f32 %v849, 1.442695
        %v907 = vpow.pop %v906
        %v908 = vmul.f32 %v850, 1.442695
        %v909 = vpow.pop %v908
        %v910 = vmul.f32 %v851, 1.442695
        %v911 = vpow.pop %v910
        %v912 = vmul.f32 %v852, 1.442695
        %v913 = vpow.pop %v912
        %v914 = vmul.f32 %v853, 1.442695
        %v915 = vpow.pop %v914
        %v916 = vmul.f32 %v854, 1.442695
        %v917 = vpow.pop %v916
        %v918 = vmul.f32 %v855, 1.442695
        %v919 = vpow.pop %v918
        %v920 = vadd.f32 %v857, 1.0
        %v921 = vadd.f32 %v859, 1.0
        %v922 = vadd.f32 %v861, 1.0
        %v923 = vadd.f32 %v863, 1.0
        %v924 = vadd.f32 %v865, 1.0
        %v925 = vadd.f32 %v867, 1.0
        %v926 = vadd.f32 %v869, 1.0
        %v927 = vadd.f32 %v871, 1.0
        %v928 = vadd.f32 %v873, 1.0
        %v929 = vadd.f32 %v875, 1.0
        %v930 = vadd.f32 %v877, 1.0
        %v931 = vadd.f32 %v879, 1.0
        %v932 = vadd.f32 %v881, 1.0
        %v933 = vadd.f32 %v883, 1.0
        %v934 = vadd.f32 %v885, 1.0
        %v935 = vadd.f32 %v887, 1.0
        %v936 = vadd.f32 %v889, 1.0
        %v937 = vadd.f32 %v891, 1.0
        %v938 = vadd.f32 %v893, 1.0
        %v939 = vadd.f32 %v895, 1.0
        %v940 = vadd.f32 %v897, 1.0
        %v941 = vadd.f32 %v899, 1.0
        %v942 = vadd.f32 %v901, 1.0
        %v943 = vadd.f32 %v903, 1.0
        %v944 = vadd.f32 %v905, 1.0
        %v945 = vadd.f32 %v907, 1.0
        %v946 = vadd.f32 %v909, 1.0
        %v947 = vadd.f32 %v911, 1.0
        %v948 = vadd.f32 %v913, 1.0
        %v949 = vadd.f32 %v915, 1.0
        %v950 = vadd.f32 %v917, 1.0
        %v951 = vadd.f32 %v919, 1.0
        %v952 = vrcp.pop %v920
        %v953 = vmul.f32 1.0, %v952
        %v954 = vrcp.pop %v921
        %v955 = vmul.f32 1.0, %v954
        %v956 = vrcp.pop %v922
        %v957 = vmul.f32 1.0, %v956
        %v958 = vrcp.pop %v923
        %v959 = vmul.f32 1.0, %v958
        %v960 = vrcp.pop %v924
        %v961 = vmul.f32 1.0, %v960
        %v962 = vrcp.pop %v925
        %v963 = vmul.f32 1.0, %v962
        %v964 = vrcp.pop %v926
        %v965 = vmul.f32 1.0, %v964
        %v966 = vrcp.pop %v927
        %v967 = vmul.f32 1.0, %v966
        %v968 = vrcp.pop %v928
        %v969 = vmul.f32 1.0, %v968
        %v970 = vrcp.pop %v929
        %v971 = vmul.f32 1.0, %v970
        %v972 = vrcp.pop %v930
        %v973 = vmul.f32 1.0, %v972
        %v974 = vrcp.pop %v931
        %v975 = vmul.f32 1.0, %v974
        %v976 = vrcp.pop %v932
        %v977 = vmul.f32 1.0, %v976
        %v978 = vrcp.pop %v933
        %v979 = vmul.f32 1.0, %v978
        %v980 = vrcp.pop %v934
        %v981 = vmul.f32 1.0, %v980
        %v982 = vrcp.pop %v935
        %v983 = vmul.f32 1.0, %v982
        %v984 = vrcp.pop %v936
        %v985 = vmul.f32 1.0, %v984
        %v986 = vrcp.pop %v937
        %v987 = vmul.f32 1.0, %v986
        %v988 = vrcp.pop %v938
        %v989 = vmul.f32 1.0, %v988
        %v990 = vrcp.pop %v939
        %v991 = vmul.f32 1.0, %v990
        %v992 = vrcp.pop %v940
        %v993 = vmul.f32 1.0, %v992
        %v994 = vrcp.pop %v941
        %v995 = vmul.f32 1.0, %v994
        %v996 = vrcp.pop %v942
        %v997 = vmul.f32 1.0, %v996
        %v998 = vrcp.pop %v943
        %v999 = vmul.f32 1.0, %v998
        %v1000 = vrcp.pop %v944
        %v1001 = vmul.f32 1.0, %v1000
        %v1002 = vrcp.pop %v945
        %v1003 = vmul.f32 1.0, %v1002
        %v1004 = vrcp.pop %v946
        %v1005 = vmul.f32 1.0, %v1004
        %v1006 = vrcp.pop %v947
        %v1007 = vmul.f32 1.0, %v1006
        %v1008 = vrcp.pop %v948
        %v1009 = vmul.f32 1.0, %v1008
        %v1010 = vrcp.pop %v949
        %v1011 = vmul.f32 1.0, %v1010
        %v1012 = vrcp.pop %v950
        %v1013 = vmul.f32 1.0, %v1012
        %v1014 = vrcp.pop %v951
        %v1015 = vmul.f32 1.0, %v1014
        %1016 = vst.msk [vmem:[%s254] sm:$0xff] %vm717, %v953
        %1017 = vst.msk [vmem:[%s254 + $0x8] sm:$0xff] %vm717, %v955
        %1018 = vst.msk [vmem:[%s254 + $0x10] sm:$0xff] %vm717, %v957
        %1019 = vst.msk [vmem:[%s254 + $0x18] sm:$0xff] %vm717, %v959
        %1020 = vst.msk [vmem:[%s254 + $0x20] sm:$0xff] %vm717, %v961
        %1021 = vst.msk [vmem:[%s254 + $0x28] sm:$0xff] %vm717, %v963
        %1022 = vst.msk [vmem:[%s254 + $0x30] sm:$0xff] %vm717, %v965
        %1023 = vst.msk [vmem:[%s254 + $0x38] sm:$0xff] %vm717, %v967
        %1024 = vst.msk [vmem:[%s254 + $0x40] sm:$0xff] %vm717, %v969
        %1025 = vst.msk [vmem:[%s254 + $0x48] sm:$0xff] %vm717, %v971
        %1026 = vst.msk [vmem:[%s254 + $0x50] sm:$0xff] %vm717, %v973
        %1027 = vst.msk [vmem:[%s254 + $0x58] sm:$0xff] %vm717, %v975
        %1028 = vst.msk [vmem:[%s254 + $0x60] sm:$0xff] %vm717, %v977
        %1029 = vst.msk [vmem:[%s254 + $0x68] sm:$0xff] %vm717, %v979
        %1030 = vst.msk [vmem:[%s254 + $0x70] sm:$0xff] %vm717, %v981
        %1031 = vst.msk [vmem:[%s254 + $0x78] sm:$0xff] %vm717, %v983
        %1032 = vst.msk [vmem:[%s254 + $0x80] sm:$0xff] %vm717, %v985
        %1033 = vst.msk [vmem:[%s254 + $0x88] sm:$0xff] %vm717, %v987
        %1034 = vst.msk [vmem:[%s254 + $0x90] sm:$0xff] %vm717, %v989
        %1035 = vst.msk [vmem:[%s254 + $0x98] sm:$0xff] %vm717, %v991
        %1036 = vst.msk [vmem:[%s254 + $0xa0] sm:$0xff] %vm717, %v993
        %1037 = vst.msk [vmem:[%s254 + $0xa8] sm:$0xff] %vm717, %v995
        %1038 = vst.msk [vmem:[%s254 + $0xb0] sm:$0xff] %vm717, %v997
        %1039 = vst.msk [vmem:[%s254 + $0xb8] sm:$0xff] %vm717, %v999
        %1040 = vst.msk [vmem:[%s254 + $0xc0] sm:$0xff] %vm717, %v1001
        %1041 = vst.msk [vmem:[%s254 + $0xc8] sm:$0xff] %vm717, %v1003
        %1042 = vst.msk [vmem:[%s254 + $0xd0] sm:$0xff] %vm717, %v1005
        %1043 = vst.msk [vmem:[%s254 + $0xd8] sm:$0xff] %vm717, %v1007
        %1044 = vst.msk [vmem:[%s254 + $0xe0] sm:$0xff] %vm717, %v1009
        %1045 = vst.msk [vmem:[%s254 + $0xe8] sm:$0xff] %vm717, %v1011
        %1046 = vst.msk [vmem:[%s254 + $0xf0] sm:$0xff] %vm717, %v1013
        %1047 = vst.msk [vmem:[%s254 + $0xf8] sm:$0xff] %vm717, %v1015
      $region40: #{_lambda_.47} parent=31 // pred_fallthru
        _
      %s1048 = smul.u32 32, %s21
      %p1049 = scmp.lt.s32.totalorder %s1048, 63
      %s1050 = scalar_select %p1049, %s1048, 63
      %p1051 = scmp.lt.s32.totalorder %s22, 0
      %s1052 = scalar_select %p1051, %s22, 0
      %s1053 = sadd.s32 %s1052, %s1050
      %s1054 = smul.addr %s1053, 8
      %s1055 = scalar_lea.vmem %s3, %s1054
      // Predicated region
      $region41: #{_lambda_.47} parent=31 // pred_check
        %p1056 = pneg %p137
      $region42: #{_lambda_.47} parent=31 // pred_check_branch
        %1058 = sbr.rel (%p1056) target = $region44
      $region43: #{_lambda_.47} parent=31 // pred_region
        %s1059 = smul.u32 32, %s21
      $region44: #{_lambda_.47} parent=31 // pred_fallthru
        _
    $region32: #{_lambda_.47} parent=5 // pred_fallthru
      _
    %p1060 = scmp.le.s32.totalorder 2, %s11
    // Predicated region
    $region45: #{_lambda_.47} parent=5 // pred_check
      %p1061 = pneg %p1060
    $region46: #{_lambda_.47} parent=5 // pred_check_branch
      %1063 = sbr.rel (%p1061) target = $region48
    $region47: #{_lambda_.47} parent=5 // pred_region
      %s1064 = ssub.s32 %s11, 2
      // Predicated region
      $region49: #{_lambda_.47} parent=47 // pred_check
        %p1065 = pneg %p143
      $region50: #{_lambda_.47} parent=47 // pred_check_branch
        %1067 = sbr.rel (%p1065) target = $region52
      $region51: #{_lambda_.47} parent=47 // pred_region
        %s1068 = smul.u32 32, %s24
        %p1069 = scmp.lt.s32.totalorder %s1068, 63
        %s1070 = scalar_select %p1069, %s1068, 63
        %p1071 = scmp.lt.s32.totalorder %s25, 0
        %s1072 = scalar_select %p1071, %s25, 0
        %s1073 = sadd.s32 %s1072, %s1070
        %s1074 = smul.addr %s1073, 8
        %s1075 = scalar_lea.vmem %s3, %s1074
      $region52: #{_lambda_.47} parent=47 // pred_fallthru
        _
    $region48: #{_lambda_.47} parent=5 // pred_fallthru
      _
  $region6: #{_lambda_.47} parent=0 // loop_footer
    %s15 = sadd.s32 1, %s11
  $region7: #{_lambda_.47} parent=0 // loop_footer_branch
    %10 = sbr.rel target = $region3
  $region8: #{_lambda_.47} parent=0 // loop_exit
    _

</llo_original>
